<compile_context>
chip_gen: v5e
topology: v5e:2x2
jax: 0.10.0
libtpu: 0.0.40
codegen_flags: <defaults>
</compile_context>

<pallas_src>
import numpy as np

import jax
import jax.numpy as jnp
from jax.experimental import pallas as pl
from jax.experimental.pallas import tpu as pltpu


# ---------------------------------------------------------------------------
# Host-side (param/shape-only) precompute helpers
# ---------------------------------------------------------------------------

def _gather_mats(h_in, w_in, h_out, w_out, k, stride, pad):
    """Per-tap 0/1 gather matrices G[t]: (G[t] @ x_flat)[p, c] = x[r, s, c] of
    tap t at output position p (0 where the tap lands in zero padding).
    Also returns the per-tap validity mask (k*k, h_out*w_out)."""
    taps = k * k
    g = np.zeros((taps, h_out * w_out, h_in * w_in), np.float32)
    valid = np.zeros((taps, h_out * w_out), np.float32)
    for dy in range(k):
        for dx in range(k):
            t = dy * k + dx
            for i in range(h_out):
                for j in range(w_out):
                    r = i * stride + dy - pad
                    s = j * stride + dx - pad
                    if 0 <= r < h_in and 0 <= s < w_in:
                        g[t, i * w_out + j, r * w_in + s] = 1.0
                        valid[t, i * w_out + j] = 1.0
    return g, valid


def _conv_op_2d(w2d, h, w, pad):
    """Dense (h*w, h*w) operator A with (A @ x_flat) == conv2d_same(x, w2d)
    (stride-1 zero-padded cross-correlation, single channel)."""
    k = w2d.shape[0]
    a = np.zeros((h * w, h * w), np.float32)
    for dy in range(k):
        for dx in range(k):
            for i in range(h):
                for j in range(w):
                    r = i + dy - pad
                    s = j + dx - pad
                    if 0 <= r < h and 0 <= s < w:
                        a[i * w + j, r * w + s] += float(w2d[dy, dx])
    return a


def _tap_weights(w_oihw):
    """(Cout, Cin, kh, kw) -> (kh*kw, Cin, Cout), tap index t = dy*kw + dx."""
    w = np.asarray(w_oihw, np.float32)
    cout, cin, kh, kw = w.shape
    return np.transpose(w, (2, 3, 1, 0)).reshape(kh * kw, cin, cout)


# ---------------------------------------------------------------------------
# Fused Pallas kernel (one grid step == one batch element, fully VMEM resident)
# ---------------------------------------------------------------------------

def _sigmoid(x):
    return 1.0 / (1.0 + jnp.exp(-x))


def _stem_kernel(x_ref, g_ref, wh_ref, sh_ref, bh_ref,
                 caw1_ref, cab1_ref, caw2_ref, cab2_ref,
                 amax_ref, amean_ref, sab_ref,
                 wl0_ref, sl0_ref, bl0_ref,
                 smat_ref, negm_ref, wl1_ref, sl1_ref, bl1_ref,
                 fmat_ref, wfl_ref, wfr_ref, sf_ref, bf_ref,
                 o_ref):
    f32 = jnp.float32

    def dot(a, b):
        return jnp.dot(a, b, preferred_element_type=f32)

    x = x_ref[0]                                     # (H*W, Cin) flat NHWC
    n_tap = g_ref.shape[0]

    # -- AttnConv.head_conv: Conv(Cin->16, 3x3, s=2, p=1, bias=False) + BN ----
    feat = jnp.zeros((g_ref.shape[1], wh_ref.shape[2]), f32)
    for t in range(n_tap):
        feat = feat + dot(dot(g_ref[t], x), wh_ref[t])
    feat = feat * sh_ref[...] + bh_ref[...]          # (HW, 16), no activation

    # -- CBAM channel attention (avg+max pool -> Linear(16,1)+ReLU+Linear(1,16))
    avg = jnp.mean(feat, axis=0, keepdims=True)      # (1, 16)
    mxp = jnp.max(feat, axis=0, keepdims=True)       # (1, 16)

    def mlp(v):
        h = jnp.sum(v * caw1_ref[...], axis=-1, keepdims=True) + cab1_ref[...]
        h = jnp.maximum(h, 0.0)
        return h * caw2_ref[...] + cab2_ref[...]

    xc = feat * _sigmoid(mlp(avg) + mlp(mxp))        # channel-gated (HW, 16)

    # -- CBAM spatial attention: ChannelPool -> 7x7 conv + BN (folded) -> gate -
    cmax = jnp.max(xc, axis=-1, keepdims=True)       # (HW, 1)
    cmean = jnp.mean(xc, axis=-1, keepdims=True)     # (HW, 1)
    s = dot(amax_ref[...], cmax) + dot(amean_ref[...], cmean) + sab_ref[...]
    feat = xc * _sigmoid(s)                          # gated feature (HW, 16)

    # -- left branch: ConvBNReLU(16,8,1,s1,p0) -> ConvBNReLU(8,16,3,s2,p1) -----
    l0 = jnp.maximum(dot(feat, wl0_ref[...]) * sl0_ref[...] + bl0_ref[...], 0.0)
    l1 = jnp.zeros((smat_ref.shape[1], wl1_ref.shape[2]), f32)
    for t in range(n_tap):
        l1 = l1 + dot(dot(smat_ref[t], l0), wl1_ref[t])
    l1 = jnp.maximum(l1 * sl1_ref[...] + bl1_ref[...], 0.0)     # (HW/4, 16)

    # -- right branch: MaxPool2d(3, s=2, p=1) on the gated feature --------------
    right = None
    for t in range(n_tap):
        cand = dot(smat_ref[t], feat) + negm_ref[t]  # -1e30 where tap is padding
        right = cand if right is None else jnp.maximum(right, cand)

    # -- fuse: ConvBNReLU(32,16,3,s=1,p=1) on concat([left, right], channels) ---
    y = jnp.zeros((fmat_ref.shape[1], sf_ref.shape[1]), f32)
    for t in range(n_tap):
        y = y + dot(dot(fmat_ref[t], l1), wfl_ref[t])
        y = y + dot(dot(fmat_ref[t], right), wfr_ref[t])
    y = jnp.maximum(y * sf_ref[...] + bf_ref[...], 0.0)

    o_ref[0] = y                                     # (HW/4, 16)


# ---------------------------------------------------------------------------
# Forward wrapper: one pallas_call, batch on a parallel grid
# ---------------------------------------------------------------------------

_CONST_KEYS = (
    "g_head", "w_head", "s_head", "b_head",
    "ca_w1", "ca_b1", "ca_w2", "ca_b2",
    "a_max", "a_mean", "sa_bias",
    "w_l0", "s_l0", "b_l0",
    "s_mat", "neg_mask", "w_l1", "s_l1", "b_l1",
    "f_mat", "w_fuse_l", "w_fuse_r", "s_fuse", "b_fuse",
)


def stem_block_attn(x_nchw, ops):
    N, cin, H, W = x_nchw.shape
    hw_in = H * W
    hw_out = ops["f_mat"].shape[1]
    c_out = ops["s_fuse"].shape[1]

    x = jnp.transpose(x_nchw, (0, 2, 3, 1)).reshape(N, hw_in, cin)
    consts = [ops[k] for k in _CONST_KEYS]

    def _const_spec(a):
        nd = a.ndim
        return pl.BlockSpec(tuple(a.shape), lambda n, _nd=nd: (0,) * _nd)

    out = pl.pallas_call(
        _stem_kernel,
        out_shape=jax.ShapeDtypeStruct((N, hw_out, c_out), jnp.float32),
        grid=(N,),
        in_specs=[pl.BlockSpec((1, hw_in, cin), lambda n: (n, 0, 0))]
                 + [_const_spec(a) for a in consts],
        out_specs=pl.BlockSpec((1, hw_out, c_out), lambda n: (n, 0, 0)),
        compiler_params=pltpu.CompilerParams(
            dimension_semantics=("parallel",),        # batch across v7x TCs
            vmem_limit_bytes=32 * 1024 * 1024,        # ~2 MiB used; safe on all gens
        ),
    )(x, *consts)

    Hq, Wq = H // 4, W // 4
    return jnp.transpose(out.reshape(N, Hq, Wq, c_out), (0, 3, 1, 2))


# ---------------------------------------------------------------------------
# Parameters (deterministic synthetic init, PyTorch-shaped) and precompute
# ---------------------------------------------------------------------------

def init_params(key):
    keys = iter(jax.random.split(key, 32))

    def conv_w(cout, cin, kh, kw):
        return (jax.random.normal(next(keys), (cout, cin, kh, kw), jnp.float32)
                / jnp.sqrt(cin * kh * kw))

    def bn(c, eps=1e-5):
        k1, k2, k3, k4 = jax.random.split(next(keys), 4)
        gamma = 1.0 + 0.1 * jax.random.normal(k1, (c,), jnp.float32)
        beta = 0.1 * jax.random.normal(k2, (c,), jnp.float32)
        mean = 0.1 * jax.random.normal(k3, (c,), jnp.float32)
        var = 0.5 + jnp.abs(jax.random.normal(k4, (c,), jnp.float32))
        scale = gamma / jnp.sqrt(var + eps)
        bias = beta - mean * scale
        return scale, bias

    p = {}
    # AttnConv.head_conv : Conv2d(5,16,3,s=2,p=1,bias=False) + BN(16)
    p["head_w"] = conv_w(16, 5, 3, 3)
    p["head_bn_s"], p["head_bn_b"] = bn(16)
    # CBAM.ChannelAttn MLP : Linear(16,1) -> ReLU -> Linear(1,16)
    p["ca_w1"] = jax.random.normal(next(keys), (1, 16), jnp.float32) / 4.0
    p["ca_b1"] = 0.1 * jax.random.normal(next(keys), (1,), jnp.float32)
    p["ca_w2"] = jax.random.normal(next(keys), (16, 1), jnp.float32)
    p["ca_b2"] = 0.1 * jax.random.normal(next(keys), (16,), jnp.float32)
    # CBAM.SpatialAttn : Conv2d(2,1,7,p=3,bias=True) + BN(1)
    p["sa_w"] = conv_w(1, 2, 7, 7)
    p["sa_b"] = 0.1 * jax.random.normal(next(keys), (1,), jnp.float32)
    p["sa_bn_s"], p["sa_bn_b"] = bn(1)
    # left : ConvBNReLU(16,8,1,s=1,p=0), ConvBNReLU(8,16,3,s=2,p=1)
    p["l0_w"] = conv_w(8, 16, 1, 1)
    p["l0_bn_s"], p["l0_bn_b"] = bn(8)
    p["l1_w"] = conv_w(16, 8, 3, 3)
    p["l1_bn_s"], p["l1_bn_b"] = bn(16)
    # fuse : ConvBNReLU(32,16,3,s=1,p=1)
    p["fuse_w"] = conv_w(16, 32, 3, 3)
    p["fuse_bn_s"], p["fuse_bn_b"] = bn(16)
    return p


def prepare_operands(p, *, in_hw=(16, 16)):
    """Hoisted, parameter/shape-only precompute (runs once, outside jit)."""
    H, W = in_hw
    Ho, Wo = H // 2, W // 2
    Hq, Wq = Ho // 2, Wo // 2

    g_head, _ = _gather_mats(H, W, Ho, Wo, 3, 2, 1)        # (9, Ho*Wo, H*W)
    s_mat, s_valid = _gather_mats(Ho, Wo, Hq, Wq, 3, 2, 1)  # (9, Hq*Wq, Ho*Wo)
    f_mat, _ = _gather_mats(Hq, Wq, Hq, Wq, 3, 1, 1)        # (9, Hq*Wq, Hq*Wq)
    neg_mask = ((s_valid - 1.0) * 1e30)[:, :, None]         # -1e30 on padded taps

    sa_w = np.asarray(p["sa_w"], np.float32)
    sa_s = float(np.asarray(p["sa_bn_s"])[0])
    a_max = _conv_op_2d(sa_w[0, 0], Ho, Wo, 3) * sa_s
    a_mean = _conv_op_2d(sa_w[0, 1], Ho, Wo, 3) * sa_s
    sa_bias = (float(np.asarray(p["sa_bn_b"])[0])
               + sa_s * float(np.asarray(p["sa_b"])[0]))

    w_fuse = _tap_weights(p["fuse_w"])                      # (9, 32, 16)

    def row(a):
        return np.asarray(a, np.float32).reshape(1, -1)

    ops = dict(
        g_head=g_head,
        w_head=_tap_weights(p["head_w"]),
        s_head=row(p["head_bn_s"]), b_head=row(p["head_bn_b"]),
        ca_w1=row(p["ca_w1"]), ca_b1=row(p["ca_b1"]),
        ca_w2=row(p["ca_w2"]), ca_b2=row(p["ca_b2"]),
        a_max=a_max, a_mean=a_mean,
        sa_bias=np.full((1, 1), sa_bias, np.float32),
        w_l0=np.asarray(p["l0_w"], np.float32)[:, :, 0, 0].T,
        s_l0=row(p["l0_bn_s"]), b_l0=row(p["l0_bn_b"]),
        s_mat=s_mat, neg_mask=neg_mask,
        w_l1=_tap_weights(p["l1_w"]),
        s_l1=row(p["l1_bn_s"]), b_l1=row(p["l1_bn_b"]),
        f_mat=f_mat,
        w_fuse_l=w_fuse[:, :16, :], w_fuse_r=w_fuse[:, 16:, :],
        s_fuse=row(p["fuse_bn_s"]), b_fuse=row(p["fuse_bn_b"]),
    )
    return {k: jnp.asarray(v) for k, v in ops.items()}


# ---------------------------------------------------------------------------
# Pure-JAX reference (for correctness check only)
# ---------------------------------------------------------------------------

def _conv_nhwc(x, w_oihw, stride, pad):
    return jax.lax.conv_general_dilated(
        x, jnp.transpose(w_oihw, (2, 3, 1, 0)),
        window_strides=(stride, stride),
        padding=[(pad, pad), (pad, pad)],
        dimension_numbers=("NHWC", "HWIO", "NHWC"))


def _ref_forward(x_nchw, p):
    x = jnp.transpose(x_nchw, (0, 2, 3, 1))
    feat = _conv_nhwc(x, p["head_w"], 2, 1) * p["head_bn_s"] + p["head_bn_b"]

    avg = jnp.mean(feat, axis=(1, 2))
    mx = jnp.max(feat, axis=(1, 2))

    def mlp(v):
        h = jnp.maximum(v @ p["ca_w1"].T + p["ca_b1"], 0.0)
        return h @ p["ca_w2"].T + p["ca_b2"]

    xc = feat * jax.nn.sigmoid(mlp(avg) + mlp(mx))[:, None, None, :]

    pool = jnp.concatenate([jnp.max(xc, axis=-1, keepdims=True),
                            jnp.mean(xc, axis=-1, keepdims=True)], axis=-1)
    s = (_conv_nhwc(pool, p["sa_w"], 1, 3) + p["sa_b"]) * p["sa_bn_s"] + p["sa_bn_b"]
    feat = xc * jax.nn.sigmoid(s)

    l0 = jnp.maximum(_conv_nhwc(feat, p["l0_w"], 1, 0) * p["l0_bn_s"] + p["l0_bn_b"], 0.0)
    l1 = jnp.maximum(_conv_nhwc(l0, p["l1_w"], 2, 1) * p["l1_bn_s"] + p["l1_bn_b"], 0.0)
    right = jax.lax.reduce_window(feat, -jnp.inf, jax.lax.max,
                                  (1, 3, 3, 1), (1, 2, 2, 1),
                                  [(0, 0), (1, 1), (1, 1), (0, 0)])
    z = jnp.concatenate([l1, right], axis=-1)
    y = jnp.maximum(_conv_nhwc(z, p["fuse_w"], 1, 1) * p["fuse_bn_s"] + p["fuse_bn_b"], 0.0)
    return jnp.transpose(y, (0, 3, 1, 2))


# ---------------------------------------------------------------------------

if __name__ == "__main__":
    key = jax.random.PRNGKey(0)
    kx, kp = jax.random.split(key)
    x = jax.random.normal(kx, (2, 5, 16, 16), jnp.float32)   # NCHW, in_c=5

    raw = init_params(kp)
    ops = prepare_operands(raw, in_hw=(16, 16))              # hoisted precompute

    fwd = jax.jit(stem_block_attn)
    out = jax.block_until_ready(fwd(x, ops))
    assert out.shape == (2, 16, 4, 4), out.shape
    assert bool(jnp.all(jnp.isfinite(out)))

    ref = jax.block_until_ready(jax.jit(_ref_forward)(x, raw))
    err = float(jnp.max(jnp.abs(out - ref)))
    assert err < 5e-2, f"kernel vs reference max abs err {err}"

    print("KERNEL_OK")
</pallas_src>

<mosaic_0001>
module attributes {stable_mosaic.version = 11 : i64} {
  func.func @_stem_kernel(%arg0: i32, %arg1: memref<1x256x5xf32, #tpu.memory_space<vmem>>, %arg2: memref<9x64x256xf32, #tpu.memory_space<vmem>>, %arg3: memref<9x5x16xf32, #tpu.memory_space<vmem>>, %arg4: memref<1x16xf32, #tpu.memory_space<vmem>>, %arg5: memref<1x16xf32, #tpu.memory_space<vmem>>, %arg6: memref<1x16xf32, #tpu.memory_space<vmem>>, %arg7: memref<1x1xf32, #tpu.memory_space<vmem>>, %arg8: memref<1x16xf32, #tpu.memory_space<vmem>>, %arg9: memref<1x16xf32, #tpu.memory_space<vmem>>, %arg10: memref<64x64xf32, #tpu.memory_space<vmem>>, %arg11: memref<64x64xf32, #tpu.memory_space<vmem>>, %arg12: memref<1x1xf32, #tpu.memory_space<vmem>>, %arg13: memref<16x8xf32, #tpu.memory_space<vmem>>, %arg14: memref<1x8xf32, #tpu.memory_space<vmem>>, %arg15: memref<1x8xf32, #tpu.memory_space<vmem>>, %arg16: memref<9x16x64xf32, #tpu.memory_space<vmem>>, %arg17: memref<9x16x1xf32, #tpu.memory_space<vmem>>, %arg18: memref<9x8x16xf32, #tpu.memory_space<vmem>>, %arg19: memref<1x16xf32, #tpu.memory_space<vmem>>, %arg20: memref<1x16xf32, #tpu.memory_space<vmem>>, %arg21: memref<9x16x16xf32, #tpu.memory_space<vmem>>, %arg22: memref<9x16x16xf32, #tpu.memory_space<vmem>>, %arg23: memref<9x16x16xf32, #tpu.memory_space<vmem>>, %arg24: memref<1x16xf32, #tpu.memory_space<vmem>>, %arg25: memref<1x16xf32, #tpu.memory_space<vmem>>, %arg26: memref<1x16x16xf32, #tpu.memory_space<vmem>>) attributes {dimension_semantics = [#tpu.dimension_semantics<parallel>], iteration_bounds = array<i64: 2>, scalar_prefetch = 0 : i64, scratch_operands = 0 : i64, tpu.core_type = #tpu.core_type<tc>, window_params = [{transform_indices = @transform_0, window_bounds = array<i64: 1, 256, 5>}, {pipeline_mode = #tpu.pipeline_mode<synchronous>, transform_indices = @transform_1, window_bounds = array<i64: 9, 64, 256>}, {pipeline_mode = #tpu.pipeline_mode<synchronous>, transform_indices = @transform_2, window_bounds = array<i64: 9, 5, 16>}, {pipeline_mode = #tpu.pipeline_mode<synchronous>, transform_indices = @transform_3, window_bounds = array<i64: 1, 16>}, {pipeline_mode = #tpu.pipeline_mode<synchronous>, transform_indices = @transform_4, window_bounds = array<i64: 1, 16>}, {pipeline_mode = #tpu.pipeline_mode<synchronous>, transform_indices = @transform_5, window_bounds = array<i64: 1, 16>}, {pipeline_mode = #tpu.pipeline_mode<synchronous>, transform_indices = @transform_6, window_bounds = array<i64: 1, 1>}, {pipeline_mode = #tpu.pipeline_mode<synchronous>, transform_indices = @transform_7, window_bounds = array<i64: 1, 16>}, {pipeline_mode = #tpu.pipeline_mode<synchronous>, transform_indices = @transform_8, window_bounds = array<i64: 1, 16>}, {pipeline_mode = #tpu.pipeline_mode<synchronous>, transform_indices = @transform_9, window_bounds = array<i64: 64, 64>}, {pipeline_mode = #tpu.pipeline_mode<synchronous>, transform_indices = @transform_10, window_bounds = array<i64: 64, 64>}, {pipeline_mode = #tpu.pipeline_mode<synchronous>, transform_indices = @transform_11, window_bounds = array<i64: 1, 1>}, {pipeline_mode = #tpu.pipeline_mode<synchronous>, transform_indices = @transform_12, window_bounds = array<i64: 16, 8>}, {pipeline_mode = #tpu.pipeline_mode<synchronous>, transform_indices = @transform_13, window_bounds = array<i64: 1, 8>}, {pipeline_mode = #tpu.pipeline_mode<synchronous>, transform_indices = @transform_14, window_bounds = array<i64: 1, 8>}, {pipeline_mode = #tpu.pipeline_mode<synchronous>, transform_indices = @transform_15, window_bounds = array<i64: 9, 16, 64>}, {pipeline_mode = #tpu.pipeline_mode<synchronous>, transform_indices = @transform_16, window_bounds = array<i64: 9, 16, 1>}, {pipeline_mode = #tpu.pipeline_mode<synchronous>, transform_indices = @transform_17, window_bounds = array<i64: 9, 8, 16>}, {pipeline_mode = #tpu.pipeline_mode<synchronous>, transform_indices = @transform_18, window_bounds = array<i64: 1, 16>}, {pipeline_mode = #tpu.pipeline_mode<synchronous>, transform_indices = @transform_19, window_bounds = array<i64: 1, 16>}, {pipeline_mode = #tpu.pipeline_mode<synchronous>, transform_indices = @transform_20, window_bounds = array<i64: 9, 16, 16>}, {pipeline_mode = #tpu.pipeline_mode<synchronous>, transform_indices = @transform_21, window_bounds = array<i64: 9, 16, 16>}, {pipeline_mode = #tpu.pipeline_mode<synchronous>, transform_indices = @transform_22, window_bounds = array<i64: 9, 16, 16>}, {pipeline_mode = #tpu.pipeline_mode<synchronous>, transform_indices = @transform_23, window_bounds = array<i64: 1, 16>}, {pipeline_mode = #tpu.pipeline_mode<synchronous>, transform_indices = @transform_24, window_bounds = array<i64: 1, 16>}, {transform_indices = @transform_25, window_bounds = array<i64: 1, 16, 16>}]} {
    %c0 = arith.constant 0 : index
    %c0_0 = arith.constant 0 : index
    %c0_1 = arith.constant 0 : index
    %0 = vector.load %arg1[%c0, %c0_0, %c0_1] : memref<1x256x5xf32, #tpu.memory_space<vmem>>, vector<1x256x5xf32>
    %1 = vector.shape_cast %0 : vector<1x256x5xf32> to vector<256x5xf32>
    %cst = arith.constant 0.000000e+00 : f32
    %2 = vector.broadcast %cst : f32 to vector<64x16xf32>
    %c0_2 = arith.constant 0 : index
    %c0_3 = arith.constant 0 : index
    %c0_4 = arith.constant 0 : index
    %3 = vector.load %arg2[%c0_2, %c0_3, %c0_4] : memref<9x64x256xf32, #tpu.memory_space<vmem>>, vector<1x64x256xf32>
    %4 = vector.shape_cast %3 : vector<1x64x256xf32> to vector<64x256xf32>
    %cst_5 = arith.constant dense<0.000000e+00> : vector<64x5xf32>
    %5 = tpu.matmul %4, %1, %cst_5 {dimension_numbers = #tpu.dot_dimension_numbers<[1], [0], [0], [1], [0, 0, 1, 1], [], []>} : vector<64x256xf32>, vector<256x5xf32>, vector<64x5xf32> -> vector<64x5xf32>
    %c0_6 = arith.constant 0 : index
    %c0_7 = arith.constant 0 : index
    %c0_8 = arith.constant 0 : index
    %6 = vector.load %arg3[%c0_6, %c0_7, %c0_8] : memref<9x5x16xf32, #tpu.memory_space<vmem>>, vector<1x5x16xf32>
    %7 = vector.shape_cast %6 : vector<1x5x16xf32> to vector<5x16xf32>
    %cst_9 = arith.constant dense<0.000000e+00> : vector<64x16xf32>
    %8 = tpu.matmul %5, %7, %cst_9 {dimension_numbers = #tpu.dot_dimension_numbers<[1], [0], [0], [1], [0, 0, 1, 1], [], []>} : vector<64x5xf32>, vector<5x16xf32>, vector<64x16xf32> -> vector<64x16xf32>
    %9 = arith.addf %2, %8 : vector<64x16xf32>
    %c1 = arith.constant 1 : index
    %c0_10 = arith.constant 0 : index
    %c0_11 = arith.constant 0 : index
    %10 = vector.load %arg2[%c1, %c0_10, %c0_11] : memref<9x64x256xf32, #tpu.memory_space<vmem>>, vector<1x64x256xf32>
    %11 = vector.shape_cast %10 : vector<1x64x256xf32> to vector<64x256xf32>
    %cst_12 = arith.constant dense<0.000000e+00> : vector<64x5xf32>
    %12 = tpu.matmul %11, %1, %cst_12 {dimension_numbers = #tpu.dot_dimension_numbers<[1], [0], [0], [1], [0, 0, 1, 1], [], []>} : vector<64x256xf32>, vector<256x5xf32>, vector<64x5xf32> -> vector<64x5xf32>
    %c1_13 = arith.constant 1 : index
    %c0_14 = arith.constant 0 : index
    %c0_15 = arith.constant 0 : index
    %13 = vector.load %arg3[%c1_13, %c0_14, %c0_15] : memref<9x5x16xf32, #tpu.memory_space<vmem>>, vector<1x5x16xf32>
    %14 = vector.shape_cast %13 : vector<1x5x16xf32> to vector<5x16xf32>
    %cst_16 = arith.constant dense<0.000000e+00> : vector<64x16xf32>
    %15 = tpu.matmul %12, %14, %cst_16 {dimension_numbers = #tpu.dot_dimension_numbers<[1], [0], [0], [1], [0, 0, 1, 1], [], []>} : vector<64x5xf32>, vector<5x16xf32>, vector<64x16xf32> -> vector<64x16xf32>
    %16 = arith.addf %9, %15 : vector<64x16xf32>
    %c2 = arith.constant 2 : index
    %c0_17 = arith.constant 0 : index
    %c0_18 = arith.constant 0 : index
    %17 = vector.load %arg2[%c2, %c0_17, %c0_18] : memref<9x64x256xf32, #tpu.memory_space<vmem>>, vector<1x64x256xf32>
    %18 = vector.shape_cast %17 : vector<1x64x256xf32> to vector<64x256xf32>
    %cst_19 = arith.constant dense<0.000000e+00> : vector<64x5xf32>
    %19 = tpu.matmul %18, %1, %cst_19 {dimension_numbers = #tpu.dot_dimension_numbers<[1], [0], [0], [1], [0, 0, 1, 1], [], []>} : vector<64x256xf32>, vector<256x5xf32>, vector<64x5xf32> -> vector<64x5xf32>
    %c2_20 = arith.constant 2 : index
    %c0_21 = arith.constant 0 : index
    %c0_22 = arith.constant 0 : index
    %20 = vector.load %arg3[%c2_20, %c0_21, %c0_22] : memref<9x5x16xf32, #tpu.memory_space<vmem>>, vector<1x5x16xf32>
    %21 = vector.shape_cast %20 : vector<1x5x16xf32> to vector<5x16xf32>
    %cst_23 = arith.constant dense<0.000000e+00> : vector<64x16xf32>
    %22 = tpu.matmul %19, %21, %cst_23 {dimension_numbers = #tpu.dot_dimension_numbers<[1], [0], [0], [1], [0, 0, 1, 1], [], []>} : vector<64x5xf32>, vector<5x16xf32>, vector<64x16xf32> -> vector<64x16xf32>
    %23 = arith.addf %16, %22 : vector<64x16xf32>
    %c3 = arith.constant 3 : index
    %c0_24 = arith.constant 0 : index
    %c0_25 = arith.constant 0 : index
    %24 = vector.load %arg2[%c3, %c0_24, %c0_25] : memref<9x64x256xf32, #tpu.memory_space<vmem>>, vector<1x64x256xf32>
    %25 = vector.shape_cast %24 : vector<1x64x256xf32> to vector<64x256xf32>
    %cst_26 = arith.constant dense<0.000000e+00> : vector<64x5xf32>
    %26 = tpu.matmul %25, %1, %cst_26 {dimension_numbers = #tpu.dot_dimension_numbers<[1], [0], [0], [1], [0, 0, 1, 1], [], []>} : vector<64x256xf32>, vector<256x5xf32>, vector<64x5xf32> -> vector<64x5xf32>
    %c3_27 = arith.constant 3 : index
    %c0_28 = arith.constant 0 : index
    %c0_29 = arith.constant 0 : index
    %27 = vector.load %arg3[%c3_27, %c0_28, %c0_29] : memref<9x5x16xf32, #tpu.memory_space<vmem>>, vector<1x5x16xf32>
    %28 = vector.shape_cast %27 : vector<1x5x16xf32> to vector<5x16xf32>
    %cst_30 = arith.constant dense<0.000000e+00> : vector<64x16xf32>
    %29 = tpu.matmul %26, %28, %cst_30 {dimension_numbers = #tpu.dot_dimension_numbers<[1], [0], [0], [1], [0, 0, 1, 1], [], []>} : vector<64x5xf32>, vector<5x16xf32>, vector<64x16xf32> -> vector<64x16xf32>
    %30 = arith.addf %23, %29 : vector<64x16xf32>
    %c4 = arith.constant 4 : index
    %c0_31 = arith.constant 0 : index
    %c0_32 = arith.constant 0 : index
    %31 = vector.load %arg2[%c4, %c0_31, %c0_32] : memref<9x64x256xf32, #tpu.memory_space<vmem>>, vector<1x64x256xf32>
    %32 = vector.shape_cast %31 : vector<1x64x256xf32> to vector<64x256xf32>
    %cst_33 = arith.constant dense<0.000000e+00> : vector<64x5xf32>
    %33 = tpu.matmul %32, %1, %cst_33 {dimension_numbers = #tpu.dot_dimension_numbers<[1], [0], [0], [1], [0, 0, 1, 1], [], []>} : vector<64x256xf32>, vector<256x5xf32>, vector<64x5xf32> -> vector<64x5xf32>
    %c4_34 = arith.constant 4 : index
    %c0_35 = arith.constant 0 : index
    %c0_36 = arith.constant 0 : index
    %34 = vector.load %arg3[%c4_34, %c0_35, %c0_36] : memref<9x5x16xf32, #tpu.memory_space<vmem>>, vector<1x5x16xf32>
    %35 = vector.shape_cast %34 : vector<1x5x16xf32> to vector<5x16xf32>
    %cst_37 = arith.constant dense<0.000000e+00> : vector<64x16xf32>
    %36 = tpu.matmul %33, %35, %cst_37 {dimension_numbers = #tpu.dot_dimension_numbers<[1], [0], [0], [1], [0, 0, 1, 1], [], []>} : vector<64x5xf32>, vector<5x16xf32>, vector<64x16xf32> -> vector<64x16xf32>
    %37 = arith.addf %30, %36 : vector<64x16xf32>
    %c5 = arith.constant 5 : index
    %c0_38 = arith.constant 0 : index
    %c0_39 = arith.constant 0 : index
    %38 = vector.load %arg2[%c5, %c0_38, %c0_39] : memref<9x64x256xf32, #tpu.memory_space<vmem>>, vector<1x64x256xf32>
    %39 = vector.shape_cast %38 : vector<1x64x256xf32> to vector<64x256xf32>
    %cst_40 = arith.constant dense<0.000000e+00> : vector<64x5xf32>
    %40 = tpu.matmul %39, %1, %cst_40 {dimension_numbers = #tpu.dot_dimension_numbers<[1], [0], [0], [1], [0, 0, 1, 1], [], []>} : vector<64x256xf32>, vector<256x5xf32>, vector<64x5xf32> -> vector<64x5xf32>
    %c5_41 = arith.constant 5 : index
    %c0_42 = arith.constant 0 : index
    %c0_43 = arith.constant 0 : index
    %41 = vector.load %arg3[%c5_41, %c0_42, %c0_43] : memref<9x5x16xf32, #tpu.memory_space<vmem>>, vector<1x5x16xf32>
    %42 = vector.shape_cast %41 : vector<1x5x16xf32> to vector<5x16xf32>
    %cst_44 = arith.constant dense<0.000000e+00> : vector<64x16xf32>
    %43 = tpu.matmul %40, %42, %cst_44 {dimension_numbers = #tpu.dot_dimension_numbers<[1], [0], [0], [1], [0, 0, 1, 1], [], []>} : vector<64x5xf32>, vector<5x16xf32>, vector<64x16xf32> -> vector<64x16xf32>
    %44 = arith.addf %37, %43 : vector<64x16xf32>
    %c6 = arith.constant 6 : index
    %c0_45 = arith.constant 0 : index
    %c0_46 = arith.constant 0 : index
    %45 = vector.load %arg2[%c6, %c0_45, %c0_46] : memref<9x64x256xf32, #tpu.memory_space<vmem>>, vector<1x64x256xf32>
    %46 = vector.shape_cast %45 : vector<1x64x256xf32> to vector<64x256xf32>
    %cst_47 = arith.constant dense<0.000000e+00> : vector<64x5xf32>
    %47 = tpu.matmul %46, %1, %cst_47 {dimension_numbers = #tpu.dot_dimension_numbers<[1], [0], [0], [1], [0, 0, 1, 1], [], []>} : vector<64x256xf32>, vector<256x5xf32>, vector<64x5xf32> -> vector<64x5xf32>
    %c6_48 = arith.constant 6 : index
    %c0_49 = arith.constant 0 : index
    %c0_50 = arith.constant 0 : index
    %48 = vector.load %arg3[%c6_48, %c0_49, %c0_50] : memref<9x5x16xf32, #tpu.memory_space<vmem>>, vector<1x5x16xf32>
    %49 = vector.shape_cast %48 : vector<1x5x16xf32> to vector<5x16xf32>
    %cst_51 = arith.constant dense<0.000000e+00> : vector<64x16xf32>
    %50 = tpu.matmul %47, %49, %cst_51 {dimension_numbers = #tpu.dot_dimension_numbers<[1], [0], [0], [1], [0, 0, 1, 1], [], []>} : vector<64x5xf32>, vector<5x16xf32>, vector<64x16xf32> -> vector<64x16xf32>
    %51 = arith.addf %44, %50 : vector<64x16xf32>
    %c7 = arith.constant 7 : index
    %c0_52 = arith.constant 0 : index
    %c0_53 = arith.constant 0 : index
    %52 = vector.load %arg2[%c7, %c0_52, %c0_53] : memref<9x64x256xf32, #tpu.memory_space<vmem>>, vector<1x64x256xf32>
    %53 = vector.shape_cast %52 : vector<1x64x256xf32> to vector<64x256xf32>
    %cst_54 = arith.constant dense<0.000000e+00> : vector<64x5xf32>
    %54 = tpu.matmul %53, %1, %cst_54 {dimension_numbers = #tpu.dot_dimension_numbers<[1], [0], [0], [1], [0, 0, 1, 1], [], []>} : vector<64x256xf32>, vector<256x5xf32>, vector<64x5xf32> -> vector<64x5xf32>
    %c7_55 = arith.constant 7 : index
    %c0_56 = arith.constant 0 : index
    %c0_57 = arith.constant 0 : index
    %55 = vector.load %arg3[%c7_55, %c0_56, %c0_57] : memref<9x5x16xf32, #tpu.memory_space<vmem>>, vector<1x5x16xf32>
    %56 = vector.shape_cast %55 : vector<1x5x16xf32> to vector<5x16xf32>
    %cst_58 = arith.constant dense<0.000000e+00> : vector<64x16xf32>
    %57 = tpu.matmul %54, %56, %cst_58 {dimension_numbers = #tpu.dot_dimension_numbers<[1], [0], [0], [1], [0, 0, 1, 1], [], []>} : vector<64x5xf32>, vector<5x16xf32>, vector<64x16xf32> -> vector<64x16xf32>
    %58 = arith.addf %51, %57 : vector<64x16xf32>
    %c8 = arith.constant 8 : index
    %c0_59 = arith.constant 0 : index
    %c0_60 = arith.constant 0 : index
    %59 = vector.load %arg2[%c8, %c0_59, %c0_60] : memref<9x64x256xf32, #tpu.memory_space<vmem>>, vector<1x64x256xf32>
    %60 = vector.shape_cast %59 : vector<1x64x256xf32> to vector<64x256xf32>
    %cst_61 = arith.constant dense<0.000000e+00> : vector<64x5xf32>
    %61 = tpu.matmul %60, %1, %cst_61 {dimension_numbers = #tpu.dot_dimension_numbers<[1], [0], [0], [1], [0, 0, 1, 1], [], []>} : vector<64x256xf32>, vector<256x5xf32>, vector<64x5xf32> -> vector<64x5xf32>
    %c8_62 = arith.constant 8 : index
    %c0_63 = arith.constant 0 : index
    %c0_64 = arith.constant 0 : index
    %62 = vector.load %arg3[%c8_62, %c0_63, %c0_64] : memref<9x5x16xf32, #tpu.memory_space<vmem>>, vector<1x5x16xf32>
    %63 = vector.shape_cast %62 : vector<1x5x16xf32> to vector<5x16xf32>
    %cst_65 = arith.constant dense<0.000000e+00> : vector<64x16xf32>
    %64 = tpu.matmul %61, %63, %cst_65 {dimension_numbers = #tpu.dot_dimension_numbers<[1], [0], [0], [1], [0, 0, 1, 1], [], []>} : vector<64x5xf32>, vector<5x16xf32>, vector<64x16xf32> -> vector<64x16xf32>
    %65 = arith.addf %58, %64 : vector<64x16xf32>
    %c0_66 = arith.constant 0 : index
    %c0_67 = arith.constant 0 : index
    %66 = vector.load %arg4[%c0_66, %c0_67] : memref<1x16xf32, #tpu.memory_space<vmem>>, vector<1x16xf32>
    %67 = vector.broadcast %66 : vector<1x16xf32> to vector<64x16xf32>
    %68 = arith.mulf %65, %67 : vector<64x16xf32>
    %c0_68 = arith.constant 0 : index
    %c0_69 = arith.constant 0 : index
    %69 = vector.load %arg5[%c0_68, %c0_69] : memref<1x16xf32, #tpu.memory_space<vmem>>, vector<1x16xf32>
    %70 = vector.broadcast %69 : vector<1x16xf32> to vector<64x16xf32>
    %71 = arith.addf %68, %70 : vector<64x16xf32>
    %cst_70 = arith.constant dense<0.000000e+00> : vector<16xf32>
    %72 = vector.multi_reduction <add>, %71, %cst_70 [0] : vector<64x16xf32> to vector<16xf32>
    %73 = vector.shape_cast %72 : vector<16xf32> to vector<1x16xf32>
    %cst_71 = arith.constant 6.400000e+01 : f32
    %74 = vector.broadcast %cst_71 : f32 to vector<1x16xf32>
    %75 = arith.divf %73, %74 : vector<1x16xf32>
    %cst_72 = arith.constant dense<0xFF800000> : vector<16xf32>
    %76 = vector.multi_reduction <maximumf>, %71, %cst_72 [0] : vector<64x16xf32> to vector<16xf32>
    %77 = vector.shape_cast %76 : vector<16xf32> to vector<1x16xf32>
    %c0_73 = arith.constant 0 : index
    %c0_74 = arith.constant 0 : index
    %78 = vector.load %arg6[%c0_73, %c0_74] : memref<1x16xf32, #tpu.memory_space<vmem>>, vector<1x16xf32>
    %79 = arith.mulf %75, %78 : vector<1x16xf32>
    %cst_75 = arith.constant dense<0.000000e+00> : vector<1xf32>
    %80 = vector.multi_reduction <add>, %79, %cst_75 [1] : vector<1x16xf32> to vector<1xf32>
    %81 = vector.shape_cast %80 : vector<1xf32> to vector<1x1xf32>
    %c0_76 = arith.constant 0 : index
    %c0_77 = arith.constant 0 : index
    %82 = vector.load %arg7[%c0_76, %c0_77] : memref<1x1xf32, #tpu.memory_space<vmem>>, vector<1x1xf32>
    %83 = arith.addf %81, %82 : vector<1x1xf32>
    %cst_78 = arith.constant 0.000000e+00 : f32
    %84 = vector.broadcast %cst_78 : f32 to vector<1x1xf32>
    %85 = arith.maximumf %83, %84 : vector<1x1xf32>
    %c0_79 = arith.constant 0 : index
    %c0_80 = arith.constant 0 : index
    %86 = vector.load %arg8[%c0_79, %c0_80] : memref<1x16xf32, #tpu.memory_space<vmem>>, vector<1x16xf32>
    %87 = vector.broadcast %85 : vector<1x1xf32> to vector<1x16xf32>
    %88 = arith.mulf %87, %86 : vector<1x16xf32>
    %c0_81 = arith.constant 0 : index
    %c0_82 = arith.constant 0 : index
    %89 = vector.load %arg9[%c0_81, %c0_82] : memref<1x16xf32, #tpu.memory_space<vmem>>, vector<1x16xf32>
    %90 = arith.addf %88, %89 : vector<1x16xf32>
    %c0_83 = arith.constant 0 : index
    %c0_84 = arith.constant 0 : index
    %91 = vector.load %arg6[%c0_83, %c0_84] : memref<1x16xf32, #tpu.memory_space<vmem>>, vector<1x16xf32>
    %92 = arith.mulf %77, %91 : vector<1x16xf32>
    %cst_85 = arith.constant dense<0.000000e+00> : vector<1xf32>
    %93 = vector.multi_reduction <add>, %92, %cst_85 [1] : vector<1x16xf32> to vector<1xf32>
    %94 = vector.shape_cast %93 : vector<1xf32> to vector<1x1xf32>
    %c0_86 = arith.constant 0 : index
    %c0_87 = arith.constant 0 : index
    %95 = vector.load %arg7[%c0_86, %c0_87] : memref<1x1xf32, #tpu.memory_space<vmem>>, vector<1x1xf32>
    %96 = arith.addf %94, %95 : vector<1x1xf32>
    %cst_88 = arith.constant 0.000000e+00 : f32
    %97 = vector.broadcast %cst_88 : f32 to vector<1x1xf32>
    %98 = arith.maximumf %96, %97 : vector<1x1xf32>
    %c0_89 = arith.constant 0 : index
    %c0_90 = arith.constant 0 : index
    %99 = vector.load %arg8[%c0_89, %c0_90] : memref<1x16xf32, #tpu.memory_space<vmem>>, vector<1x16xf32>
    %100 = vector.broadcast %98 : vector<1x1xf32> to vector<1x16xf32>
    %101 = arith.mulf %100, %99 : vector<1x16xf32>
    %c0_91 = arith.constant 0 : index
    %c0_92 = arith.constant 0 : index
    %102 = vector.load %arg9[%c0_91, %c0_92] : memref<1x16xf32, #tpu.memory_space<vmem>>, vector<1x16xf32>
    %103 = arith.addf %101, %102 : vector<1x16xf32>
    %104 = arith.addf %90, %103 : vector<1x16xf32>
    %cst_93 = arith.constant 0.000000e+00 : f32
    %105 = vector.broadcast %cst_93 : f32 to vector<1x16xf32>
    %106 = arith.subf %105, %104 : vector<1x16xf32>
    %107 = math.exp %106 : vector<1x16xf32>
    %cst_94 = arith.constant 1.000000e+00 : f32
    %108 = vector.broadcast %cst_94 : f32 to vector<1x16xf32>
    %109 = arith.addf %108, %107 : vector<1x16xf32>
    %cst_95 = arith.constant 1.000000e+00 : f32
    %110 = vector.broadcast %cst_95 : f32 to vector<1x16xf32>
    %111 = arith.divf %110, %109 : vector<1x16xf32>
    %112 = vector.broadcast %111 : vector<1x16xf32> to vector<64x16xf32>
    %113 = arith.mulf %71, %112 : vector<64x16xf32>
    %cst_96 = arith.constant dense<0xFF800000> : vector<64xf32>
    %114 = vector.multi_reduction <maximumf>, %113, %cst_96 [1] : vector<64x16xf32> to vector<64xf32>
    %115 = vector.shape_cast %114 : vector<64xf32> to vector<64x1xf32>
    %cst_97 = arith.constant dense<0.000000e+00> : vector<64xf32>
    %116 = vector.multi_reduction <add>, %113, %cst_97 [1] : vector<64x16xf32> to vector<64xf32>
    %117 = vector.shape_cast %116 : vector<64xf32> to vector<64x1xf32>
    %cst_98 = arith.constant 1.600000e+01 : f32
    %118 = vector.broadcast %cst_98 : f32 to vector<64x1xf32>
    %119 = arith.divf %117, %118 : vector<64x1xf32>
    %c0_99 = arith.constant 0 : index
    %c0_100 = arith.constant 0 : index
    %120 = vector.load %arg10[%c0_99, %c0_100] : memref<64x64xf32, #tpu.memory_space<vmem>>, vector<64x64xf32>
    %cst_101 = arith.constant dense<0.000000e+00> : vector<64x1xf32>
    %121 = tpu.matmul %120, %115, %cst_101 {dimension_numbers = #tpu.dot_dimension_numbers<[1], [0], [0], [1], [0, 0, 1, 1], [], []>} : vector<64x64xf32>, vector<64x1xf32>, vector<64x1xf32> -> vector<64x1xf32>
    %c0_102 = arith.constant 0 : index
    %c0_103 = arith.constant 0 : index
    %122 = vector.load %arg11[%c0_102, %c0_103] : memref<64x64xf32, #tpu.memory_space<vmem>>, vector<64x64xf32>
    %cst_104 = arith.constant dense<0.000000e+00> : vector<64x1xf32>
    %123 = tpu.matmul %122, %119, %cst_104 {dimension_numbers = #tpu.dot_dimension_numbers<[1], [0], [0], [1], [0, 0, 1, 1], [], []>} : vector<64x64xf32>, vector<64x1xf32>, vector<64x1xf32> -> vector<64x1xf32>
    %124 = arith.addf %121, %123 : vector<64x1xf32>
    %c0_105 = arith.constant 0 : index
    %c0_106 = arith.constant 0 : index
    %125 = vector.load %arg12[%c0_105, %c0_106] : memref<1x1xf32, #tpu.memory_space<vmem>>, vector<1x1xf32>
    %126 = vector.broadcast %125 : vector<1x1xf32> to vector<64x1xf32>
    %127 = arith.addf %124, %126 : vector<64x1xf32>
    %cst_107 = arith.constant 0.000000e+00 : f32
    %128 = vector.broadcast %cst_107 : f32 to vector<64x1xf32>
    %129 = arith.subf %128, %127 : vector<64x1xf32>
    %130 = math.exp %129 : vector<64x1xf32>
    %cst_108 = arith.constant 1.000000e+00 : f32
    %131 = vector.broadcast %cst_108 : f32 to vector<64x1xf32>
    %132 = arith.addf %131, %130 : vector<64x1xf32>
    %cst_109 = arith.constant 1.000000e+00 : f32
    %133 = vector.broadcast %cst_109 : f32 to vector<64x1xf32>
    %134 = arith.divf %133, %132 : vector<64x1xf32>
    %135 = vector.broadcast %134 : vector<64x1xf32> to vector<64x16xf32>
    %136 = arith.mulf %113, %135 : vector<64x16xf32>
    %c0_110 = arith.constant 0 : index
    %c0_111 = arith.constant 0 : index
    %137 = vector.load %arg13[%c0_110, %c0_111] : memref<16x8xf32, #tpu.memory_space<vmem>>, vector<16x8xf32>
    %cst_112 = arith.constant dense<0.000000e+00> : vector<64x8xf32>
    %138 = tpu.matmul %136, %137, %cst_112 {dimension_numbers = #tpu.dot_dimension_numbers<[1], [0], [0], [1], [0, 0, 1, 1], [], []>} : vector<64x16xf32>, vector<16x8xf32>, vector<64x8xf32> -> vector<64x8xf32>
    %c0_113 = arith.constant 0 : index
    %c0_114 = arith.constant 0 : index
    %139 = vector.load %arg14[%c0_113, %c0_114] : memref<1x8xf32, #tpu.memory_space<vmem>>, vector<1x8xf32>
    %140 = vector.broadcast %139 : vector<1x8xf32> to vector<64x8xf32>
    %141 = arith.mulf %138, %140 : vector<64x8xf32>
    %c0_115 = arith.constant 0 : index
    %c0_116 = arith.constant 0 : index
    %142 = vector.load %arg15[%c0_115, %c0_116] : memref<1x8xf32, #tpu.memory_space<vmem>>, vector<1x8xf32>
    %143 = vector.broadcast %142 : vector<1x8xf32> to vector<64x8xf32>
    %144 = arith.addf %141, %143 : vector<64x8xf32>
    %cst_117 = arith.constant 0.000000e+00 : f32
    %145 = vector.broadcast %cst_117 : f32 to vector<64x8xf32>
    %146 = arith.maximumf %144, %145 : vector<64x8xf32>
    %cst_118 = arith.constant 0.000000e+00 : f32
    %147 = vector.broadcast %cst_118 : f32 to vector<16x16xf32>
    %c0_119 = arith.constant 0 : index
    %c0_120 = arith.constant 0 : index
    %c0_121 = arith.constant 0 : index
    %148 = vector.load %arg16[%c0_119, %c0_120, %c0_121] : memref<9x16x64xf32, #tpu.memory_space<vmem>>, vector<1x16x64xf32>
    %149 = vector.shape_cast %148 : vector<1x16x64xf32> to vector<16x64xf32>
    %cst_122 = arith.constant dense<0.000000e+00> : vector<16x8xf32>
    %150 = tpu.matmul %149, %146, %cst_122 {dimension_numbers = #tpu.dot_dimension_numbers<[1], [0], [0], [1], [0, 0, 1, 1], [], []>} : vector<16x64xf32>, vector<64x8xf32>, vector<16x8xf32> -> vector<16x8xf32>
    %c0_123 = arith.constant 0 : index
    %c0_124 = arith.constant 0 : index
    %c0_125 = arith.constant 0 : index
    %151 = vector.load %arg18[%c0_123, %c0_124, %c0_125] : memref<9x8x16xf32, #tpu.memory_space<vmem>>, vector<1x8x16xf32>
    %152 = vector.shape_cast %151 : vector<1x8x16xf32> to vector<8x16xf32>
    %cst_126 = arith.constant dense<0.000000e+00> : vector<16x16xf32>
    %153 = tpu.matmul %150, %152, %cst_126 {dimension_numbers = #tpu.dot_dimension_numbers<[1], [0], [0], [1], [0, 0, 1, 1], [], []>} : vector<16x8xf32>, vector<8x16xf32>, vector<16x16xf32> -> vector<16x16xf32>
    %154 = arith.addf %147, %153 : vector<16x16xf32>
    %c1_127 = arith.constant 1 : index
    %c0_128 = arith.constant 0 : index
    %c0_129 = arith.constant 0 : index
    %155 = vector.load %arg16[%c1_127, %c0_128, %c0_129] : memref<9x16x64xf32, #tpu.memory_space<vmem>>, vector<1x16x64xf32>
    %156 = vector.shape_cast %155 : vector<1x16x64xf32> to vector<16x64xf32>
    %cst_130 = arith.constant dense<0.000000e+00> : vector<16x8xf32>
    %157 = tpu.matmul %156, %146, %cst_130 {dimension_numbers = #tpu.dot_dimension_numbers<[1], [0], [0], [1], [0, 0, 1, 1], [], []>} : vector<16x64xf32>, vector<64x8xf32>, vector<16x8xf32> -> vector<16x8xf32>
    %c1_131 = arith.constant 1 : index
    %c0_132 = arith.constant 0 : index
    %c0_133 = arith.constant 0 : index
    %158 = vector.load %arg18[%c1_131, %c0_132, %c0_133] : memref<9x8x16xf32, #tpu.memory_space<vmem>>, vector<1x8x16xf32>
    %159 = vector.shape_cast %158 : vector<1x8x16xf32> to vector<8x16xf32>
    %cst_134 = arith.constant dense<0.000000e+00> : vector<16x16xf32>
    %160 = tpu.matmul %157, %159, %cst_134 {dimension_numbers = #tpu.dot_dimension_numbers<[1], [0], [0], [1], [0, 0, 1, 1], [], []>} : vector<16x8xf32>, vector<8x16xf32>, vector<16x16xf32> -> vector<16x16xf32>
    %161 = arith.addf %154, %160 : vector<16x16xf32>
    %c2_135 = arith.constant 2 : index
    %c0_136 = arith.constant 0 : index
    %c0_137 = arith.constant 0 : index
    %162 = vector.load %arg16[%c2_135, %c0_136, %c0_137] : memref<9x16x64xf32, #tpu.memory_space<vmem>>, vector<1x16x64xf32>
    %163 = vector.shape_cast %162 : vector<1x16x64xf32> to vector<16x64xf32>
    %cst_138 = arith.constant dense<0.000000e+00> : vector<16x8xf32>
    %164 = tpu.matmul %163, %146, %cst_138 {dimension_numbers = #tpu.dot_dimension_numbers<[1], [0], [0], [1], [0, 0, 1, 1], [], []>} : vector<16x64xf32>, vector<64x8xf32>, vector<16x8xf32> -> vector<16x8xf32>
    %c2_139 = arith.constant 2 : index
    %c0_140 = arith.constant 0 : index
    %c0_141 = arith.constant 0 : index
    %165 = vector.load %arg18[%c2_139, %c0_140, %c0_141] : memref<9x8x16xf32, #tpu.memory_space<vmem>>, vector<1x8x16xf32>
    %166 = vector.shape_cast %165 : vector<1x8x16xf32> to vector<8x16xf32>
    %cst_142 = arith.constant dense<0.000000e+00> : vector<16x16xf32>
    %167 = tpu.matmul %164, %166, %cst_142 {dimension_numbers = #tpu.dot_dimension_numbers<[1], [0], [0], [1], [0, 0, 1, 1], [], []>} : vector<16x8xf32>, vector<8x16xf32>, vector<16x16xf32> -> vector<16x16xf32>
    %168 = arith.addf %161, %167 : vector<16x16xf32>
    %c3_143 = arith.constant 3 : index
    %c0_144 = arith.constant 0 : index
    %c0_145 = arith.constant 0 : index
    %169 = vector.load %arg16[%c3_143, %c0_144, %c0_145] : memref<9x16x64xf32, #tpu.memory_space<vmem>>, vector<1x16x64xf32>
    %170 = vector.shape_cast %169 : vector<1x16x64xf32> to vector<16x64xf32>
    %cst_146 = arith.constant dense<0.000000e+00> : vector<16x8xf32>
    %171 = tpu.matmul %170, %146, %cst_146 {dimension_numbers = #tpu.dot_dimension_numbers<[1], [0], [0], [1], [0, 0, 1, 1], [], []>} : vector<16x64xf32>, vector<64x8xf32>, vector<16x8xf32> -> vector<16x8xf32>
    %c3_147 = arith.constant 3 : index
    %c0_148 = arith.constant 0 : index
    %c0_149 = arith.constant 0 : index
    %172 = vector.load %arg18[%c3_147, %c0_148, %c0_149] : memref<9x8x16xf32, #tpu.memory_space<vmem>>, vector<1x8x16xf32>
    %173 = vector.shape_cast %172 : vector<1x8x16xf32> to vector<8x16xf32>
    %cst_150 = arith.constant dense<0.000000e+00> : vector<16x16xf32>
    %174 = tpu.matmul %171, %173, %cst_150 {dimension_numbers = #tpu.dot_dimension_numbers<[1], [0], [0], [1], [0, 0, 1, 1], [], []>} : vector<16x8xf32>, vector<8x16xf32>, vector<16x16xf32> -> vector<16x16xf32>
    %175 = arith.addf %168, %174 : vector<16x16xf32>
    %c4_151 = arith.constant 4 : index
    %c0_152 = arith.constant 0 : index
    %c0_153 = arith.constant 0 : index
    %176 = vector.load %arg16[%c4_151, %c0_152, %c0_153] : memref<9x16x64xf32, #tpu.memory_space<vmem>>, vector<1x16x64xf32>
    %177 = vector.shape_cast %176 : vector<1x16x64xf32> to vector<16x64xf32>
    %cst_154 = arith.constant dense<0.000000e+00> : vector<16x8xf32>
    %178 = tpu.matmul %177, %146, %cst_154 {dimension_numbers = #tpu.dot_dimension_numbers<[1], [0], [0], [1], [0, 0, 1, 1], [], []>} : vector<16x64xf32>, vector<64x8xf32>, vector<16x8xf32> -> vector<16x8xf32>
    %c4_155 = arith.constant 4 : index
    %c0_156 = arith.constant 0 : index
    %c0_157 = arith.constant 0 : index
    %179 = vector.load %arg18[%c4_155, %c0_156, %c0_157] : memref<9x8x16xf32, #tpu.memory_space<vmem>>, vector<1x8x16xf32>
    %180 = vector.shape_cast %179 : vector<1x8x16xf32> to vector<8x16xf32>
    %cst_158 = arith.constant dense<0.000000e+00> : vector<16x16xf32>
    %181 = tpu.matmul %178, %180, %cst_158 {dimension_numbers = #tpu.dot_dimension_numbers<[1], [0], [0], [1], [0, 0, 1, 1], [], []>} : vector<16x8xf32>, vector<8x16xf32>, vector<16x16xf32> -> vector<16x16xf32>
    %182 = arith.addf %175, %181 : vector<16x16xf32>
    %c5_159 = arith.constant 5 : index
    %c0_160 = arith.constant 0 : index
    %c0_161 = arith.constant 0 : index
    %183 = vector.load %arg16[%c5_159, %c0_160, %c0_161] : memref<9x16x64xf32, #tpu.memory_space<vmem>>, vector<1x16x64xf32>
    %184 = vector.shape_cast %183 : vector<1x16x64xf32> to vector<16x64xf32>
    %cst_162 = arith.constant dense<0.000000e+00> : vector<16x8xf32>
    %185 = tpu.matmul %184, %146, %cst_162 {dimension_numbers = #tpu.dot_dimension_numbers<[1], [0], [0], [1], [0, 0, 1, 1], [], []>} : vector<16x64xf32>, vector<64x8xf32>, vector<16x8xf32> -> vector<16x8xf32>
    %c5_163 = arith.constant 5 : index
    %c0_164 = arith.constant 0 : index
    %c0_165 = arith.constant 0 : index
    %186 = vector.load %arg18[%c5_163, %c0_164, %c0_165] : memref<9x8x16xf32, #tpu.memory_space<vmem>>, vector<1x8x16xf32>
    %187 = vector.shape_cast %186 : vector<1x8x16xf32> to vector<8x16xf32>
    %cst_166 = arith.constant dense<0.000000e+00> : vector<16x16xf32>
    %188 = tpu.matmul %185, %187, %cst_166 {dimension_numbers = #tpu.dot_dimension_numbers<[1], [0], [0], [1], [0, 0, 1, 1], [], []>} : vector<16x8xf32>, vector<8x16xf32>, vector<16x16xf32> -> vector<16x16xf32>
    %189 = arith.addf %182, %188 : vector<16x16xf32>
    %c6_167 = arith.constant 6 : index
    %c0_168 = arith.constant 0 : index
    %c0_169 = arith.constant 0 : index
    %190 = vector.load %arg16[%c6_167, %c0_168, %c0_169] : memref<9x16x64xf32, #tpu.memory_space<vmem>>, vector<1x16x64xf32>
    %191 = vector.shape_cast %190 : vector<1x16x64xf32> to vector<16x64xf32>
    %cst_170 = arith.constant dense<0.000000e+00> : vector<16x8xf32>
    %192 = tpu.matmul %191, %146, %cst_170 {dimension_numbers = #tpu.dot_dimension_numbers<[1], [0], [0], [1], [0, 0, 1, 1], [], []>} : vector<16x64xf32>, vector<64x8xf32>, vector<16x8xf32> -> vector<16x8xf32>
    %c6_171 = arith.constant 6 : index
    %c0_172 = arith.constant 0 : index
    %c0_173 = arith.constant 0 : index
    %193 = vector.load %arg18[%c6_171, %c0_172, %c0_173] : memref<9x8x16xf32, #tpu.memory_space<vmem>>, vector<1x8x16xf32>
    %194 = vector.shape_cast %193 : vector<1x8x16xf32> to vector<8x16xf32>
    %cst_174 = arith.constant dense<0.000000e+00> : vector<16x16xf32>
    %195 = tpu.matmul %192, %194, %cst_174 {dimension_numbers = #tpu.dot_dimension_numbers<[1], [0], [0], [1], [0, 0, 1, 1], [], []>} : vector<16x8xf32>, vector<8x16xf32>, vector<16x16xf32> -> vector<16x16xf32>
    %196 = arith.addf %189, %195 : vector<16x16xf32>
    %c7_175 = arith.constant 7 : index
    %c0_176 = arith.constant 0 : index
    %c0_177 = arith.constant 0 : index
    %197 = vector.load %arg16[%c7_175, %c0_176, %c0_177] : memref<9x16x64xf32, #tpu.memory_space<vmem>>, vector<1x16x64xf32>
    %198 = vector.shape_cast %197 : vector<1x16x64xf32> to vector<16x64xf32>
    %cst_178 = arith.constant dense<0.000000e+00> : vector<16x8xf32>
    %199 = tpu.matmul %198, %146, %cst_178 {dimension_numbers = #tpu.dot_dimension_numbers<[1], [0], [0], [1], [0, 0, 1, 1], [], []>} : vector<16x64xf32>, vector<64x8xf32>, vector<16x8xf32> -> vector<16x8xf32>
    %c7_179 = arith.constant 7 : index
    %c0_180 = arith.constant 0 : index
    %c0_181 = arith.constant 0 : index
    %200 = vector.load %arg18[%c7_179, %c0_180, %c0_181] : memref<9x8x16xf32, #tpu.memory_space<vmem>>, vector<1x8x16xf32>
    %201 = vector.shape_cast %200 : vector<1x8x16xf32> to vector<8x16xf32>
    %cst_182 = arith.constant dense<0.000000e+00> : vector<16x16xf32>
    %202 = tpu.matmul %199, %201, %cst_182 {dimension_numbers = #tpu.dot_dimension_numbers<[1], [0], [0], [1], [0, 0, 1, 1], [], []>} : vector<16x8xf32>, vector<8x16xf32>, vector<16x16xf32> -> vector<16x16xf32>
    %203 = arith.addf %196, %202 : vector<16x16xf32>
    %c8_183 = arith.constant 8 : index
    %c0_184 = arith.constant 0 : index
    %c0_185 = arith.constant 0 : index
    %204 = vector.load %arg16[%c8_183, %c0_184, %c0_185] : memref<9x16x64xf32, #tpu.memory_space<vmem>>, vector<1x16x64xf32>
    %205 = vector.shape_cast %204 : vector<1x16x64xf32> to vector<16x64xf32>
    %cst_186 = arith.constant dense<0.000000e+00> : vector<16x8xf32>
    %206 = tpu.matmul %205, %146, %cst_186 {dimension_numbers = #tpu.dot_dimension_numbers<[1], [0], [0], [1], [0, 0, 1, 1], [], []>} : vector<16x64xf32>, vector<64x8xf32>, vector<16x8xf32> -> vector<16x8xf32>
    %c8_187 = arith.constant 8 : index
    %c0_188 = arith.constant 0 : index
    %c0_189 = arith.constant 0 : index
    %207 = vector.load %arg18[%c8_187, %c0_188, %c0_189] : memref<9x8x16xf32, #tpu.memory_space<vmem>>, vector<1x8x16xf32>
    %208 = vector.shape_cast %207 : vector<1x8x16xf32> to vector<8x16xf32>
    %cst_190 = arith.constant dense<0.000000e+00> : vector<16x16xf32>
    %209 = tpu.matmul %206, %208, %cst_190 {dimension_numbers = #tpu.dot_dimension_numbers<[1], [0], [0], [1], [0, 0, 1, 1], [], []>} : vector<16x8xf32>, vector<8x16xf32>, vector<16x16xf32> -> vector<16x16xf32>
    %210 = arith.addf %203, %209 : vector<16x16xf32>
    %c0_191 = arith.constant 0 : index
    %c0_192 = arith.constant 0 : index
    %211 = vector.load %arg19[%c0_191, %c0_192] : memref<1x16xf32, #tpu.memory_space<vmem>>, vector<1x16xf32>
    %212 = vector.broadcast %211 : vector<1x16xf32> to vector<16x16xf32>
    %213 = arith.mulf %210, %212 : vector<16x16xf32>
    %c0_193 = arith.constant 0 : index
    %c0_194 = arith.constant 0 : index
    %214 = vector.load %arg20[%c0_193, %c0_194] : memref<1x16xf32, #tpu.memory_space<vmem>>, vector<1x16xf32>
    %215 = vector.broadcast %214 : vector<1x16xf32> to vector<16x16xf32>
    %216 = arith.addf %213, %215 : vector<16x16xf32>
    %cst_195 = arith.constant 0.000000e+00 : f32
    %217 = vector.broadcast %cst_195 : f32 to vector<16x16xf32>
    %218 = arith.maximumf %216, %217 : vector<16x16xf32>
    %c0_196 = arith.constant 0 : index
    %c0_197 = arith.constant 0 : index
    %c0_198 = arith.constant 0 : index
    %219 = vector.load %arg16[%c0_196, %c0_197, %c0_198] : memref<9x16x64xf32, #tpu.memory_space<vmem>>, vector<1x16x64xf32>
    %220 = vector.shape_cast %219 : vector<1x16x64xf32> to vector<16x64xf32>
    %cst_199 = arith.constant dense<0.000000e+00> : vector<16x16xf32>
    %221 = tpu.matmul %220, %136, %cst_199 {dimension_numbers = #tpu.dot_dimension_numbers<[1], [0], [0], [1], [0, 0, 1, 1], [], []>} : vector<16x64xf32>, vector<64x16xf32>, vector<16x16xf32> -> vector<16x16xf32>
    %c0_200 = arith.constant 0 : index
    %c0_201 = arith.constant 0 : index
    %c0_202 = arith.constant 0 : index
    %222 = vector.load %arg17[%c0_200, %c0_201, %c0_202] : memref<9x16x1xf32, #tpu.memory_space<vmem>>, vector<1x16x1xf32>
    %223 = vector.shape_cast %222 : vector<1x16x1xf32> to vector<16x1xf32>
    %224 = vector.broadcast %223 : vector<16x1xf32> to vector<16x16xf32>
    %225 = arith.addf %221, %224 : vector<16x16xf32>
    %c1_203 = arith.constant 1 : index
    %c0_204 = arith.constant 0 : index
    %c0_205 = arith.constant 0 : index
    %226 = vector.load %arg16[%c1_203, %c0_204, %c0_205] : memref<9x16x64xf32, #tpu.memory_space<vmem>>, vector<1x16x64xf32>
    %227 = vector.shape_cast %226 : vector<1x16x64xf32> to vector<16x64xf32>
    %cst_206 = arith.constant dense<0.000000e+00> : vector<16x16xf32>
    %228 = tpu.matmul %227, %136, %cst_206 {dimension_numbers = #tpu.dot_dimension_numbers<[1], [0], [0], [1], [0, 0, 1, 1], [], []>} : vector<16x64xf32>, vector<64x16xf32>, vector<16x16xf32> -> vector<16x16xf32>
    %c1_207 = arith.constant 1 : index
    %c0_208 = arith.constant 0 : index
    %c0_209 = arith.constant 0 : index
    %229 = vector.load %arg17[%c1_207, %c0_208, %c0_209] : memref<9x16x1xf32, #tpu.memory_space<vmem>>, vector<1x16x1xf32>
    %230 = vector.shape_cast %229 : vector<1x16x1xf32> to vector<16x1xf32>
    %231 = vector.broadcast %230 : vector<16x1xf32> to vector<16x16xf32>
    %232 = arith.addf %228, %231 : vector<16x16xf32>
    %233 = arith.maximumf %225, %232 : vector<16x16xf32>
    %c2_210 = arith.constant 2 : index
    %c0_211 = arith.constant 0 : index
    %c0_212 = arith.constant 0 : index
    %234 = vector.load %arg16[%c2_210, %c0_211, %c0_212] : memref<9x16x64xf32, #tpu.memory_space<vmem>>, vector<1x16x64xf32>
    %235 = vector.shape_cast %234 : vector<1x16x64xf32> to vector<16x64xf32>
    %cst_213 = arith.constant dense<0.000000e+00> : vector<16x16xf32>
    %236 = tpu.matmul %235, %136, %cst_213 {dimension_numbers = #tpu.dot_dimension_numbers<[1], [0], [0], [1], [0, 0, 1, 1], [], []>} : vector<16x64xf32>, vector<64x16xf32>, vector<16x16xf32> -> vector<16x16xf32>
    %c2_214 = arith.constant 2 : index
    %c0_215 = arith.constant 0 : index
    %c0_216 = arith.constant 0 : index
    %237 = vector.load %arg17[%c2_214, %c0_215, %c0_216] : memref<9x16x1xf32, #tpu.memory_space<vmem>>, vector<1x16x1xf32>
    %238 = vector.shape_cast %237 : vector<1x16x1xf32> to vector<16x1xf32>
    %239 = vector.broadcast %238 : vector<16x1xf32> to vector<16x16xf32>
    %240 = arith.addf %236, %239 : vector<16x16xf32>
    %241 = arith.maximumf %233, %240 : vector<16x16xf32>
    %c3_217 = arith.constant 3 : index
    %c0_218 = arith.constant 0 : index
    %c0_219 = arith.constant 0 : index
    %242 = vector.load %arg16[%c3_217, %c0_218, %c0_219] : memref<9x16x64xf32, #tpu.memory_space<vmem>>, vector<1x16x64xf32>
    %243 = vector.shape_cast %242 : vector<1x16x64xf32> to vector<16x64xf32>
    %cst_220 = arith.constant dense<0.000000e+00> : vector<16x16xf32>
    %244 = tpu.matmul %243, %136, %cst_220 {dimension_numbers = #tpu.dot_dimension_numbers<[1], [0], [0], [1], [0, 0, 1, 1], [], []>} : vector<16x64xf32>, vector<64x16xf32>, vector<16x16xf32> -> vector<16x16xf32>
    %c3_221 = arith.constant 3 : index
    %c0_222 = arith.constant 0 : index
    %c0_223 = arith.constant 0 : index
    %245 = vector.load %arg17[%c3_221, %c0_222, %c0_223] : memref<9x16x1xf32, #tpu.memory_space<vmem>>, vector<1x16x1xf32>
    %246 = vector.shape_cast %245 : vector<1x16x1xf32> to vector<16x1xf32>
    %247 = vector.broadcast %246 : vector<16x1xf32> to vector<16x16xf32>
    %248 = arith.addf %244, %247 : vector<16x16xf32>
    %249 = arith.maximumf %241, %248 : vector<16x16xf32>
    %c4_224 = arith.constant 4 : index
    %c0_225 = arith.constant 0 : index
    %c0_226 = arith.constant 0 : index
    %250 = vector.load %arg16[%c4_224, %c0_225, %c0_226] : memref<9x16x64xf32, #tpu.memory_space<vmem>>, vector<1x16x64xf32>
    %251 = vector.shape_cast %250 : vector<1x16x64xf32> to vector<16x64xf32>
    %cst_227 = arith.constant dense<0.000000e+00> : vector<16x16xf32>
    %252 = tpu.matmul %251, %136, %cst_227 {dimension_numbers = #tpu.dot_dimension_numbers<[1], [0], [0], [1], [0, 0, 1, 1], [], []>} : vector<16x64xf32>, vector<64x16xf32>, vector<16x16xf32> -> vector<16x16xf32>
    %c4_228 = arith.constant 4 : index
    %c0_229 = arith.constant 0 : index
    %c0_230 = arith.constant 0 : index
    %253 = vector.load %arg17[%c4_228, %c0_229, %c0_230] : memref<9x16x1xf32, #tpu.memory_space<vmem>>, vector<1x16x1xf32>
    %254 = vector.shape_cast %253 : vector<1x16x1xf32> to vector<16x1xf32>
    %255 = vector.broadcast %254 : vector<16x1xf32> to vector<16x16xf32>
    %256 = arith.addf %252, %255 : vector<16x16xf32>
    %257 = arith.maximumf %249, %256 : vector<16x16xf32>
    %c5_231 = arith.constant 5 : index
    %c0_232 = arith.constant 0 : index
    %c0_233 = arith.constant 0 : index
    %258 = vector.load %arg16[%c5_231, %c0_232, %c0_233] : memref<9x16x64xf32, #tpu.memory_space<vmem>>, vector<1x16x64xf32>
    %259 = vector.shape_cast %258 : vector<1x16x64xf32> to vector<16x64xf32>
    %cst_234 = arith.constant dense<0.000000e+00> : vector<16x16xf32>
    %260 = tpu.matmul %259, %136, %cst_234 {dimension_numbers = #tpu.dot_dimension_numbers<[1], [0], [0], [1], [0, 0, 1, 1], [], []>} : vector<16x64xf32>, vector<64x16xf32>, vector<16x16xf32> -> vector<16x16xf32>
    %c5_235 = arith.constant 5 : index
    %c0_236 = arith.constant 0 : index
    %c0_237 = arith.constant 0 : index
    %261 = vector.load %arg17[%c5_235, %c0_236, %c0_237] : memref<9x16x1xf32, #tpu.memory_space<vmem>>, vector<1x16x1xf32>
    %262 = vector.shape_cast %261 : vector<1x16x1xf32> to vector<16x1xf32>
    %263 = vector.broadcast %262 : vector<16x1xf32> to vector<16x16xf32>
    %264 = arith.addf %260, %263 : vector<16x16xf32>
    %265 = arith.maximumf %257, %264 : vector<16x16xf32>
    %c6_238 = arith.constant 6 : index
    %c0_239 = arith.constant 0 : index
    %c0_240 = arith.constant 0 : index
    %266 = vector.load %arg16[%c6_238, %c0_239, %c0_240] : memref<9x16x64xf32, #tpu.memory_space<vmem>>, vector<1x16x64xf32>
    %267 = vector.shape_cast %266 : vector<1x16x64xf32> to vector<16x64xf32>
    %cst_241 = arith.constant dense<0.000000e+00> : vector<16x16xf32>
    %268 = tpu.matmul %267, %136, %cst_241 {dimension_numbers = #tpu.dot_dimension_numbers<[1], [0], [0], [1], [0, 0, 1, 1], [], []>} : vector<16x64xf32>, vector<64x16xf32>, vector<16x16xf32> -> vector<16x16xf32>
    %c6_242 = arith.constant 6 : index
    %c0_243 = arith.constant 0 : index
    %c0_244 = arith.constant 0 : index
    %269 = vector.load %arg17[%c6_242, %c0_243, %c0_244] : memref<9x16x1xf32, #tpu.memory_space<vmem>>, vector<1x16x1xf32>
    %270 = vector.shape_cast %269 : vector<1x16x1xf32> to vector<16x1xf32>
    %271 = vector.broadcast %270 : vector<16x1xf32> to vector<16x16xf32>
    %272 = arith.addf %268, %271 : vector<16x16xf32>
    %273 = arith.maximumf %265, %272 : vector<16x16xf32>
    %c7_245 = arith.constant 7 : index
    %c0_246 = arith.constant 0 : index
    %c0_247 = arith.constant 0 : index
    %274 = vector.load %arg16[%c7_245, %c0_246, %c0_247] : memref<9x16x64xf32, #tpu.memory_space<vmem>>, vector<1x16x64xf32>
    %275 = vector.shape_cast %274 : vector<1x16x64xf32> to vector<16x64xf32>
    %cst_248 = arith.constant dense<0.000000e+00> : vector<16x16xf32>
    %276 = tpu.matmul %275, %136, %cst_248 {dimension_numbers = #tpu.dot_dimension_numbers<[1], [0], [0], [1], [0, 0, 1, 1], [], []>} : vector<16x64xf32>, vector<64x16xf32>, vector<16x16xf32> -> vector<16x16xf32>
    %c7_249 = arith.constant 7 : index
    %c0_250 = arith.constant 0 : index
    %c0_251 = arith.constant 0 : index
    %277 = vector.load %arg17[%c7_249, %c0_250, %c0_251] : memref<9x16x1xf32, #tpu.memory_space<vmem>>, vector<1x16x1xf32>
    %278 = vector.shape_cast %277 : vector<1x16x1xf32> to vector<16x1xf32>
    %279 = vector.broadcast %278 : vector<16x1xf32> to vector<16x16xf32>
    %280 = arith.addf %276, %279 : vector<16x16xf32>
    %281 = arith.maximumf %273, %280 : vector<16x16xf32>
    %c8_252 = arith.constant 8 : index
    %c0_253 = arith.constant 0 : index
    %c0_254 = arith.constant 0 : index
    %282 = vector.load %arg16[%c8_252, %c0_253, %c0_254] : memref<9x16x64xf32, #tpu.memory_space<vmem>>, vector<1x16x64xf32>
    %283 = vector.shape_cast %282 : vector<1x16x64xf32> to vector<16x64xf32>
    %cst_255 = arith.constant dense<0.000000e+00> : vector<16x16xf32>
    %284 = tpu.matmul %283, %136, %cst_255 {dimension_numbers = #tpu.dot_dimension_numbers<[1], [0], [0], [1], [0, 0, 1, 1], [], []>} : vector<16x64xf32>, vector<64x16xf32>, vector<16x16xf32> -> vector<16x16xf32>
    %c8_256 = arith.constant 8 : index
    %c0_257 = arith.constant 0 : index
    %c0_258 = arith.constant 0 : index
    %285 = vector.load %arg17[%c8_256, %c0_257, %c0_258] : memref<9x16x1xf32, #tpu.memory_space<vmem>>, vector<1x16x1xf32>
    %286 = vector.shape_cast %285 : vector<1x16x1xf32> to vector<16x1xf32>
    %287 = vector.broadcast %286 : vector<16x1xf32> to vector<16x16xf32>
    %288 = arith.addf %284, %287 : vector<16x16xf32>
    %289 = arith.maximumf %281, %288 : vector<16x16xf32>
    %cst_259 = arith.constant 0.000000e+00 : f32
    %290 = vector.broadcast %cst_259 : f32 to vector<16x16xf32>
    %c0_260 = arith.constant 0 : index
    %c0_261 = arith.constant 0 : index
    %c0_262 = arith.constant 0 : index
    %291 = vector.load %arg21[%c0_260, %c0_261, %c0_262] : memref<9x16x16xf32, #tpu.memory_space<vmem>>, vector<1x16x16xf32>
    %292 = vector.shape_cast %291 : vector<1x16x16xf32> to vector<16x16xf32>
    %cst_263 = arith.constant dense<0.000000e+00> : vector<16x16xf32>
    %293 = tpu.matmul %292, %218, %cst_263 {dimension_numbers = #tpu.dot_dimension_numbers<[1], [0], [0], [1], [0, 0, 1, 1], [], []>} : vector<16x16xf32>, vector<16x16xf32>, vector<16x16xf32> -> vector<16x16xf32>
    %c0_264 = arith.constant 0 : index
    %c0_265 = arith.constant 0 : index
    %c0_266 = arith.constant 0 : index
    %294 = vector.load %arg22[%c0_264, %c0_265, %c0_266] : memref<9x16x16xf32, #tpu.memory_space<vmem>>, vector<1x16x16xf32>
    %295 = vector.shape_cast %294 : vector<1x16x16xf32> to vector<16x16xf32>
    %cst_267 = arith.constant dense<0.000000e+00> : vector<16x16xf32>
    %296 = tpu.matmul %293, %295, %cst_267 {dimension_numbers = #tpu.dot_dimension_numbers<[1], [0], [0], [1], [0, 0, 1, 1], [], []>} : vector<16x16xf32>, vector<16x16xf32>, vector<16x16xf32> -> vector<16x16xf32>
    %297 = arith.addf %290, %296 : vector<16x16xf32>
    %c0_268 = arith.constant 0 : index
    %c0_269 = arith.constant 0 : index
    %c0_270 = arith.constant 0 : index
    %298 = vector.load %arg21[%c0_268, %c0_269, %c0_270] : memref<9x16x16xf32, #tpu.memory_space<vmem>>, vector<1x16x16xf32>
    %299 = vector.shape_cast %298 : vector<1x16x16xf32> to vector<16x16xf32>
    %cst_271 = arith.constant dense<0.000000e+00> : vector<16x16xf32>
    %300 = tpu.matmul %299, %289, %cst_271 {dimension_numbers = #tpu.dot_dimension_numbers<[1], [0], [0], [1], [0, 0, 1, 1], [], []>} : vector<16x16xf32>, vector<16x16xf32>, vector<16x16xf32> -> vector<16x16xf32>
    %c0_272 = arith.constant 0 : index
    %c0_273 = arith.constant 0 : index
    %c0_274 = arith.constant 0 : index
    %301 = vector.load %arg23[%c0_272, %c0_273, %c0_274] : memref<9x16x16xf32, #tpu.memory_space<vmem>>, vector<1x16x16xf32>
    %302 = vector.shape_cast %301 : vector<1x16x16xf32> to vector<16x16xf32>
    %cst_275 = arith.constant dense<0.000000e+00> : vector<16x16xf32>
    %303 = tpu.matmul %300, %302, %cst_275 {dimension_numbers = #tpu.dot_dimension_numbers<[1], [0], [0], [1], [0, 0, 1, 1], [], []>} : vector<16x16xf32>, vector<16x16xf32>, vector<16x16xf32> -> vector<16x16xf32>
    %304 = arith.addf %297, %303 : vector<16x16xf32>
    %c1_276 = arith.constant 1 : index
    %c0_277 = arith.constant 0 : index
    %c0_278 = arith.constant 0 : index
    %305 = vector.load %arg21[%c1_276, %c0_277, %c0_278] : memref<9x16x16xf32, #tpu.memory_space<vmem>>, vector<1x16x16xf32>
    %306 = vector.shape_cast %305 : vector<1x16x16xf32> to vector<16x16xf32>
    %cst_279 = arith.constant dense<0.000000e+00> : vector<16x16xf32>
    %307 = tpu.matmul %306, %218, %cst_279 {dimension_numbers = #tpu.dot_dimension_numbers<[1], [0], [0], [1], [0, 0, 1, 1], [], []>} : vector<16x16xf32>, vector<16x16xf32>, vector<16x16xf32> -> vector<16x16xf32>
    %c1_280 = arith.constant 1 : index
    %c0_281 = arith.constant 0 : index
    %c0_282 = arith.constant 0 : index
    %308 = vector.load %arg22[%c1_280, %c0_281, %c0_282] : memref<9x16x16xf32, #tpu.memory_space<vmem>>, vector<1x16x16xf32>
    %309 = vector.shape_cast %308 : vector<1x16x16xf32> to vector<16x16xf32>
    %cst_283 = arith.constant dense<0.000000e+00> : vector<16x16xf32>
    %310 = tpu.matmul %307, %309, %cst_283 {dimension_numbers = #tpu.dot_dimension_numbers<[1], [0], [0], [1], [0, 0, 1, 1], [], []>} : vector<16x16xf32>, vector<16x16xf32>, vector<16x16xf32> -> vector<16x16xf32>
    %311 = arith.addf %304, %310 : vector<16x16xf32>
    %c1_284 = arith.constant 1 : index
    %c0_285 = arith.constant 0 : index
    %c0_286 = arith.constant 0 : index
    %312 = vector.load %arg21[%c1_284, %c0_285, %c0_286] : memref<9x16x16xf32, #tpu.memory_space<vmem>>, vector<1x16x16xf32>
    %313 = vector.shape_cast %312 : vector<1x16x16xf32> to vector<16x16xf32>
    %cst_287 = arith.constant dense<0.000000e+00> : vector<16x16xf32>
    %314 = tpu.matmul %313, %289, %cst_287 {dimension_numbers = #tpu.dot_dimension_numbers<[1], [0], [0], [1], [0, 0, 1, 1], [], []>} : vector<16x16xf32>, vector<16x16xf32>, vector<16x16xf32> -> vector<16x16xf32>
    %c1_288 = arith.constant 1 : index
    %c0_289 = arith.constant 0 : index
    %c0_290 = arith.constant 0 : index
    %315 = vector.load %arg23[%c1_288, %c0_289, %c0_290] : memref<9x16x16xf32, #tpu.memory_space<vmem>>, vector<1x16x16xf32>
    %316 = vector.shape_cast %315 : vector<1x16x16xf32> to vector<16x16xf32>
    %cst_291 = arith.constant dense<0.000000e+00> : vector<16x16xf32>
    %317 = tpu.matmul %314, %316, %cst_291 {dimension_numbers = #tpu.dot_dimension_numbers<[1], [0], [0], [1], [0, 0, 1, 1], [], []>} : vector<16x16xf32>, vector<16x16xf32>, vector<16x16xf32> -> vector<16x16xf32>
    %318 = arith.addf %311, %317 : vector<16x16xf32>
    %c2_292 = arith.constant 2 : index
    %c0_293 = arith.constant 0 : index
    %c0_294 = arith.constant 0 : index
    %319 = vector.load %arg21[%c2_292, %c0_293, %c0_294] : memref<9x16x16xf32, #tpu.memory_space<vmem>>, vector<1x16x16xf32>
    %320 = vector.shape_cast %319 : vector<1x16x16xf32> to vector<16x16xf32>
    %cst_295 = arith.constant dense<0.000000e+00> : vector<16x16xf32>
    %321 = tpu.matmul %320, %218, %cst_295 {dimension_numbers = #tpu.dot_dimension_numbers<[1], [0], [0], [1], [0, 0, 1, 1], [], []>} : vector<16x16xf32>, vector<16x16xf32>, vector<16x16xf32> -> vector<16x16xf32>
    %c2_296 = arith.constant 2 : index
    %c0_297 = arith.constant 0 : index
    %c0_298 = arith.constant 0 : index
    %322 = vector.load %arg22[%c2_296, %c0_297, %c0_298] : memref<9x16x16xf32, #tpu.memory_space<vmem>>, vector<1x16x16xf32>
    %323 = vector.shape_cast %322 : vector<1x16x16xf32> to vector<16x16xf32>
    %cst_299 = arith.constant dense<0.000000e+00> : vector<16x16xf32>
    %324 = tpu.matmul %321, %323, %cst_299 {dimension_numbers = #tpu.dot_dimension_numbers<[1], [0], [0], [1], [0, 0, 1, 1], [], []>} : vector<16x16xf32>, vector<16x16xf32>, vector<16x16xf32> -> vector<16x16xf32>
    %325 = arith.addf %318, %324 : vector<16x16xf32>
    %c2_300 = arith.constant 2 : index
    %c0_301 = arith.constant 0 : index
    %c0_302 = arith.constant 0 : index
    %326 = vector.load %arg21[%c2_300, %c0_301, %c0_302] : memref<9x16x16xf32, #tpu.memory_space<vmem>>, vector<1x16x16xf32>
    %327 = vector.shape_cast %326 : vector<1x16x16xf32> to vector<16x16xf32>
    %cst_303 = arith.constant dense<0.000000e+00> : vector<16x16xf32>
    %328 = tpu.matmul %327, %289, %cst_303 {dimension_numbers = #tpu.dot_dimension_numbers<[1], [0], [0], [1], [0, 0, 1, 1], [], []>} : vector<16x16xf32>, vector<16x16xf32>, vector<16x16xf32> -> vector<16x16xf32>
    %c2_304 = arith.constant 2 : index
    %c0_305 = arith.constant 0 : index
    %c0_306 = arith.constant 0 : index
    %329 = vector.load %arg23[%c2_304, %c0_305, %c0_306] : memref<9x16x16xf32, #tpu.memory_space<vmem>>, vector<1x16x16xf32>
    %330 = vector.shape_cast %329 : vector<1x16x16xf32> to vector<16x16xf32>
    %cst_307 = arith.constant dense<0.000000e+00> : vector<16x16xf32>
    %331 = tpu.matmul %328, %330, %cst_307 {dimension_numbers = #tpu.dot_dimension_numbers<[1], [0], [0], [1], [0, 0, 1, 1], [], []>} : vector<16x16xf32>, vector<16x16xf32>, vector<16x16xf32> -> vector<16x16xf32>
    %332 = arith.addf %325, %331 : vector<16x16xf32>
    %c3_308 = arith.constant 3 : index
    %c0_309 = arith.constant 0 : index
    %c0_310 = arith.constant 0 : index
    %333 = vector.load %arg21[%c3_308, %c0_309, %c0_310] : memref<9x16x16xf32, #tpu.memory_space<vmem>>, vector<1x16x16xf32>
    %334 = vector.shape_cast %333 : vector<1x16x16xf32> to vector<16x16xf32>
    %cst_311 = arith.constant dense<0.000000e+00> : vector<16x16xf32>
    %335 = tpu.matmul %334, %218, %cst_311 {dimension_numbers = #tpu.dot_dimension_numbers<[1], [0], [0], [1], [0, 0, 1, 1], [], []>} : vector<16x16xf32>, vector<16x16xf32>, vector<16x16xf32> -> vector<16x16xf32>
    %c3_312 = arith.constant 3 : index
    %c0_313 = arith.constant 0 : index
    %c0_314 = arith.constant 0 : index
    %336 = vector.load %arg22[%c3_312, %c0_313, %c0_314] : memref<9x16x16xf32, #tpu.memory_space<vmem>>, vector<1x16x16xf32>
    %337 = vector.shape_cast %336 : vector<1x16x16xf32> to vector<16x16xf32>
    %cst_315 = arith.constant dense<0.000000e+00> : vector<16x16xf32>
    %338 = tpu.matmul %335, %337, %cst_315 {dimension_numbers = #tpu.dot_dimension_numbers<[1], [0], [0], [1], [0, 0, 1, 1], [], []>} : vector<16x16xf32>, vector<16x16xf32>, vector<16x16xf32> -> vector<16x16xf32>
    %339 = arith.addf %332, %338 : vector<16x16xf32>
    %c3_316 = arith.constant 3 : index
    %c0_317 = arith.constant 0 : index
    %c0_318 = arith.constant 0 : index
    %340 = vector.load %arg21[%c3_316, %c0_317, %c0_318] : memref<9x16x16xf32, #tpu.memory_space<vmem>>, vector<1x16x16xf32>
    %341 = vector.shape_cast %340 : vector<1x16x16xf32> to vector<16x16xf32>
    %cst_319 = arith.constant dense<0.000000e+00> : vector<16x16xf32>
    %342 = tpu.matmul %341, %289, %cst_319 {dimension_numbers = #tpu.dot_dimension_numbers<[1], [0], [0], [1], [0, 0, 1, 1], [], []>} : vector<16x16xf32>, vector<16x16xf32>, vector<16x16xf32> -> vector<16x16xf32>
    %c3_320 = arith.constant 3 : index
    %c0_321 = arith.constant 0 : index
    %c0_322 = arith.constant 0 : index
    %343 = vector.load %arg23[%c3_320, %c0_321, %c0_322] : memref<9x16x16xf32, #tpu.memory_space<vmem>>, vector<1x16x16xf32>
    %344 = vector.shape_cast %343 : vector<1x16x16xf32> to vector<16x16xf32>
    %cst_323 = arith.constant dense<0.000000e+00> : vector<16x16xf32>
    %345 = tpu.matmul %342, %344, %cst_323 {dimension_numbers = #tpu.dot_dimension_numbers<[1], [0], [0], [1], [0, 0, 1, 1], [], []>} : vector<16x16xf32>, vector<16x16xf32>, vector<16x16xf32> -> vector<16x16xf32>
    %346 = arith.addf %339, %345 : vector<16x16xf32>
    %c4_324 = arith.constant 4 : index
    %c0_325 = arith.constant 0 : index
    %c0_326 = arith.constant 0 : index
    %347 = vector.load %arg21[%c4_324, %c0_325, %c0_326] : memref<9x16x16xf32, #tpu.memory_space<vmem>>, vector<1x16x16xf32>
    %348 = vector.shape_cast %347 : vector<1x16x16xf32> to vector<16x16xf32>
    %cst_327 = arith.constant dense<0.000000e+00> : vector<16x16xf32>
    %349 = tpu.matmul %348, %218, %cst_327 {dimension_numbers = #tpu.dot_dimension_numbers<[1], [0], [0], [1], [0, 0, 1, 1], [], []>} : vector<16x16xf32>, vector<16x16xf32>, vector<16x16xf32> -> vector<16x16xf32>
    %c4_328 = arith.constant 4 : index
    %c0_329 = arith.constant 0 : index
    %c0_330 = arith.constant 0 : index
    %350 = vector.load %arg22[%c4_328, %c0_329, %c0_330] : memref<9x16x16xf32, #tpu.memory_space<vmem>>, vector<1x16x16xf32>
    %351 = vector.shape_cast %350 : vector<1x16x16xf32> to vector<16x16xf32>
    %cst_331 = arith.constant dense<0.000000e+00> : vector<16x16xf32>
    %352 = tpu.matmul %349, %351, %cst_331 {dimension_numbers = #tpu.dot_dimension_numbers<[1], [0], [0], [1], [0, 0, 1, 1], [], []>} : vector<16x16xf32>, vector<16x16xf32>, vector<16x16xf32> -> vector<16x16xf32>
    %353 = arith.addf %346, %352 : vector<16x16xf32>
    %c4_332 = arith.constant 4 : index
    %c0_333 = arith.constant 0 : index
    %c0_334 = arith.constant 0 : index
    %354 = vector.load %arg21[%c4_332, %c0_333, %c0_334] : memref<9x16x16xf32, #tpu.memory_space<vmem>>, vector<1x16x16xf32>
    %355 = vector.shape_cast %354 : vector<1x16x16xf32> to vector<16x16xf32>
    %cst_335 = arith.constant dense<0.000000e+00> : vector<16x16xf32>
    %356 = tpu.matmul %355, %289, %cst_335 {dimension_numbers = #tpu.dot_dimension_numbers<[1], [0], [0], [1], [0, 0, 1, 1], [], []>} : vector<16x16xf32>, vector<16x16xf32>, vector<16x16xf32> -> vector<16x16xf32>
    %c4_336 = arith.constant 4 : index
    %c0_337 = arith.constant 0 : index
    %c0_338 = arith.constant 0 : index
    %357 = vector.load %arg23[%c4_336, %c0_337, %c0_338] : memref<9x16x16xf32, #tpu.memory_space<vmem>>, vector<1x16x16xf32>
    %358 = vector.shape_cast %357 : vector<1x16x16xf32> to vector<16x16xf32>
    %cst_339 = arith.constant dense<0.000000e+00> : vector<16x16xf32>
    %359 = tpu.matmul %356, %358, %cst_339 {dimension_numbers = #tpu.dot_dimension_numbers<[1], [0], [0], [1], [0, 0, 1, 1], [], []>} : vector<16x16xf32>, vector<16x16xf32>, vector<16x16xf32> -> vector<16x16xf32>
    %360 = arith.addf %353, %359 : vector<16x16xf32>
    %c5_340 = arith.constant 5 : index
    %c0_341 = arith.constant 0 : index
    %c0_342 = arith.constant 0 : index
    %361 = vector.load %arg21[%c5_340, %c0_341, %c0_342] : memref<9x16x16xf32, #tpu.memory_space<vmem>>, vector<1x16x16xf32>
    %362 = vector.shape_cast %361 : vector<1x16x16xf32> to vector<16x16xf32>
    %cst_343 = arith.constant dense<0.000000e+00> : vector<16x16xf32>
    %363 = tpu.matmul %362, %218, %cst_343 {dimension_numbers = #tpu.dot_dimension_numbers<[1], [0], [0], [1], [0, 0, 1, 1], [], []>} : vector<16x16xf32>, vector<16x16xf32>, vector<16x16xf32> -> vector<16x16xf32>
    %c5_344 = arith.constant 5 : index
    %c0_345 = arith.constant 0 : index
    %c0_346 = arith.constant 0 : index
    %364 = vector.load %arg22[%c5_344, %c0_345, %c0_346] : memref<9x16x16xf32, #tpu.memory_space<vmem>>, vector<1x16x16xf32>
    %365 = vector.shape_cast %364 : vector<1x16x16xf32> to vector<16x16xf32>
    %cst_347 = arith.constant dense<0.000000e+00> : vector<16x16xf32>
    %366 = tpu.matmul %363, %365, %cst_347 {dimension_numbers = #tpu.dot_dimension_numbers<[1], [0], [0], [1], [0, 0, 1, 1], [], []>} : vector<16x16xf32>, vector<16x16xf32>, vector<16x16xf32> -> vector<16x16xf32>
    %367 = arith.addf %360, %366 : vector<16x16xf32>
    %c5_348 = arith.constant 5 : index
    %c0_349 = arith.constant 0 : index
    %c0_350 = arith.constant 0 : index
    %368 = vector.load %arg21[%c5_348, %c0_349, %c0_350] : memref<9x16x16xf32, #tpu.memory_space<vmem>>, vector<1x16x16xf32>
    %369 = vector.shape_cast %368 : vector<1x16x16xf32> to vector<16x16xf32>
    %cst_351 = arith.constant dense<0.000000e+00> : vector<16x16xf32>
    %370 = tpu.matmul %369, %289, %cst_351 {dimension_numbers = #tpu.dot_dimension_numbers<[1], [0], [0], [1], [0, 0, 1, 1], [], []>} : vector<16x16xf32>, vector<16x16xf32>, vector<16x16xf32> -> vector<16x16xf32>
    %c5_352 = arith.constant 5 : index
    %c0_353 = arith.constant 0 : index
    %c0_354 = arith.constant 0 : index
    %371 = vector.load %arg23[%c5_352, %c0_353, %c0_354] : memref<9x16x16xf32, #tpu.memory_space<vmem>>, vector<1x16x16xf32>
    %372 = vector.shape_cast %371 : vector<1x16x16xf32> to vector<16x16xf32>
    %cst_355 = arith.constant dense<0.000000e+00> : vector<16x16xf32>
    %373 = tpu.matmul %370, %372, %cst_355 {dimension_numbers = #tpu.dot_dimension_numbers<[1], [0], [0], [1], [0, 0, 1, 1], [], []>} : vector<16x16xf32>, vector<16x16xf32>, vector<16x16xf32> -> vector<16x16xf32>
    %374 = arith.addf %367, %373 : vector<16x16xf32>
    %c6_356 = arith.constant 6 : index
    %c0_357 = arith.constant 0 : index
    %c0_358 = arith.constant 0 : index
    %375 = vector.load %arg21[%c6_356, %c0_357, %c0_358] : memref<9x16x16xf32, #tpu.memory_space<vmem>>, vector<1x16x16xf32>
    %376 = vector.shape_cast %375 : vector<1x16x16xf32> to vector<16x16xf32>
    %cst_359 = arith.constant dense<0.000000e+00> : vector<16x16xf32>
    %377 = tpu.matmul %376, %218, %cst_359 {dimension_numbers = #tpu.dot_dimension_numbers<[1], [0], [0], [1], [0, 0, 1, 1], [], []>} : vector<16x16xf32>, vector<16x16xf32>, vector<16x16xf32> -> vector<16x16xf32>
    %c6_360 = arith.constant 6 : index
    %c0_361 = arith.constant 0 : index
    %c0_362 = arith.constant 0 : index
    %378 = vector.load %arg22[%c6_360, %c0_361, %c0_362] : memref<9x16x16xf32, #tpu.memory_space<vmem>>, vector<1x16x16xf32>
    %379 = vector.shape_cast %378 : vector<1x16x16xf32> to vector<16x16xf32>
    %cst_363 = arith.constant dense<0.000000e+00> : vector<16x16xf32>
    %380 = tpu.matmul %377, %379, %cst_363 {dimension_numbers = #tpu.dot_dimension_numbers<[1], [0], [0], [1], [0, 0, 1, 1], [], []>} : vector<16x16xf32>, vector<16x16xf32>, vector<16x16xf32> -> vector<16x16xf32>
    %381 = arith.addf %374, %380 : vector<16x16xf32>
    %c6_364 = arith.constant 6 : index
    %c0_365 = arith.constant 0 : index
    %c0_366 = arith.constant 0 : index
    %382 = vector.load %arg21[%c6_364, %c0_365, %c0_366] : memref<9x16x16xf32, #tpu.memory_space<vmem>>, vector<1x16x16xf32>
    %383 = vector.shape_cast %382 : vector<1x16x16xf32> to vector<16x16xf32>
    %cst_367 = arith.constant dense<0.000000e+00> : vector<16x16xf32>
    %384 = tpu.matmul %383, %289, %cst_367 {dimension_numbers = #tpu.dot_dimension_numbers<[1], [0], [0], [1], [0, 0, 1, 1], [], []>} : vector<16x16xf32>, vector<16x16xf32>, vector<16x16xf32> -> vector<16x16xf32>
    %c6_368 = arith.constant 6 : index
    %c0_369 = arith.constant 0 : index
    %c0_370 = arith.constant 0 : index
    %385 = vector.load %arg23[%c6_368, %c0_369, %c0_370] : memref<9x16x16xf32, #tpu.memory_space<vmem>>, vector<1x16x16xf32>
    %386 = vector.shape_cast %385 : vector<1x16x16xf32> to vector<16x16xf32>
    %cst_371 = arith.constant dense<0.000000e+00> : vector<16x16xf32>
    %387 = tpu.matmul %384, %386, %cst_371 {dimension_numbers = #tpu.dot_dimension_numbers<[1], [0], [0], [1], [0, 0, 1, 1], [], []>} : vector<16x16xf32>, vector<16x16xf32>, vector<16x16xf32> -> vector<16x16xf32>
    %388 = arith.addf %381, %387 : vector<16x16xf32>
    %c7_372 = arith.constant 7 : index
    %c0_373 = arith.constant 0 : index
    %c0_374 = arith.constant 0 : index
    %389 = vector.load %arg21[%c7_372, %c0_373, %c0_374] : memref<9x16x16xf32, #tpu.memory_space<vmem>>, vector<1x16x16xf32>
    %390 = vector.shape_cast %389 : vector<1x16x16xf32> to vector<16x16xf32>
    %cst_375 = arith.constant dense<0.000000e+00> : vector<16x16xf32>
    %391 = tpu.matmul %390, %218, %cst_375 {dimension_numbers = #tpu.dot_dimension_numbers<[1], [0], [0], [1], [0, 0, 1, 1], [], []>} : vector<16x16xf32>, vector<16x16xf32>, vector<16x16xf32> -> vector<16x16xf32>
    %c7_376 = arith.constant 7 : index
    %c0_377 = arith.constant 0 : index
    %c0_378 = arith.constant 0 : index
    %392 = vector.load %arg22[%c7_376, %c0_377, %c0_378] : memref<9x16x16xf32, #tpu.memory_space<vmem>>, vector<1x16x16xf32>
    %393 = vector.shape_cast %392 : vector<1x16x16xf32> to vector<16x16xf32>
    %cst_379 = arith.constant dense<0.000000e+00> : vector<16x16xf32>
    %394 = tpu.matmul %391, %393, %cst_379 {dimension_numbers = #tpu.dot_dimension_numbers<[1], [0], [0], [1], [0, 0, 1, 1], [], []>} : vector<16x16xf32>, vector<16x16xf32>, vector<16x16xf32> -> vector<16x16xf32>
    %395 = arith.addf %388, %394 : vector<16x16xf32>
    %c7_380 = arith.constant 7 : index
    %c0_381 = arith.constant 0 : index
    %c0_382 = arith.constant 0 : index
    %396 = vector.load %arg21[%c7_380, %c0_381, %c0_382] : memref<9x16x16xf32, #tpu.memory_space<vmem>>, vector<1x16x16xf32>
    %397 = vector.shape_cast %396 : vector<1x16x16xf32> to vector<16x16xf32>
    %cst_383 = arith.constant dense<0.000000e+00> : vector<16x16xf32>
    %398 = tpu.matmul %397, %289, %cst_383 {dimension_numbers = #tpu.dot_dimension_numbers<[1], [0], [0], [1], [0, 0, 1, 1], [], []>} : vector<16x16xf32>, vector<16x16xf32>, vector<16x16xf32> -> vector<16x16xf32>
    %c7_384 = arith.constant 7 : index
    %c0_385 = arith.constant 0 : index
    %c0_386 = arith.constant 0 : index
    %399 = vector.load %arg23[%c7_384, %c0_385, %c0_386] : memref<9x16x16xf32, #tpu.memory_space<vmem>>, vector<1x16x16xf32>
    %400 = vector.shape_cast %399 : vector<1x16x16xf32> to vector<16x16xf32>
    %cst_387 = arith.constant dense<0.000000e+00> : vector<16x16xf32>
    %401 = tpu.matmul %398, %400, %cst_387 {dimension_numbers = #tpu.dot_dimension_numbers<[1], [0], [0], [1], [0, 0, 1, 1], [], []>} : vector<16x16xf32>, vector<16x16xf32>, vector<16x16xf32> -> vector<16x16xf32>
    %402 = arith.addf %395, %401 : vector<16x16xf32>
    %c8_388 = arith.constant 8 : index
    %c0_389 = arith.constant 0 : index
    %c0_390 = arith.constant 0 : index
    %403 = vector.load %arg21[%c8_388, %c0_389, %c0_390] : memref<9x16x16xf32, #tpu.memory_space<vmem>>, vector<1x16x16xf32>
    %404 = vector.shape_cast %403 : vector<1x16x16xf32> to vector<16x16xf32>
    %cst_391 = arith.constant dense<0.000000e+00> : vector<16x16xf32>
    %405 = tpu.matmul %404, %218, %cst_391 {dimension_numbers = #tpu.dot_dimension_numbers<[1], [0], [0], [1], [0, 0, 1, 1], [], []>} : vector<16x16xf32>, vector<16x16xf32>, vector<16x16xf32> -> vector<16x16xf32>
    %c8_392 = arith.constant 8 : index
    %c0_393 = arith.constant 0 : index
    %c0_394 = arith.constant 0 : index
    %406 = vector.load %arg22[%c8_392, %c0_393, %c0_394] : memref<9x16x16xf32, #tpu.memory_space<vmem>>, vector<1x16x16xf32>
    %407 = vector.shape_cast %406 : vector<1x16x16xf32> to vector<16x16xf32>
    %cst_395 = arith.constant dense<0.000000e+00> : vector<16x16xf32>
    %408 = tpu.matmul %405, %407, %cst_395 {dimension_numbers = #tpu.dot_dimension_numbers<[1], [0], [0], [1], [0, 0, 1, 1], [], []>} : vector<16x16xf32>, vector<16x16xf32>, vector<16x16xf32> -> vector<16x16xf32>
    %409 = arith.addf %402, %408 : vector<16x16xf32>
    %c8_396 = arith.constant 8 : index
    %c0_397 = arith.constant 0 : index
    %c0_398 = arith.constant 0 : index
    %410 = vector.load %arg21[%c8_396, %c0_397, %c0_398] : memref<9x16x16xf32, #tpu.memory_space<vmem>>, vector<1x16x16xf32>
    %411 = vector.shape_cast %410 : vector<1x16x16xf32> to vector<16x16xf32>
    %cst_399 = arith.constant dense<0.000000e+00> : vector<16x16xf32>
    %412 = tpu.matmul %411, %289, %cst_399 {dimension_numbers = #tpu.dot_dimension_numbers<[1], [0], [0], [1], [0, 0, 1, 1], [], []>} : vector<16x16xf32>, vector<16x16xf32>, vector<16x16xf32> -> vector<16x16xf32>
    %c8_400 = arith.constant 8 : index
    %c0_401 = arith.constant 0 : index
    %c0_402 = arith.constant 0 : index
    %413 = vector.load %arg23[%c8_400, %c0_401, %c0_402] : memref<9x16x16xf32, #tpu.memory_space<vmem>>, vector<1x16x16xf32>
    %414 = vector.shape_cast %413 : vector<1x16x16xf32> to vector<16x16xf32>
    %cst_403 = arith.constant dense<0.000000e+00> : vector<16x16xf32>
    %415 = tpu.matmul %412, %414, %cst_403 {dimension_numbers = #tpu.dot_dimension_numbers<[1], [0], [0], [1], [0, 0, 1, 1], [], []>} : vector<16x16xf32>, vector<16x16xf32>, vector<16x16xf32> -> vector<16x16xf32>
    %416 = arith.addf %409, %415 : vector<16x16xf32>
    %c0_404 = arith.constant 0 : index
    %c0_405 = arith.constant 0 : index
    %417 = vector.load %arg24[%c0_404, %c0_405] : memref<1x16xf32, #tpu.memory_space<vmem>>, vector<1x16xf32>
    %418 = vector.broadcast %417 : vector<1x16xf32> to vector<16x16xf32>
    %419 = arith.mulf %416, %418 : vector<16x16xf32>
    %c0_406 = arith.constant 0 : index
    %c0_407 = arith.constant 0 : index
    %420 = vector.load %arg25[%c0_406, %c0_407] : memref<1x16xf32, #tpu.memory_space<vmem>>, vector<1x16xf32>
    %421 = vector.broadcast %420 : vector<1x16xf32> to vector<16x16xf32>
    %422 = arith.addf %419, %421 : vector<16x16xf32>
    %cst_408 = arith.constant 0.000000e+00 : f32
    %423 = vector.broadcast %cst_408 : f32 to vector<16x16xf32>
    %424 = arith.maximumf %422, %423 : vector<16x16xf32>
    %c0_409 = arith.constant 0 : index
    %c0_410 = arith.constant 0 : index
    %c0_411 = arith.constant 0 : index
    %425 = vector.load %arg26[%c0_409, %c0_410, %c0_411] : memref<1x16x16xf32, #tpu.memory_space<vmem>>, vector<1x16x16xf32>
    %426 = vector.shape_cast %425 : vector<1x16x16xf32> to vector<16x16xf32>
    %427 = vector.shape_cast %424 : vector<16x16xf32> to vector<1x16x16xf32>
    tpu.vector_store %arg26[%c0_409, %c0_410, %c0_411], %427 {strides = array<i32>} : memref<1x16x16xf32, #tpu.memory_space<vmem>>, vector<1x16x16xf32>,
    return
  }
  func.func @transform_0(%arg0: i32) -> (i32, i32, i32) {
    %c0_i32 = arith.constant 0 : i32
    %c0_i32_0 = arith.constant 0 : i32
    %c0_i32_1 = arith.constant 0 : i32
    return %arg0, %c0_i32, %c0_i32_0 : i32, i32, i32
  }
  func.func @transform_1(%arg0: i32) -> (i32, i32, i32) {
    %c0_i32 = arith.constant 0 : i32
    %c0_i32_0 = arith.constant 0 : i32
    %c0_i32_1 = arith.constant 0 : i32
    %c0_i32_2 = arith.constant 0 : i32
    return %c0_i32, %c0_i32_0, %c0_i32_1 : i32, i32, i32
  }
  func.func @transform_2(%arg0: i32) -> (i32, i32, i32) {
    %c0_i32 = arith.constant 0 : i32
    %c0_i32_0 = arith.constant 0 : i32
    %c0_i32_1 = arith.constant 0 : i32
    %c0_i32_2 = arith.constant 0 : i32
    return %c0_i32, %c0_i32_0, %c0_i32_1 : i32, i32, i32
  }
  func.func @transform_3(%arg0: i32) -> (i32, i32) {
    %c0_i32 = arith.constant 0 : i32
    %c0_i32_0 = arith.constant 0 : i32
    %c0_i32_1 = arith.constant 0 : i32
    return %c0_i32, %c0_i32_0 : i32, i32
  }
  func.func @transform_4(%arg0: i32) -> (i32, i32) {
    %c0_i32 = arith.constant 0 : i32
    %c0_i32_0 = arith.constant 0 : i32
    %c0_i32_1 = arith.constant 0 : i32
    return %c0_i32, %c0_i32_0 : i32, i32
  }
  func.func @transform_5(%arg0: i32) -> (i32, i32) {
    %c0_i32 = arith.constant 0 : i32
    %c0_i32_0 = arith.constant 0 : i32
    %c0_i32_1 = arith.constant 0 : i32
    return %c0_i32, %c0_i32_0 : i32, i32
  }
  func.func @transform_6(%arg0: i32) -> (i32, i32) {
    %c0_i32 = arith.constant 0 : i32
    %c0_i32_0 = arith.constant 0 : i32
    %c0_i32_1 = arith.constant 0 : i32
    return %c0_i32, %c0_i32_0 : i32, i32
  }
  func.func @transform_7(%arg0: i32) -> (i32, i32) {
    %c0_i32 = arith.constant 0 : i32
    %c0_i32_0 = arith.constant 0 : i32
    %c0_i32_1 = arith.constant 0 : i32
    return %c0_i32, %c0_i32_0 : i32, i32
  }
  func.func @transform_8(%arg0: i32) -> (i32, i32) {
    %c0_i32 = arith.constant 0 : i32
    %c0_i32_0 = arith.constant 0 : i32
    %c0_i32_1 = arith.constant 0 : i32
    return %c0_i32, %c0_i32_0 : i32, i32
  }
  func.func @transform_9(%arg0: i32) -> (i32, i32) {
    %c0_i32 = arith.constant 0 : i32
    %c0_i32_0 = arith.constant 0 : i32
    %c0_i32_1 = arith.constant 0 : i32
    return %c0_i32, %c0_i32_0 : i32, i32
  }
  func.func @transform_10(%arg0: i32) -> (i32, i32) {
    %c0_i32 = arith.constant 0 : i32
    %c0_i32_0 = arith.constant 0 : i32
    %c0_i32_1 = arith.constant 0 : i32
    return %c0_i32, %c0_i32_0 : i32, i32
  }
  func.func @transform_11(%arg0: i32) -> (i32, i32) {
    %c0_i32 = arith.constant 0 : i32
    %c0_i32_0 = arith.constant 0 : i32
    %c0_i32_1 = arith.constant 0 : i32
    return %c0_i32, %c0_i32_0 : i32, i32
  }
  func.func @transform_12(%arg0: i32) -> (i32, i32) {
    %c0_i32 = arith.constant 0 : i32
    %c0_i32_0 = arith.constant 0 : i32
    %c0_i32_1 = arith.constant 0 : i32
    return %c0_i32, %c0_i32_0 : i32, i32
  }
  func.func @transform_13(%arg0: i32) -> (i32, i32) {
    %c0_i32 = arith.constant 0 : i32
    %c0_i32_0 = arith.constant 0 : i32
    %c0_i32_1 = arith.constant 0 : i32
    return %c0_i32, %c0_i32_0 : i32, i32
  }
  func.func @transform_14(%arg0: i32) -> (i32, i32) {
    %c0_i32 = arith.constant 0 : i32
    %c0_i32_0 = arith.constant 0 : i32
    %c0_i32_1 = arith.constant 0 : i32
    return %c0_i32, %c0_i32_0 : i32, i32
  }
  func.func @transform_15(%arg0: i32) -> (i32, i32, i32) {
    %c0_i32 = arith.constant 0 : i32
    %c0_i32_0 = arith.constant 0 : i32
    %c0_i32_1 = arith.constant 0 : i32
    %c0_i32_2 = arith.constant 0 : i32
    return %c0_i32, %c0_i32_0, %c0_i32_1 : i32, i32, i32
  }
  func.func @transform_16(%arg0: i32) -> (i32, i32, i32) {
    %c0_i32 = arith.constant 0 : i32
    %c0_i32_0 = arith.constant 0 : i32
    %c0_i32_1 = arith.constant 0 : i32
    %c0_i32_2 = arith.constant 0 : i32
    return %c0_i32, %c0_i32_0, %c0_i32_1 : i32, i32, i32
  }
  func.func @transform_17(%arg0: i32) -> (i32, i32, i32) {
    %c0_i32 = arith.constant 0 : i32
    %c0_i32_0 = arith.constant 0 : i32
    %c0_i32_1 = arith.constant 0 : i32
    %c0_i32_2 = arith.constant 0 : i32
    return %c0_i32, %c0_i32_0, %c0_i32_1 : i32, i32, i32
  }
  func.func @transform_18(%arg0: i32) -> (i32, i32) {
    %c0_i32 = arith.constant 0 : i32
    %c0_i32_0 = arith.constant 0 : i32
    %c0_i32_1 = arith.constant 0 : i32
    return %c0_i32, %c0_i32_0 : i32, i32
  }
  func.func @transform_19(%arg0: i32) -> (i32, i32) {
    %c0_i32 = arith.constant 0 : i32
    %c0_i32_0 = arith.constant 0 : i32
    %c0_i32_1 = arith.constant 0 : i32
    return %c0_i32, %c0_i32_0 : i32, i32
  }
  func.func @transform_20(%arg0: i32) -> (i32, i32, i32) {
    %c0_i32 = arith.constant 0 : i32
    %c0_i32_0 = arith.constant 0 : i32
    %c0_i32_1 = arith.constant 0 : i32
    %c0_i32_2 = arith.constant 0 : i32
    return %c0_i32, %c0_i32_0, %c0_i32_1 : i32, i32, i32
  }
  func.func @transform_21(%arg0: i32) -> (i32, i32, i32) {
    %c0_i32 = arith.constant 0 : i32
    %c0_i32_0 = arith.constant 0 : i32
    %c0_i32_1 = arith.constant 0 : i32
    %c0_i32_2 = arith.constant 0 : i32
    return %c0_i32, %c0_i32_0, %c0_i32_1 : i32, i32, i32
  }
  func.func @transform_22(%arg0: i32) -> (i32, i32, i32) {
    %c0_i32 = arith.constant 0 : i32
    %c0_i32_0 = arith.constant 0 : i32
    %c0_i32_1 = arith.constant 0 : i32
    %c0_i32_2 = arith.constant 0 : i32
    return %c0_i32, %c0_i32_0, %c0_i32_1 : i32, i32, i32
  }
  func.func @transform_23(%arg0: i32) -> (i32, i32) {
    %c0_i32 = arith.constant 0 : i32
    %c0_i32_0 = arith.constant 0 : i32
    %c0_i32_1 = arith.constant 0 : i32
    return %c0_i32, %c0_i32_0 : i32, i32
  }
  func.func @transform_24(%arg0: i32) -> (i32, i32) {
    %c0_i32 = arith.constant 0 : i32
    %c0_i32_0 = arith.constant 0 : i32
    %c0_i32_1 = arith.constant 0 : i32
    return %c0_i32, %c0_i32_0 : i32, i32
  }
  func.func @transform_25(%arg0: i32) -> (i32, i32, i32) {
    %c0_i32 = arith.constant 0 : i32
    %c0_i32_0 = arith.constant 0 : i32
    %c0_i32_1 = arith.constant 0 : i32
    return %arg0, %c0_i32, %c0_i32_0 : i32, i32, i32
  }
}

</mosaic_0001>

<llo_original>
// kernel: stem_block_attn.1
$region0: #{stem_block_attn.1}
  #allocation0 [shape = 'u32[]', space=smem, size = 0x4, offset = 0x4, fixed_abs, tag = 'smem constant byte address 0x4 - core index']
  #allocation1 [shape = 'u32[72,128]{1,0:T(1,128)}', space=vmem, size = 0x9000, scoped, tag = 'internal scratch']
  #allocation2 [shape = 'f32[1,1]{1,0:T(1,128)S(1)}', space=vmem, size = 0x200, scoped, tag = 'scoped memory for stem_block_attn.1']
  #allocation3 [shape = 'f32[1,1]{1,0:T(1,128)S(1)}', space=vmem, size = 0x200, scoped, tag = 'scoped memory for stem_block_attn.1']
  %s0 = inlined_call_operand.vmem [shape: f32[2,256,5], index: 0, kind: input, shape index: {}]
  %s1 = inlined_call_operand.hbm [shape: f32[9,64,256], index: 1, kind: input, shape index: {}]
  %s2 = inlined_call_operand.vmem [shape: f32[9,5,16], index: 2, kind: input, shape index: {}]
  %s3 = inlined_call_operand.vmem [shape: f32[1,16], index: 3, kind: input, shape index: {}]
  %s4 = inlined_call_operand.vmem [shape: f32[1,16], index: 4, kind: input, shape index: {}]
  %s5 = inlined_call_operand.vmem [shape: f32[1,16], index: 5, kind: input, shape index: {}]
  %s6 = inlined_call_operand.<no memory space> [shape: f32[1,1], index: 6, kind: input, shape index: {}]
  %s7 = inlined_call_operand.vmem [shape: f32[1,16], index: 7, kind: input, shape index: {}]
  %s8 = inlined_call_operand.vmem [shape: f32[1,16], index: 8, kind: input, shape index: {}]
  %s9 = inlined_call_operand.hbm [shape: f32[64,64], index: 9, kind: input, shape index: {}]
  %s10 = inlined_call_operand.hbm [shape: f32[64,64], index: 10, kind: input, shape index: {}]
  %s11 = inlined_call_operand.<no memory space> [shape: f32[1,1], index: 11, kind: input, shape index: {}]
  %s12 = inlined_call_operand.vmem [shape: f32[16,8], index: 12, kind: input, shape index: {}]
  %s13 = inlined_call_operand.vmem [shape: f32[1,8], index: 13, kind: input, shape index: {}]
  %s14 = inlined_call_operand.vmem [shape: f32[1,8], index: 14, kind: input, shape index: {}]
  %s15 = inlined_call_operand.vmem [shape: f32[9,16,64], index: 15, kind: input, shape index: {}]
  %s16 = inlined_call_operand.vmem [shape: f32[9,16,1], index: 16, kind: input, shape index: {}]
  %s17 = inlined_call_operand.hbm [shape: f32[9,8,16], index: 17, kind: input, shape index: {}]
  %s18 = inlined_call_operand.vmem [shape: f32[1,16], index: 18, kind: input, shape index: {}]
  %s19 = inlined_call_operand.vmem [shape: f32[1,16], index: 19, kind: input, shape index: {}]
  %s20 = inlined_call_operand.vmem [shape: f32[9,16,16], index: 20, kind: input, shape index: {}]
  %s21 = inlined_call_operand.vmem [shape: f32[9,16,16], index: 21, kind: input, shape index: {}]
  %s22 = inlined_call_operand.vmem [shape: f32[9,16,16], index: 22, kind: input, shape index: {}]
  %s23 = inlined_call_operand.vmem [shape: f32[1,16], index: 23, kind: input, shape index: {}]
  %s24 = inlined_call_operand.vmem [shape: f32[1,16], index: 24, kind: input, shape index: {}]
  %s25 = inlined_call_operand.hbm [shape: f32[2,16,16], index: 25, kind: output, shape index: {}]
  %s26 = sld [smem:[#allocation0]]
  $region149: #{stem_block_attn.1} parent=0
    _
  %s28 = ssub.s32 1, %s26
  %s29 = scalar_select 0, %s28, %s26
  %v30 = vstv %s6
  %31 = vst [vmem:[#allocation2] sm:$0x1] %v30
  %v32 = vstv %s11
  %33 = vst [vmem:[#allocation3] sm:$0x1] %v32
  $region1: #{stem_block_attn.1} parent=0
    #allocation4 [shape = 'u8[589824]{0}', space=vmem, size = 0x90000, scoped, tag = 'input window, operand 1, single buffered']
    #allocation5 [shape = 's32[2]{0}', space=sflag, size = 0x8, scoped, tag = 'scoped memory for stem_block_attn.1']
    #allocation6 [shape = 's32[2]{0}', space=sflag, size = 0x8, scoped, tag = 'scoped memory for stem_block_attn.1']
    #allocation7 [shape = 'u8[32768]{0}', space=vmem, size = 0x8000, scoped, tag = 'input window, operand 9, single buffered']
    #allocation8 [shape = 's32[1]{0}', space=sflag, size = 0x4, scoped, tag = 'scoped memory for stem_block_attn.1']
    #allocation9 [shape = 'u8[32768]{0}', space=vmem, size = 0x8000, scoped, tag = 'input window, operand 10, single buffered']
    #allocation10 [shape = 'u8[36864]{0}', space=vmem, size = 0x9000, scoped, tag = 'input window, operand 17, single buffered']
    #allocation11 [shape = 's32[1]{0}', space=sflag, size = 0x4, scoped, tag = 'scoped memory for stem_block_attn.1']
    #allocation12 [shape = 'u8[16384]{0}', space=vmem, size = 0x4000, scoped, tag = 'output window, operand 0']
    %34 = vsyncpa [#allocation5], 0
    %35 = vsyncpa [#allocation8], 0
    %36 = vsyncpa [#allocation11], 0
    %37 = vsyncpa [#allocation6], 0
    %s38 = scalar_lea.sflag [#allocation6], 1
    %39 = vsyncpa %s38, 0
    loop: start=0, step=1, limit=4
    $region2: #{stem_block_attn.1} parent=1 // loop_pre_header
      _
    $region3: #{stem_block_attn.1} parent=1 // loop_header
      %s41 = sphi 0, %s45
      %p42 = scmp.ge.s32.totalorder %s41, 4
      %s51 = sphi 0, %s53
      %s54 = sphi 0, %s51
      %s55 = sphi 0, %s54
      %s71 = sphi 0, %s55
      %s75 = sphi 0, %s75
      %s77 = sphi 0, %s75
      %s78 = sphi 0, %s77
      %s92 = sphi 0, %s78
      %s96 = sphi 0, %s96
      %s98 = sphi 0, %s96
      %s99 = sphi 0, %s98
      %s113 = sphi 0, %s99
      %s117 = sphi 0, %s117
      %s119 = sphi 0, %s117
      %s120 = sphi 0, %s119
      %s134 = sphi 0, %s120
      %s138 = sphi 0, %s138
      %s140 = sphi 0, %s138
      %s141 = sphi 0, %s140
      %s155 = sphi 0, %s141
      %s159 = sphi 0, %s159
      %s161 = sphi 0, %s159
      %s162 = sphi 0, %s161
      %s176 = sphi 0, %s162
      %s180 = sphi 0, %s180
      %s182 = sphi 0, %s180
      %s183 = sphi 0, %s182
      %s197 = sphi 0, %s183
      %s201 = sphi 0, %s201
      %s203 = sphi 0, %s201
      %s204 = sphi 0, %s203
      %s218 = sphi 0, %s204
      %s222 = sphi 0, %s222
      %s224 = sphi 0, %s222
      %s225 = sphi 0, %s224
      %s239 = sphi 0, %s225
      %s243 = sphi 0, %s243
      %s245 = sphi 0, %s243
      %s246 = sphi 0, %s245
      %s260 = sphi 0, %s246
      %s264 = sphi 0, %s264
      %s266 = sphi 0, %s264
      %s267 = sphi 0, %s266
      %s281 = sphi 0, %s267
      %s285 = sphi 0, %s285
      %s287 = sphi 0, %s285
      %s288 = sphi 0, %s287
      %s302 = sphi 0, %s288
      %s306 = sphi 0, %s306
      %s308 = sphi 0, %s306
      %s309 = sphi 0, %s308
      %s323 = sphi 0, %s309
      %s327 = sphi 0, %s327
      %s329 = sphi 0, %s327
      %s330 = sphi 0, %s329
      %s344 = sphi 0, %s330
      %s348 = sphi 0, %s348
      %s350 = sphi 0, %s348
      %s351 = sphi 0, %s350
      %s365 = sphi 0, %s351
      %s369 = sphi 0, %s369
      %s371 = sphi 0, %s369
      %s372 = sphi 0, %s371
      %s386 = sphi 0, %s372
      %s390 = sphi 0, %s390
      %s392 = sphi 0, %s390
      %s393 = sphi 0, %s392
      %s407 = sphi 0, %s393
      %s411 = sphi 0, %s411
      %s413 = sphi 0, %s411
      %s414 = sphi 0, %s413
      %s428 = sphi 0, %s414
      %s432 = sphi 0, %s432
      %s434 = sphi 0, %s432
      %s435 = sphi 0, %s434
      %s449 = sphi 0, %s435
      %s453 = sphi 0, %s453
      %s455 = sphi 0, %s453
      %s456 = sphi 0, %s455
      %s470 = sphi 0, %s456
      %s474 = sphi 0, %s474
      %s476 = sphi 0, %s474
      %s477 = sphi 0, %s476
      %s491 = sphi 0, %s477
      %s495 = sphi 0, %s495
      %s497 = sphi 0, %s495
      %s498 = sphi 0, %s497
      %s512 = sphi 0, %s498
      %s516 = sphi 0, %s516
      %s518 = sphi 0, %s516
      %s519 = sphi 0, %s518
      %s533 = sphi 0, %s519
      %s537 = sphi 0, %s537
      %s539 = sphi 0, %s537
      %s540 = sphi 0, %s539
      %s554 = sphi 0, %s540
      %s558 = sphi 0, %s558
      %s560 = sphi 0, %s558
      %s561 = sphi 0, %s560
      %s575 = sphi 0, %s561
      %s581 = sphi 0, %s583
      %s584 = sphi 0, %s581
      %s585 = sphi 0, %s584
      %s601 = sphi 0, %s585
    $region4: #{stem_block_attn.1} parent=1 // loop_header_branch
      %44 = sbr.rel (%p42) target = $region8
    $region5: #{stem_block_attn.1} parent=1 // loop_body
      %s46 = ssub.s32 %s41, 1
      %s47 = ssub.s32 %s41, 2
      %s48 = sadd.s32 %s41, 1
      %s49 = ssub.s32 %s41, %s48
      %p50 = scmp.eq.s32.totalorder %s49, 0
      %s52 = sadd.s32 %s51, 1
      %s53 = scalar_select %p50, %s51, %s52
      %p56 = pneg %p50
      %p57 = scmp.eq.s32.totalorder %s41, 1
      %p58 = por %p56, %p57
      %p59 = scmp.ne.s32.totalorder %s51, %s54
      %p60 = scmp.eq.s32.totalorder %s41, 0
      %p61 = por %p59, %p60
      %p62 = scmp.ne.s32.totalorder %s51, %s54
      %p63 = scmp.eq.s32.totalorder %s46, 1
      %p64 = por %p62, %p63
      %p65 = scmp.ne.s32.totalorder %s54, %s55
      %p66 = scmp.eq.s32.totalorder %s46, 0
      %p67 = por %p65, %p66
      %p68 = scmp.ne.s32.totalorder %s54, %s55
      %p69 = scmp.eq.s32.totalorder %s47, 1
      %p70 = por %p68, %p69
      %p72 = scmp.ne.s32.totalorder %s55, %s71
      %p73 = scmp.eq.s32.totalorder %s47, 0
      %p74 = por %p72, %p73
      %s76 = sadd.s32 %s75, 1
      %p79 = scmp.eq.s32.totalorder %s41, 1
      %p80 = scmp.ne.s32.totalorder %s75, %s77
      %p81 = scmp.eq.s32.totalorder %s41, 0
      %p82 = por %p80, %p81
      %p83 = scmp.ne.s32.totalorder %s75, %s77
      %p84 = scmp.eq.s32.totalorder %s46, 1
      %p85 = por %p83, %p84
      %p86 = scmp.ne.s32.totalorder %s77, %s78
      %p87 = scmp.eq.s32.totalorder %s46, 0
      %p88 = por %p86, %p87
      %p89 = scmp.ne.s32.totalorder %s77, %s78
      %p90 = scmp.eq.s32.totalorder %s47, 1
      %p91 = por %p89, %p90
      %p93 = scmp.ne.s32.totalorder %s78, %s92
      %p94 = scmp.eq.s32.totalorder %s47, 0
      %p95 = por %p93, %p94
      %s97 = sadd.s32 %s96, 1
      %p100 = scmp.eq.s32.totalorder %s41, 1
      %p101 = scmp.ne.s32.totalorder %s96, %s98
      %p102 = scmp.eq.s32.totalorder %s41, 0
      %p103 = por %p101, %p102
      %p104 = scmp.ne.s32.totalorder %s96, %s98
      %p105 = scmp.eq.s32.totalorder %s46, 1
      %p106 = por %p104, %p105
      %p107 = scmp.ne.s32.totalorder %s98, %s99
      %p108 = scmp.eq.s32.totalorder %s46, 0
      %p109 = por %p107, %p108
      %p110 = scmp.ne.s32.totalorder %s98, %s99
      %p111 = scmp.eq.s32.totalorder %s47, 1
      %p112 = por %p110, %p111
      %p114 = scmp.ne.s32.totalorder %s99, %s113
      %p115 = scmp.eq.s32.totalorder %s47, 0
      %p116 = por %p114, %p115
      %s118 = sadd.s32 %s117, 1
      %p121 = scmp.eq.s32.totalorder %s41, 1
      %p122 = scmp.ne.s32.totalorder %s117, %s119
      %p123 = scmp.eq.s32.totalorder %s41, 0
      %p124 = por %p122, %p123
      %p125 = scmp.ne.s32.totalorder %s117, %s119
      %p126 = scmp.eq.s32.totalorder %s46, 1
      %p127 = por %p125, %p126
      %p128 = scmp.ne.s32.totalorder %s119, %s120
      %p129 = scmp.eq.s32.totalorder %s46, 0
      %p130 = por %p128, %p129
      %p131 = scmp.ne.s32.totalorder %s119, %s120
      %p132 = scmp.eq.s32.totalorder %s47, 1
      %p133 = por %p131, %p132
      %p135 = scmp.ne.s32.totalorder %s120, %s134
      %p136 = scmp.eq.s32.totalorder %s47, 0
      %p137 = por %p135, %p136
      %s139 = sadd.s32 %s138, 1
      %p142 = scmp.eq.s32.totalorder %s41, 1
      %p143 = scmp.ne.s32.totalorder %s138, %s140
      %p144 = scmp.eq.s32.totalorder %s41, 0
      %p145 = por %p143, %p144
      %p146 = scmp.ne.s32.totalorder %s138, %s140
      %p147 = scmp.eq.s32.totalorder %s46, 1
      %p148 = por %p146, %p147
      %p149 = scmp.ne.s32.totalorder %s140, %s141
      %p150 = scmp.eq.s32.totalorder %s46, 0
      %p151 = por %p149, %p150
      %p152 = scmp.ne.s32.totalorder %s140, %s141
      %p153 = scmp.eq.s32.totalorder %s47, 1
      %p154 = por %p152, %p153
      %p156 = scmp.ne.s32.totalorder %s141, %s155
      %p157 = scmp.eq.s32.totalorder %s47, 0
      %p158 = por %p156, %p157
      %s160 = sadd.s32 %s159, 1
      %p163 = scmp.eq.s32.totalorder %s41, 1
      %p164 = scmp.ne.s32.totalorder %s159, %s161
      %p165 = scmp.eq.s32.totalorder %s41, 0
      %p166 = por %p164, %p165
      %p167 = scmp.ne.s32.totalorder %s159, %s161
      %p168 = scmp.eq.s32.totalorder %s46, 1
      %p169 = por %p167, %p168
      %p170 = scmp.ne.s32.totalorder %s161, %s162
      %p171 = scmp.eq.s32.totalorder %s46, 0
      %p172 = por %p170, %p171
      %p173 = scmp.ne.s32.totalorder %s161, %s162
      %p174 = scmp.eq.s32.totalorder %s47, 1
      %p175 = por %p173, %p174
      %p177 = scmp.ne.s32.totalorder %s162, %s176
      %p178 = scmp.eq.s32.totalorder %s47, 0
      %p179 = por %p177, %p178
      %s181 = sadd.s32 %s180, 1
      %p184 = scmp.eq.s32.totalorder %s41, 1
      %p185 = scmp.ne.s32.totalorder %s180, %s182
      %p186 = scmp.eq.s32.totalorder %s41, 0
      %p187 = por %p185, %p186
      %p188 = scmp.ne.s32.totalorder %s180, %s182
      %p189 = scmp.eq.s32.totalorder %s46, 1
      %p190 = por %p188, %p189
      %p191 = scmp.ne.s32.totalorder %s182, %s183
      %p192 = scmp.eq.s32.totalorder %s46, 0
      %p193 = por %p191, %p192
      %p194 = scmp.ne.s32.totalorder %s182, %s183
      %p195 = scmp.eq.s32.totalorder %s47, 1
      %p196 = por %p194, %p195
      %p198 = scmp.ne.s32.totalorder %s183, %s197
      %p199 = scmp.eq.s32.totalorder %s47, 0
      %p200 = por %p198, %p199
      %s202 = sadd.s32 %s201, 1
      %p205 = scmp.eq.s32.totalorder %s41, 1
      %p206 = scmp.ne.s32.totalorder %s201, %s203
      %p207 = scmp.eq.s32.totalorder %s41, 0
      %p208 = por %p206, %p207
      %p209 = scmp.ne.s32.totalorder %s201, %s203
      %p210 = scmp.eq.s32.totalorder %s46, 1
      %p211 = por %p209, %p210
      %p212 = scmp.ne.s32.totalorder %s203, %s204
      %p213 = scmp.eq.s32.totalorder %s46, 0
      %p214 = por %p212, %p213
      %p215 = scmp.ne.s32.totalorder %s203, %s204
      %p216 = scmp.eq.s32.totalorder %s47, 1
      %p217 = por %p215, %p216
      %p219 = scmp.ne.s32.totalorder %s204, %s218
      %p220 = scmp.eq.s32.totalorder %s47, 0
      %p221 = por %p219, %p220
      %s223 = sadd.s32 %s222, 1
      %p226 = scmp.eq.s32.totalorder %s41, 1
      %p227 = scmp.ne.s32.totalorder %s222, %s224
      %p228 = scmp.eq.s32.totalorder %s41, 0
      %p229 = por %p227, %p228
      %p230 = scmp.ne.s32.totalorder %s222, %s224
      %p231 = scmp.eq.s32.totalorder %s46, 1
      %p232 = por %p230, %p231
      %p233 = scmp.ne.s32.totalorder %s224, %s225
      %p234 = scmp.eq.s32.totalorder %s46, 0
      %p235 = por %p233, %p234
      %p236 = scmp.ne.s32.totalorder %s224, %s225
      %p237 = scmp.eq.s32.totalorder %s47, 1
      %p238 = por %p236, %p237
      %p240 = scmp.ne.s32.totalorder %s225, %s239
      %p241 = scmp.eq.s32.totalorder %s47, 0
      %p242 = por %p240, %p241
      %s244 = sadd.s32 %s243, 1
      %p247 = scmp.eq.s32.totalorder %s41, 1
      %p248 = scmp.ne.s32.totalorder %s243, %s245
      %p249 = scmp.eq.s32.totalorder %s41, 0
      %p250 = por %p248, %p249
      %p251 = scmp.ne.s32.totalorder %s243, %s245
      %p252 = scmp.eq.s32.totalorder %s46, 1
      %p253 = por %p251, %p252
      %p254 = scmp.ne.s32.totalorder %s245, %s246
      %p255 = scmp.eq.s32.totalorder %s46, 0
      %p256 = por %p254, %p255
      %p257 = scmp.ne.s32.totalorder %s245, %s246
      %p258 = scmp.eq.s32.totalorder %s47, 1
      %p259 = por %p257, %p258
      %p261 = scmp.ne.s32.totalorder %s246, %s260
      %p262 = scmp.eq.s32.totalorder %s47, 0
      %p263 = por %p261, %p262
      %s265 = sadd.s32 %s264, 1
      %p268 = scmp.eq.s32.totalorder %s41, 1
      %p269 = scmp.ne.s32.totalorder %s264, %s266
      %p270 = scmp.eq.s32.totalorder %s41, 0
      %p271 = por %p269, %p270
      %p272 = scmp.ne.s32.totalorder %s264, %s266
      %p273 = scmp.eq.s32.totalorder %s46, 1
      %p274 = por %p272, %p273
      %p275 = scmp.ne.s32.totalorder %s266, %s267
      %p276 = scmp.eq.s32.totalorder %s46, 0
      %p277 = por %p275, %p276
      %p278 = scmp.ne.s32.totalorder %s266, %s267
      %p279 = scmp.eq.s32.totalorder %s47, 1
      %p280 = por %p278, %p279
      %p282 = scmp.ne.s32.totalorder %s267, %s281
      %p283 = scmp.eq.s32.totalorder %s47, 0
      %p284 = por %p282, %p283
      %s286 = sadd.s32 %s285, 1
      %p289 = scmp.eq.s32.totalorder %s41, 1
      %p290 = scmp.ne.s32.totalorder %s285, %s287
      %p291 = scmp.eq.s32.totalorder %s41, 0
      %p292 = por %p290, %p291
      %p293 = scmp.ne.s32.totalorder %s285, %s287
      %p294 = scmp.eq.s32.totalorder %s46, 1
      %p295 = por %p293, %p294
      %p296 = scmp.ne.s32.totalorder %s287, %s288
      %p297 = scmp.eq.s32.totalorder %s46, 0
      %p298 = por %p296, %p297
      %p299 = scmp.ne.s32.totalorder %s287, %s288
      %p300 = scmp.eq.s32.totalorder %s47, 1
      %p301 = por %p299, %p300
      %p303 = scmp.ne.s32.totalorder %s288, %s302
      %p304 = scmp.eq.s32.totalorder %s47, 0
      %p305 = por %p303, %p304
      %s307 = sadd.s32 %s306, 1
      %p310 = scmp.eq.s32.totalorder %s41, 1
      %p311 = scmp.ne.s32.totalorder %s306, %s308
      %p312 = scmp.eq.s32.totalorder %s41, 0
      %p313 = por %p311, %p312
      %p314 = scmp.ne.s32.totalorder %s306, %s308
      %p315 = scmp.eq.s32.totalorder %s46, 1
      %p316 = por %p314, %p315
      %p317 = scmp.ne.s32.totalorder %s308, %s309
      %p318 = scmp.eq.s32.totalorder %s46, 0
      %p319 = por %p317, %p318
      %p320 = scmp.ne.s32.totalorder %s308, %s309
      %p321 = scmp.eq.s32.totalorder %s47, 1
      %p322 = por %p320, %p321
      %p324 = scmp.ne.s32.totalorder %s309, %s323
      %p325 = scmp.eq.s32.totalorder %s47, 0
      %p326 = por %p324, %p325
      %s328 = sadd.s32 %s327, 1
      %p331 = scmp.eq.s32.totalorder %s41, 1
      %p332 = scmp.ne.s32.totalorder %s327, %s329
      %p333 = scmp.eq.s32.totalorder %s41, 0
      %p334 = por %p332, %p333
      %p335 = scmp.ne.s32.totalorder %s327, %s329
      %p336 = scmp.eq.s32.totalorder %s46, 1
      %p337 = por %p335, %p336
      %p338 = scmp.ne.s32.totalorder %s329, %s330
      %p339 = scmp.eq.s32.totalorder %s46, 0
      %p340 = por %p338, %p339
      %p341 = scmp.ne.s32.totalorder %s329, %s330
      %p342 = scmp.eq.s32.totalorder %s47, 1
      %p343 = por %p341, %p342
      %p345 = scmp.ne.s32.totalorder %s330, %s344
      %p346 = scmp.eq.s32.totalorder %s47, 0
      %p347 = por %p345, %p346
      %s349 = sadd.s32 %s348, 1
      %p352 = scmp.eq.s32.totalorder %s41, 1
      %p353 = scmp.ne.s32.totalorder %s348, %s350
      %p354 = scmp.eq.s32.totalorder %s41, 0
      %p355 = por %p353, %p354
      %p356 = scmp.ne.s32.totalorder %s348, %s350
      %p357 = scmp.eq.s32.totalorder %s46, 1
      %p358 = por %p356, %p357
      %p359 = scmp.ne.s32.totalorder %s350, %s351
      %p360 = scmp.eq.s32.totalorder %s46, 0
      %p361 = por %p359, %p360
      %p362 = scmp.ne.s32.totalorder %s350, %s351
      %p363 = scmp.eq.s32.totalorder %s47, 1
      %p364 = por %p362, %p363
      %p366 = scmp.ne.s32.totalorder %s351, %s365
      %p367 = scmp.eq.s32.totalorder %s47, 0
      %p368 = por %p366, %p367
      %s370 = sadd.s32 %s369, 1
      %p373 = scmp.eq.s32.totalorder %s41, 1
      %p374 = scmp.ne.s32.totalorder %s369, %s371
      %p375 = scmp.eq.s32.totalorder %s41, 0
      %p376 = por %p374, %p375
      %p377 = scmp.ne.s32.totalorder %s369, %s371
      %p378 = scmp.eq.s32.totalorder %s46, 1
      %p379 = por %p377, %p378
      %p380 = scmp.ne.s32.totalorder %s371, %s372
      %p381 = scmp.eq.s32.totalorder %s46, 0
      %p382 = por %p380, %p381
      %p383 = scmp.ne.s32.totalorder %s371, %s372
      %p384 = scmp.eq.s32.totalorder %s47, 1
      %p385 = por %p383, %p384
      %p387 = scmp.ne.s32.totalorder %s372, %s386
      %p388 = scmp.eq.s32.totalorder %s47, 0
      %p389 = por %p387, %p388
      %s391 = sadd.s32 %s390, 1
      %p394 = scmp.eq.s32.totalorder %s41, 1
      %p395 = scmp.ne.s32.totalorder %s390, %s392
      %p396 = scmp.eq.s32.totalorder %s41, 0
      %p397 = por %p395, %p396
      %p398 = scmp.ne.s32.totalorder %s390, %s392
      %p399 = scmp.eq.s32.totalorder %s46, 1
      %p400 = por %p398, %p399
      %p401 = scmp.ne.s32.totalorder %s392, %s393
      %p402 = scmp.eq.s32.totalorder %s46, 0
      %p403 = por %p401, %p402
      %p404 = scmp.ne.s32.totalorder %s392, %s393
      %p405 = scmp.eq.s32.totalorder %s47, 1
      %p406 = por %p404, %p405
      %p408 = scmp.ne.s32.totalorder %s393, %s407
      %p409 = scmp.eq.s32.totalorder %s47, 0
      %p410 = por %p408, %p409
      %s412 = sadd.s32 %s411, 1
      %p415 = scmp.eq.s32.totalorder %s41, 1
      %p416 = scmp.ne.s32.totalorder %s411, %s413
      %p417 = scmp.eq.s32.totalorder %s41, 0
      %p418 = por %p416, %p417
      %p419 = scmp.ne.s32.totalorder %s411, %s413
      %p420 = scmp.eq.s32.totalorder %s46, 1
      %p421 = por %p419, %p420
      %p422 = scmp.ne.s32.totalorder %s413, %s414
      %p423 = scmp.eq.s32.totalorder %s46, 0
      %p424 = por %p422, %p423
      %p425 = scmp.ne.s32.totalorder %s413, %s414
      %p426 = scmp.eq.s32.totalorder %s47, 1
      %p427 = por %p425, %p426
      %p429 = scmp.ne.s32.totalorder %s414, %s428
      %p430 = scmp.eq.s32.totalorder %s47, 0
      %p431 = por %p429, %p430
      %s433 = sadd.s32 %s432, 1
      %p436 = scmp.eq.s32.totalorder %s41, 1
      %p437 = scmp.ne.s32.totalorder %s432, %s434
      %p438 = scmp.eq.s32.totalorder %s41, 0
      %p439 = por %p437, %p438
      %p440 = scmp.ne.s32.totalorder %s432, %s434
      %p441 = scmp.eq.s32.totalorder %s46, 1
      %p442 = por %p440, %p441
      %p443 = scmp.ne.s32.totalorder %s434, %s435
      %p444 = scmp.eq.s32.totalorder %s46, 0
      %p445 = por %p443, %p444
      %p446 = scmp.ne.s32.totalorder %s434, %s435
      %p447 = scmp.eq.s32.totalorder %s47, 1
      %p448 = por %p446, %p447
      %p450 = scmp.ne.s32.totalorder %s435, %s449
      %p451 = scmp.eq.s32.totalorder %s47, 0
      %p452 = por %p450, %p451
      %s454 = sadd.s32 %s453, 1
      %p457 = scmp.eq.s32.totalorder %s41, 1
      %p458 = scmp.ne.s32.totalorder %s453, %s455
      %p459 = scmp.eq.s32.totalorder %s41, 0
      %p460 = por %p458, %p459
      %p461 = scmp.ne.s32.totalorder %s453, %s455
      %p462 = scmp.eq.s32.totalorder %s46, 1
      %p463 = por %p461, %p462
      %p464 = scmp.ne.s32.totalorder %s455, %s456
      %p465 = scmp.eq.s32.totalorder %s46, 0
      %p466 = por %p464, %p465
      %p467 = scmp.ne.s32.totalorder %s455, %s456
      %p468 = scmp.eq.s32.totalorder %s47, 1
      %p469 = por %p467, %p468
      %p471 = scmp.ne.s32.totalorder %s456, %s470
      %p472 = scmp.eq.s32.totalorder %s47, 0
      %p473 = por %p471, %p472
      %s475 = sadd.s32 %s474, 1
      %p478 = scmp.eq.s32.totalorder %s41, 1
      %p479 = scmp.ne.s32.totalorder %s474, %s476
      %p480 = scmp.eq.s32.totalorder %s41, 0
      %p481 = por %p479, %p480
      %p482 = scmp.ne.s32.totalorder %s474, %s476
      %p483 = scmp.eq.s32.totalorder %s46, 1
      %p484 = por %p482, %p483
      %p485 = scmp.ne.s32.totalorder %s476, %s477
      %p486 = scmp.eq.s32.totalorder %s46, 0
      %p487 = por %p485, %p486
      %p488 = scmp.ne.s32.totalorder %s476, %s477
      %p489 = scmp.eq.s32.totalorder %s47, 1
      %p490 = por %p488, %p489
      %p492 = scmp.ne.s32.totalorder %s477, %s491
      %p493 = scmp.eq.s32.totalorder %s47, 0
      %p494 = por %p492, %p493
      %s496 = sadd.s32 %s495, 1
      %p499 = scmp.eq.s32.totalorder %s41, 1
      %p500 = scmp.ne.s32.totalorder %s495, %s497
      %p501 = scmp.eq.s32.totalorder %s41, 0
      %p502 = por %p500, %p501
      %p503 = scmp.ne.s32.totalorder %s495, %s497
      %p504 = scmp.eq.s32.totalorder %s46, 1
      %p505 = por %p503, %p504
      %p506 = scmp.ne.s32.totalorder %s497, %s498
      %p507 = scmp.eq.s32.totalorder %s46, 0
      %p508 = por %p506, %p507
      %p509 = scmp.ne.s32.totalorder %s497, %s498
      %p510 = scmp.eq.s32.totalorder %s47, 1
      %p511 = por %p509, %p510
      %p513 = scmp.ne.s32.totalorder %s498, %s512
      %p514 = scmp.eq.s32.totalorder %s47, 0
      %p515 = por %p513, %p514
      %s517 = sadd.s32 %s516, 1
      %p520 = scmp.eq.s32.totalorder %s41, 1
      %p521 = scmp.ne.s32.totalorder %s516, %s518
      %p522 = scmp.eq.s32.totalorder %s41, 0
      %p523 = por %p521, %p522
      %p524 = scmp.ne.s32.totalorder %s516, %s518
      %p525 = scmp.eq.s32.totalorder %s46, 1
      %p526 = por %p524, %p525
      %p527 = scmp.ne.s32.totalorder %s518, %s519
      %p528 = scmp.eq.s32.totalorder %s46, 0
      %p529 = por %p527, %p528
      %p530 = scmp.ne.s32.totalorder %s518, %s519
      %p531 = scmp.eq.s32.totalorder %s47, 1
      %p532 = por %p530, %p531
      %p534 = scmp.ne.s32.totalorder %s519, %s533
      %p535 = scmp.eq.s32.totalorder %s47, 0
      %p536 = por %p534, %p535
      %s538 = sadd.s32 %s537, 1
      %p541 = scmp.eq.s32.totalorder %s41, 1
      %p542 = scmp.ne.s32.totalorder %s537, %s539
      %p543 = scmp.eq.s32.totalorder %s41, 0
      %p544 = por %p542, %p543
      %p545 = scmp.ne.s32.totalorder %s537, %s539
      %p546 = scmp.eq.s32.totalorder %s46, 1
      %p547 = por %p545, %p546
      %p548 = scmp.ne.s32.totalorder %s539, %s540
      %p549 = scmp.eq.s32.totalorder %s46, 0
      %p550 = por %p548, %p549
      %p551 = scmp.ne.s32.totalorder %s539, %s540
      %p552 = scmp.eq.s32.totalorder %s47, 1
      %p553 = por %p551, %p552
      %p555 = scmp.ne.s32.totalorder %s540, %s554
      %p556 = scmp.eq.s32.totalorder %s47, 0
      %p557 = por %p555, %p556
      %s559 = sadd.s32 %s558, 1
      %p562 = scmp.eq.s32.totalorder %s41, 1
      %p563 = scmp.ne.s32.totalorder %s558, %s560
      %p564 = scmp.eq.s32.totalorder %s41, 0
      %p565 = por %p563, %p564
      %p566 = scmp.ne.s32.totalorder %s558, %s560
      %p567 = scmp.eq.s32.totalorder %s46, 1
      %p568 = por %p566, %p567
      %p569 = scmp.ne.s32.totalorder %s560, %s561
      %p570 = scmp.eq.s32.totalorder %s46, 0
      %p571 = por %p569, %p570
      %p572 = scmp.ne.s32.totalorder %s560, %s561
      %p573 = scmp.eq.s32.totalorder %s47, 1
      %p574 = por %p572, %p573
      %p576 = scmp.ne.s32.totalorder %s561, %s575
      %p577 = scmp.eq.s32.totalorder %s47, 0
      %p578 = por %p576, %p577
      %s579 = ssub.s32 %s41, %s48
      %p580 = scmp.eq.s32.totalorder %s579, 0
      %s582 = sadd.s32 %s581, 1
      %s583 = scalar_select %p580, %s581, %s582
      %p586 = pneg %p580
      %p587 = scmp.eq.s32.totalorder %s41, 1
      %p588 = por %p586, %p587
      %p589 = scmp.ne.s32.totalorder %s581, %s584
      %p590 = scmp.eq.s32.totalorder %s41, 0
      %p591 = por %p589, %p590
      %p592 = scmp.ne.s32.totalorder %s581, %s584
      %p593 = scmp.eq.s32.totalorder %s46, 1
      %p594 = por %p592, %p593
      %p595 = scmp.ne.s32.totalorder %s584, %s585
      %p596 = scmp.eq.s32.totalorder %s46, 0
      %p597 = por %p595, %p596
      %p598 = scmp.ne.s32.totalorder %s584, %s585
      %p599 = scmp.eq.s32.totalorder %s47, 1
      %p600 = por %p598, %p599
      %p602 = scmp.ne.s32.totalorder %s585, %s601
      %p603 = scmp.eq.s32.totalorder %s47, 0
      %p604 = por %p602, %p603
      %p605 = scmp.le.s32.totalorder 1, %s41
      %p606 = scmp.lt.s32.totalorder %s41, 3
      %p607 = pnand %p605, %p606
      %p608 = pneg %p607
      // Predicated region
      $region9: #{stem_block_attn.1} parent=5 // pred_check
        _
      $region10: #{stem_block_attn.1} parent=5 // pred_check_branch
        %610 = sbr.rel (%p607) target = $region12
      $region11: #{stem_block_attn.1} parent=5 // pred_region
        %s611 = ssub.s32 %s41, 1
        // Predicated region
        $region13: #{stem_block_attn.1} parent=11 // pred_check
          %p612 = pneg %p88
        $region14: #{stem_block_attn.1} parent=11 // pred_check_branch
          %614 = sbr.rel (%p612) target = $region16
        $region15: #{stem_block_attn.1} parent=11 // pred_region
          %616 = vsyncadd [#allocation5], 0
          %s617 = sshll.u32 %s1, 4
          %s618 = int_to_ptr.hbm [resolvable:$true] %s617
          %s619 = sshll.u32 [#allocation4], 4
          %s620 = int_to_ptr.vmem [resolvable:$true] %s619
          %625 = dma.hbm_to_vmem [thread:$0]  %s618, 18432, %s620, [#allocation5], 256, 256, 16
        $region16: #{stem_block_attn.1} parent=11 // pred_fallthru
          _
        // Predicated region
        $region17: #{stem_block_attn.1} parent=11 // pred_check
          %p626 = pneg %p109
        $region18: #{stem_block_attn.1} parent=11 // pred_check_branch
          %628 = sbr.rel (%p626) target = $region20
        $region19: #{stem_block_attn.1} parent=11 // pred_region
          _
        $region20: #{stem_block_attn.1} parent=11 // pred_fallthru
          _
        // Predicated region
        $region21: #{stem_block_attn.1} parent=11 // pred_check
          %p629 = pneg %p130
        $region22: #{stem_block_attn.1} parent=11 // pred_check_branch
          %631 = sbr.rel (%p629) target = $region24
        $region23: #{stem_block_attn.1} parent=11 // pred_region
          _
        $region24: #{stem_block_attn.1} parent=11 // pred_fallthru
          _
        // Predicated region
        $region25: #{stem_block_attn.1} parent=11 // pred_check
          %p632 = pneg %p151
        $region26: #{stem_block_attn.1} parent=11 // pred_check_branch
          %634 = sbr.rel (%p632) target = $region28
        $region27: #{stem_block_attn.1} parent=11 // pred_region
          _
        $region28: #{stem_block_attn.1} parent=11 // pred_fallthru
          _
        // Predicated region
        $region29: #{stem_block_attn.1} parent=11 // pred_check
          %p635 = pneg %p172
        $region30: #{stem_block_attn.1} parent=11 // pred_check_branch
          %637 = sbr.rel (%p635) target = $region32
        $region31: #{stem_block_attn.1} parent=11 // pred_region
          _
        $region32: #{stem_block_attn.1} parent=11 // pred_fallthru
          _
        // Predicated region
        $region33: #{stem_block_attn.1} parent=11 // pred_check
          %p638 = pneg %p193
        $region34: #{stem_block_attn.1} parent=11 // pred_check_branch
          %640 = sbr.rel (%p638) target = $region36
        $region35: #{stem_block_attn.1} parent=11 // pred_region
          _
        $region36: #{stem_block_attn.1} parent=11 // pred_fallthru
          _
        // Predicated region
        $region37: #{stem_block_attn.1} parent=11 // pred_check
          %p641 = pneg %p214
        $region38: #{stem_block_attn.1} parent=11 // pred_check_branch
          %643 = sbr.rel (%p641) target = $region40
        $region39: #{stem_block_attn.1} parent=11 // pred_region
          _
        $region40: #{stem_block_attn.1} parent=11 // pred_fallthru
          _
        // Predicated region
        $region41: #{stem_block_attn.1} parent=11 // pred_check
          %p644 = pneg %p235
        $region42: #{stem_block_attn.1} parent=11 // pred_check_branch
          %646 = sbr.rel (%p644) target = $region44
        $region43: #{stem_block_attn.1} parent=11 // pred_region
          _
        $region44: #{stem_block_attn.1} parent=11 // pred_fallthru
          _
        // Predicated region
        $region45: #{stem_block_attn.1} parent=11 // pred_check
          %p647 = pneg %p256
        $region46: #{stem_block_attn.1} parent=11 // pred_check_branch
          %649 = sbr.rel (%p647) target = $region48
        $region47: #{stem_block_attn.1} parent=11 // pred_region
          %651 = vsyncadd [#allocation8], 0
          %s652 = sshll.u32 %s9, 4
          %s653 = int_to_ptr.hbm [resolvable:$true] %s652
          %s654 = sshll.u32 [#allocation7], 4
          %s655 = int_to_ptr.vmem [resolvable:$true] %s654
          %660 = dma.hbm_to_vmem [thread:$0]  %s653, 1024, %s655, [#allocation8], 128, 128, 8
        $region48: #{stem_block_attn.1} parent=11 // pred_fallthru
          _
        // Predicated region
        $region49: #{stem_block_attn.1} parent=11 // pred_check
          %p661 = pneg %p277
        $region50: #{stem_block_attn.1} parent=11 // pred_check_branch
          %663 = sbr.rel (%p661) target = $region52
        $region51: #{stem_block_attn.1} parent=11 // pred_region
          %665 = vsyncadd [#allocation8], 0
          %s666 = sshll.u32 %s10, 4
          %s667 = int_to_ptr.hbm [resolvable:$true] %s666
          %s668 = sshll.u32 [#allocation9], 4
          %s669 = int_to_ptr.vmem [resolvable:$true] %s668
          %674 = dma.hbm_to_vmem [thread:$0]  %s667, 1024, %s669, [#allocation8], 128, 128, 8
        $region52: #{stem_block_attn.1} parent=11 // pred_fallthru
          _
        // Predicated region
        $region53: #{stem_block_attn.1} parent=11 // pred_check
          %p675 = pneg %p298
        $region54: #{stem_block_attn.1} parent=11 // pred_check_branch
          %677 = sbr.rel (%p675) target = $region56
        $region55: #{stem_block_attn.1} parent=11 // pred_region
          _
        $region56: #{stem_block_attn.1} parent=11 // pred_fallthru
          _
        // Predicated region
        $region57: #{stem_block_attn.1} parent=11 // pred_check
          %p678 = pneg %p319
        $region58: #{stem_block_attn.1} parent=11 // pred_check_branch
          %680 = sbr.rel (%p678) target = $region60
        $region59: #{stem_block_attn.1} parent=11 // pred_region
          _
        $region60: #{stem_block_attn.1} parent=11 // pred_fallthru
          _
        // Predicated region
        $region61: #{stem_block_attn.1} parent=11 // pred_check
          %p681 = pneg %p340
        $region62: #{stem_block_attn.1} parent=11 // pred_check_branch
          %683 = sbr.rel (%p681) target = $region64
        $region63: #{stem_block_attn.1} parent=11 // pred_region
          _
        $region64: #{stem_block_attn.1} parent=11 // pred_fallthru
          _
        // Predicated region
        $region65: #{stem_block_attn.1} parent=11 // pred_check
          %p684 = pneg %p361
        $region66: #{stem_block_attn.1} parent=11 // pred_check_branch
          %686 = sbr.rel (%p684) target = $region68
        $region67: #{stem_block_attn.1} parent=11 // pred_region
          _
        $region68: #{stem_block_attn.1} parent=11 // pred_fallthru
          _
        // Predicated region
        $region69: #{stem_block_attn.1} parent=11 // pred_check
          %p687 = pneg %p382
        $region70: #{stem_block_attn.1} parent=11 // pred_check_branch
          %689 = sbr.rel (%p687) target = $region72
        $region71: #{stem_block_attn.1} parent=11 // pred_region
          _
        $region72: #{stem_block_attn.1} parent=11 // pred_fallthru
          _
        // Predicated region
        $region73: #{stem_block_attn.1} parent=11 // pred_check
          %p690 = pneg %p403
        $region74: #{stem_block_attn.1} parent=11 // pred_check_branch
          %692 = sbr.rel (%p690) target = $region76
        $region75: #{stem_block_attn.1} parent=11 // pred_region
          _
        $region76: #{stem_block_attn.1} parent=11 // pred_fallthru
          _
        // Predicated region
        $region77: #{stem_block_attn.1} parent=11 // pred_check
          %p693 = pneg %p424
        $region78: #{stem_block_attn.1} parent=11 // pred_check_branch
          %695 = sbr.rel (%p693) target = $region80
        $region79: #{stem_block_attn.1} parent=11 // pred_region
          %697 = vsyncadd [#allocation11], 0
          %s698 = sshll.u32 %s17, 4
          %s699 = int_to_ptr.hbm [resolvable:$true] %s698
          %s700 = sshll.u32 [#allocation10], 4
          %s701 = int_to_ptr.vmem [resolvable:$true] %s700
          %706 = dma.hbm_to_vmem [thread:$0]  %s699, 1152, %s701, [#allocation11], 128, 128, 8
        $region80: #{stem_block_attn.1} parent=11 // pred_fallthru
          _
        // Predicated region
        $region81: #{stem_block_attn.1} parent=11 // pred_check
          %p707 = pneg %p445
        $region82: #{stem_block_attn.1} parent=11 // pred_check_branch
          %709 = sbr.rel (%p707) target = $region84
        $region83: #{stem_block_attn.1} parent=11 // pred_region
          _
        $region84: #{stem_block_attn.1} parent=11 // pred_fallthru
          _
        // Predicated region
        $region85: #{stem_block_attn.1} parent=11 // pred_check
          %p710 = pneg %p466
        $region86: #{stem_block_attn.1} parent=11 // pred_check_branch
          %712 = sbr.rel (%p710) target = $region88
        $region87: #{stem_block_attn.1} parent=11 // pred_region
          _
        $region88: #{stem_block_attn.1} parent=11 // pred_fallthru
          _
        // Predicated region
        $region89: #{stem_block_attn.1} parent=11 // pred_check
          %p713 = pneg %p487
        $region90: #{stem_block_attn.1} parent=11 // pred_check_branch
          %715 = sbr.rel (%p713) target = $region92
        $region91: #{stem_block_attn.1} parent=11 // pred_region
          _
        $region92: #{stem_block_attn.1} parent=11 // pred_fallthru
          _
        // Predicated region
        $region93: #{stem_block_attn.1} parent=11 // pred_check
          %p716 = pneg %p508
        $region94: #{stem_block_attn.1} parent=11 // pred_check_branch
          %718 = sbr.rel (%p716) target = $region96
        $region95: #{stem_block_attn.1} parent=11 // pred_region
          _
        $region96: #{stem_block_attn.1} parent=11 // pred_fallthru
          _
        // Predicated region
        $region97: #{stem_block_attn.1} parent=11 // pred_check
          %p719 = pneg %p529
        $region98: #{stem_block_attn.1} parent=11 // pred_check_branch
          %721 = sbr.rel (%p719) target = $region100
        $region99: #{stem_block_attn.1} parent=11 // pred_region
          _
        $region100: #{stem_block_attn.1} parent=11 // pred_fallthru
          _
        // Predicated region
        $region101: #{stem_block_attn.1} parent=11 // pred_check
          %p722 = pneg %p550
        $region102: #{stem_block_attn.1} parent=11 // pred_check_branch
          %724 = sbr.rel (%p722) target = $region104
        $region103: #{stem_block_attn.1} parent=11 // pred_region
          _
        $region104: #{stem_block_attn.1} parent=11 // pred_fallthru
          _
        // Predicated region
        $region105: #{stem_block_attn.1} parent=11 // pred_check
          %p725 = pneg %p571
        $region106: #{stem_block_attn.1} parent=11 // pred_check_branch
          %727 = sbr.rel (%p725) target = $region108
        $region107: #{stem_block_attn.1} parent=11 // pred_region
          _
        $region108: #{stem_block_attn.1} parent=11 // pred_fallthru
          _
      $region12: #{stem_block_attn.1} parent=5 // pred_fallthru
        _
      %p728 = scmp.lt.s32.totalorder %s41, 2
      // Predicated region
      $region109: #{stem_block_attn.1} parent=5 // pred_check
        %p729 = pneg %p728
      $region110: #{stem_block_attn.1} parent=5 // pred_check_branch
        %731 = sbr.rel (%p729) target = $region112
      $region111: #{stem_block_attn.1} parent=5 // pred_region
        // Predicated region
        $region113: #{stem_block_attn.1} parent=111 // pred_check
          %p732 = pneg %p61
        $region114: #{stem_block_attn.1} parent=111 // pred_check_branch
          %734 = sbr.rel (%p732) target = $region116
        $region115: #{stem_block_attn.1} parent=111 // pred_region
          %p735 = scmp.lt.s32.totalorder %s41, 1
          %s736 = scalar_select %p735, %s41, 1
          %s737 = smul.addr %s736, 32
          %s738 = smul.addr %s737, 8
          %s739 = scalar_lea.vmem %s0, %s738
        $region116: #{stem_block_attn.1} parent=111 // pred_fallthru
          _
      $region112: #{stem_block_attn.1} parent=5 // pred_fallthru
        _
      %p740 = scmp.le.s32.totalorder 1, %s41
      %p741 = scmp.lt.s32.totalorder %s41, 3
      %p742 = pnand %p740, %p741
      %p743 = pneg %p742
      // Predicated region
      $region117: #{stem_block_attn.1} parent=5 // pred_check
        _
      $region118: #{stem_block_attn.1} parent=5 // pred_check_branch
        %745 = sbr.rel (%p742) target = $region120
      $region119: #{stem_block_attn.1} parent=5 // pred_region
        %s746 = ssub.s32 %s41, 1
        // Predicated region
        $region121: #{stem_block_attn.1} parent=119 // pred_check
          %p747 = pneg %p88
        $region122: #{stem_block_attn.1} parent=119 // pred_check_branch
          %749 = sbr.rel (%p747) target = $region124
        $region123: #{stem_block_attn.1} parent=119 // pred_region
          %751 = dma.done [#allocation5], 18432
        $region124: #{stem_block_attn.1} parent=119 // pred_fallthru
          _
        // Predicated region
        $region125: #{stem_block_attn.1} parent=119 // pred_check
          %p752 = pneg %p256
        $region126: #{stem_block_attn.1} parent=119 // pred_check_branch
          %754 = sbr.rel (%p752) target = $region128
        $region127: #{stem_block_attn.1} parent=119 // pred_region
          %756 = dma.done [#allocation8], 1024
        $region128: #{stem_block_attn.1} parent=119 // pred_fallthru
          _
        // Predicated region
        $region129: #{stem_block_attn.1} parent=119 // pred_check
          %p757 = pneg %p277
        $region130: #{stem_block_attn.1} parent=119 // pred_check_branch
          %759 = sbr.rel (%p757) target = $region132
        $region131: #{stem_block_attn.1} parent=119 // pred_region
          %761 = dma.done [#allocation8], 1024
        $region132: #{stem_block_attn.1} parent=119 // pred_fallthru
          _
        // Predicated region
        $region133: #{stem_block_attn.1} parent=119 // pred_check
          %p762 = pneg %p424
        $region134: #{stem_block_attn.1} parent=119 // pred_check_branch
          %764 = sbr.rel (%p762) target = $region136
        $region135: #{stem_block_attn.1} parent=119 // pred_region
          %766 = dma.done [#allocation11], 1152
        $region136: #{stem_block_attn.1} parent=119 // pred_fallthru
          _
        %p767 = scmp.lt.s32.totalorder %s46, 1
        %s768 = scalar_select %p767, %s46, 1
        %s769 = smul.addr %s768, 32
        %s770 = smul.addr %s769, 8
        %s771 = scalar_lea.vmem %s0, %s770
        %p772 = pneg %p67
        %p773 = pneg %p64
        %p774 = pneg %p88
        %p775 = pneg %p85
        %p776 = pneg %p109
        %p777 = pneg %p106
        %p778 = pneg %p130
        %p779 = pneg %p127
        %p780 = pneg %p151
        %p781 = pneg %p148
        %p782 = pneg %p172
        %p783 = pneg %p169
        %p784 = pneg %p193
        %p785 = pneg %p190
        %p786 = pneg %p214
        %p787 = pneg %p211
        %p788 = pneg %p235
        %p789 = pneg %p232
        %p790 = pneg %p256
        %p791 = pneg %p253
        %p792 = pneg %p277
        %p793 = pneg %p274
        %p794 = pneg %p298
        %p795 = pneg %p295
        %p796 = pneg %p319
        %p797 = pneg %p316
        %p798 = pneg %p340
        %p799 = pneg %p337
        %p800 = pneg %p361
        %p801 = pneg %p358
        %p802 = pneg %p382
        %p803 = pneg %p379
        %p804 = pneg %p403
        %p805 = pneg %p400
        %p806 = pneg %p424
        %p807 = pneg %p421
        %p808 = pneg %p445
        %p809 = pneg %p442
        %p810 = pneg %p466
        %p811 = pneg %p463
        %p812 = pneg %p487
        %p813 = pneg %p484
        %p814 = pneg %p508
        %p815 = pneg %p505
        %p816 = pneg %p529
        %p817 = pneg %p526
        %p818 = pneg %p550
        %p819 = pneg %p547
        %p820 = pneg %p571
        %p821 = pneg %p568
        %p822 = pneg %p597
        %p823 = pneg %p594
        %s824 = sand.u32 %s584, 1
        %s825 = scalar_lea.sflag [#allocation6], %s824
        %s826 = sand.u32 %s584, 1
        %s827 = smul.addr %s826, 16
        %s828 = scalar_lea.vmem [#allocation12], %s827
        %p829 = scmp.lt.s32.totalorder %s46, 1
        %s830 = scalar_select %p829, %s46, 1
        %s831 = smul.addr %s830, 32
        %s832 = smul.addr %s831, 8
        %s833 = scalar_lea.vmem %s0, %s832
        %v834 = vld [vmem:[%s833] sm:$0xff]
        %v835 = vld [vmem:[%s833 + $0x8] sm:$0xff]
        %v836 = vld [vmem:[%s833 + $0x10] sm:$0xff]
        %v837 = vld [vmem:[%s833 + $0x18] sm:$0xff]
        %v838 = vld [vmem:[%s833 + $0x20] sm:$0xff]
        %v839 = vld [vmem:[%s833 + $0x28] sm:$0xff]
        %v840 = vld [vmem:[%s833 + $0x30] sm:$0xff]
        %v841 = vld [vmem:[%s833 + $0x38] sm:$0xff]
        %v842 = vld [vmem:[%s833 + $0x40] sm:$0xff]
        %v843 = vld [vmem:[%s833 + $0x48] sm:$0xff]
        %v844 = vld [vmem:[%s833 + $0x50] sm:$0xff]
        %v845 = vld [vmem:[%s833 + $0x58] sm:$0xff]
        %v846 = vld [vmem:[%s833 + $0x60] sm:$0xff]
        %v847 = vld [vmem:[%s833 + $0x68] sm:$0xff]
        %v848 = vld [vmem:[%s833 + $0x70] sm:$0xff]
        %v849 = vld [vmem:[%s833 + $0x78] sm:$0xff]
        %v850 = vld [vmem:[%s833 + $0x80] sm:$0xff]
        %v851 = vld [vmem:[%s833 + $0x88] sm:$0xff]
        %v852 = vld [vmem:[%s833 + $0x90] sm:$0xff]
        %v853 = vld [vmem:[%s833 + $0x98] sm:$0xff]
        %v854 = vld [vmem:[%s833 + $0xa0] sm:$0xff]
        %v855 = vld [vmem:[%s833 + $0xa8] sm:$0xff]
        %v856 = vld [vmem:[%s833 + $0xb0] sm:$0xff]
        %v857 = vld [vmem:[%s833 + $0xb8] sm:$0xff]
        %v858 = vld [vmem:[%s833 + $0xc0] sm:$0xff]
        %v859 = vld [vmem:[%s833 + $0xc8] sm:$0xff]
        %v860 = vld [vmem:[%s833 + $0xd0] sm:$0xff]
        %v861 = vld [vmem:[%s833 + $0xd8] sm:$0xff]
        %v862 = vld [vmem:[%s833 + $0xe0] sm:$0xff]
        %v863 = vld [vmem:[%s833 + $0xe8] sm:$0xff]
        %v864 = vld [vmem:[%s833 + $0xf0] sm:$0xff]
        %v865 = vld [vmem:[%s833 + $0xf8] sm:$0xff]
        %v866 = vld [vmem:[#allocation4] sm:$0xff]
        %v867 = vld [vmem:[#allocation4 + $0x8] sm:$0xff]
        %v868 = vld [vmem:[#allocation4 + $0x10] sm:$0xff]
        %v869 = vld [vmem:[#allocation4 + $0x18] sm:$0xff]
        %v870 = vld [vmem:[#allocation4 + $0x20] sm:$0xff]
        %v871 = vld [vmem:[#allocation4 + $0x28] sm:$0xff]
        %v872 = vld [vmem:[#allocation4 + $0x30] sm:$0xff]
        %v873 = vld [vmem:[#allocation4 + $0x38] sm:$0xff]
        %v874 = vld [vmem:[#allocation4 + $0x40] sm:$0xff]
        %v875 = vld [vmem:[#allocation4 + $0x48] sm:$0xff]
        %v876 = vld [vmem:[#allocation4 + $0x50] sm:$0xff]
        %v877 = vld [vmem:[#allocation4 + $0x58] sm:$0xff]
        %v878 = vld [vmem:[#allocation4 + $0x60] sm:$0xff]
        %v879 = vld [vmem:[#allocation4 + $0x68] sm:$0xff]
        %v880 = vld [vmem:[#allocation4 + $0x70] sm:$0xff]
        %v881 = vld [vmem:[#allocation4 + $0x78] sm:$0xff]
        %882 = vmatpush.msra.mxu0 %v849
        %883 = vmatpush.msra.mxu0 %v848
        %884 = vmatpush.msra.mxu0 %v847
        %885 = vmatpush.msra.mxu0 %v846
        %886 = vmatpush.msra.mxu0 %v845
        %887 = vmatpush.msra.mxu0 %v844
        %888 = vmatpush.msra.mxu0 %v843
        %889 = vmatpush.msra.mxu0 %v842
        %890 = vmatpush.msra.mxu0 %v841
        %891 = vmatpush.msra.mxu0 %v840
        %892 = vmatpush.msra.mxu0 %v839
        %893 = vmatpush.msra.mxu0 %v838
        %894 = vmatpush.msra.mxu0 %v837
        %895 = vmatpush.msra.mxu0 %v836
        %896 = vmatpush.msra.mxu0 %v835
        %897 = vmatpush.msra.mxu0 %v834
        %898 = vmatmul.f32.gmra.mxu0 %v866
        %v899 = vpop.f32.mrf.mxu0
        %v900 = vadd.f32 0.0, %v899
        %901 = vmatmul.f32.gmra.mxu0 %v868
        %v902 = vpop.f32.mrf.mxu0
        %v903 = vadd.f32 0.0, %v902
        %904 = vmatmul.f32.gmra.mxu0 %v870
        %v905 = vpop.f32.mrf.mxu0
        %v906 = vadd.f32 0.0, %v905
        %907 = vmatmul.f32.gmra.mxu0 %v872
        %v908 = vpop.f32.mrf.mxu0
        %v909 = vadd.f32 0.0, %v908
        %910 = vmatmul.f32.gmra.mxu0 %v874
        %v911 = vpop.f32.mrf.mxu0
        %v912 = vadd.f32 0.0, %v911
        %913 = vmatmul.f32.gmra.mxu0 %v876
        %v914 = vpop.f32.mrf.mxu0
        %v915 = vadd.f32 0.0, %v914
        %916 = vmatmul.f32.gmra.mxu0 %v878
        %v917 = vpop.f32.mrf.mxu0
        %v918 = vadd.f32 0.0, %v917
        %919 = vmatmul.f32.gmra.mxu0 %v880
        %v920 = vpop.f32.mrf.mxu0
        %v921 = vadd.f32 0.0, %v920
        %922 = vdwg.mxu0
        %923 = vmatpush.msra.mxu0 %v865
        %924 = vmatpush.msra.mxu0 %v864
        %925 = vmatpush.msra.mxu0 %v863
        %926 = vmatpush.msra.mxu0 %v862
        %927 = vmatpush.msra.mxu0 %v861
        %928 = vmatpush.msra.mxu0 %v860
        %929 = vmatpush.msra.mxu0 %v859
        %930 = vmatpush.msra.mxu0 %v858
        %931 = vmatpush.msra.mxu0 %v857
        %932 = vmatpush.msra.mxu0 %v856
        %933 = vmatpush.msra.mxu0 %v855
        %934 = vmatpush.msra.mxu0 %v854
        %935 = vmatpush.msra.mxu0 %v853
        %936 = vmatpush.msra.mxu0 %v852
        %937 = vmatpush.msra.mxu0 %v851
        %938 = vmatpush.msra.mxu0 %v850
        %939 = vmatmul.f32.gmra.mxu0 %v867
        %v940 = vpop.f32.mrf.mxu0
        %v941 = vadd.f32 %v900, %v940
        %942 = vmatmul.f32.gmra.mxu0 %v869
        %v943 = vpop.f32.mrf.mxu0
        %v944 = vadd.f32 %v903, %v943
        %945 = vmatmul.f32.gmra.mxu0 %v871
        %v946 = vpop.f32.mrf.mxu0
        %v947 = vadd.f32 %v906, %v946
        %948 = vmatmul.f32.gmra.mxu0 %v873
        %v949 = vpop.f32.mrf.mxu0
        %v950 = vadd.f32 %v909, %v949
        %951 = vmatmul.f32.gmra.mxu0 %v875
        %v952 = vpop.f32.mrf.mxu0
        %v953 = vadd.f32 %v912, %v952
        %954 = vmatmul.f32.gmra.mxu0 %v877
        %v955 = vpop.f32.mrf.mxu0
        %v956 = vadd.f32 %v915, %v955
        %957 = vmatmul.f32.gmra.mxu0 %v879
        %v958 = vpop.f32.mrf.mxu0
        %v959 = vadd.f32 %v918, %v958
        %960 = vmatmul.f32.gmra.mxu0 %v881
        %v961 = vpop.f32.mrf.mxu0
        %v962 = vadd.f32 %v921, %v961
        %963 = vdwg.mxu0
        %v964 = vld [vmem:[%s2] sm:$0x1f]
        %s965 = scalar_lea.vmem [#allocation4], 128
        %v966 = vld [vmem:[%s965] sm:$0xff]
        %v967 = vld [vmem:[%s965 + $0x8] sm:$0xff]
        %v968 = vld [vmem:[%s965 + $0x10] sm:$0xff]
        %v969 = vld [vmem:[%s965 + $0x18] sm:$0xff]
        %v970 = vld [vmem:[%s965 + $0x20] sm:$0xff]
        %v971 = vld [vmem:[%s965 + $0x28] sm:$0xff]
        %v972 = vld [vmem:[%s965 + $0x30] sm:$0xff]
        %v973 = vld [vmem:[%s965 + $0x38] sm:$0xff]
        %v974 = vld [vmem:[%s965 + $0x40] sm:$0xff]
        %v975 = vld [vmem:[%s965 + $0x48] sm:$0xff]
        %v976 = vld [vmem:[%s965 + $0x50] sm:$0xff]
        %v977 = vld [vmem:[%s965 + $0x58] sm:$0xff]
        %v978 = vld [vmem:[%s965 + $0x60] sm:$0xff]
        %v979 = vld [vmem:[%s965 + $0x68] sm:$0xff]
        %v980 = vld [vmem:[%s965 + $0x70] sm:$0xff]
        %v981 = vld [vmem:[%s965 + $0x78] sm:$0xff]
        %982 = vmatpush.msra.mxu0 %v849
        %983 = vmatpush.msra.mxu0 %v848
        %984 = vmatpush.msra.mxu0 %v847
        %985 = vmatpush.msra.mxu0 %v846
        %986 = vmatpush.msra.mxu0 %v845
        %987 = vmatpush.msra.mxu0 %v844
        %988 = vmatpush.msra.mxu0 %v843
        %989 = vmatpush.msra.mxu0 %v842
        %990 = vmatpush.msra.mxu0 %v841
        %991 = vmatpush.msra.mxu0 %v840
        %992 = vmatpush.msra.mxu0 %v839
        %993 = vmatpush.msra.mxu0 %v838
        %994 = vmatpush.msra.mxu0 %v837
        %995 = vmatpush.msra.mxu0 %v836
        %996 = vmatpush.msra.mxu0 %v835
        %997 = vmatpush.msra.mxu0 %v834
        %998 = vmatmul.f32.gmra.mxu0 %v966
        %v999 = vpop.f32.mrf.mxu0
        %v1000 = vadd.f32 0.0, %v999
        %1001 = vmatmul.f32.gmra.mxu0 %v968
        %v1002 = vpop.f32.mrf.mxu0
        %v1003 = vadd.f32 0.0, %v1002
        %1004 = vmatmul.f32.gmra.mxu0 %v970
        %v1005 = vpop.f32.mrf.mxu0
        %v1006 = vadd.f32 0.0, %v1005
        %1007 = vmatmul.f32.gmra.mxu0 %v972
        %v1008 = vpop.f32.mrf.mxu0
        %v1009 = vadd.f32 0.0, %v1008
        %1010 = vmatmul.f32.gmra.mxu0 %v974
        %v1011 = vpop.f32.mrf.mxu0
        %v1012 = vadd.f32 0.0, %v1011
        %1013 = vmatmul.f32.gmra.mxu0 %v976
        %v1014 = vpop.f32.mrf.mxu0
        %v1015 = vadd.f32 0.0, %v1014
        %1016 = vmatmul.f32.gmra.mxu0 %v978
        %v1017 = vpop.f32.mrf.mxu0
        %v1018 = vadd.f32 0.0, %v1017
        %1019 = vmatmul.f32.gmra.mxu0 %v980
        %v1020 = vpop.f32.mrf.mxu0
        %v1021 = vadd.f32 0.0, %v1020
        %1022 = vdwg.mxu0
        %1023 = vmatpush.msra.mxu0 %v865
        %1024 = vmatpush.msra.mxu0 %v864
        %1025 = vmatpush.msra.mxu0 %v863
        %1026 = vmatpush.msra.mxu0 %v862
        %1027 = vmatpush.msra.mxu0 %v861
        %1028 = vmatpush.msra.mxu0 %v860
        %1029 = vmatpush.msra.mxu0 %v859
        %1030 = vmatpush.msra.mxu0 %v858
        %1031 = vmatpush.msra.mxu0 %v857
        %1032 = vmatpush.msra.mxu0 %v856
        %1033 = vmatpush.msra.mxu0 %v855
        %1034 = vmatpush.msra.mxu0 %v854
        %1035 = vmatpush.msra.mxu0 %v853
        %1036 = vmatpush.msra.mxu0 %v852
        %1037 = vmatpush.msra.mxu0 %v851
        %1038 = vmatpush.msra.mxu0 %v850
        %1039 = vmatmul.f32.gmra.mxu0 %v967
        %v1040 = vpop.f32.mrf.mxu0
        %v1041 = vadd.f32 %v1000, %v1040
        %1042 = vmatmul.f32.gmra.mxu0 %v969
        %v1043 = vpop.f32.mrf.mxu0
        %v1044 = vadd.f32 %v1003, %v1043
        %1045 = vmatmul.f32.gmra.mxu0 %v971
        %v1046 = vpop.f32.mrf.mxu0
        %v1047 = vadd.f32 %v1006, %v1046
        %1048 = vmatmul.f32.gmra.mxu0 %v973
        %v1049 = vpop.f32.mrf.mxu0
        %v1050 = vadd.f32 %v1009, %v1049
        %1051 = vmatmul.f32.gmra.mxu0 %v975
        %v1052 = vpop.f32.mrf.mxu0
        %v1053 = vadd.f32 %v1012, %v1052
        %1054 = vmatmul.f32.gmra.mxu0 %v977
        %v1055 = vpop.f32.mrf.mxu0
        %v1056 = vadd.f32 %v1015, %v1055
        %1057 = vmatmul.f32.gmra.mxu0 %v979
        %v1058 = vpop.f32.mrf.mxu0
        %v1059 = vadd.f32 %v1018, %v1058
        %1060 = vmatmul.f32.gmra.mxu0 %v981
        %v1061 = vpop.f32.mrf.mxu0
        %v1062 = vadd.f32 %v1021, %v1061
        %1063 = vdwg.mxu0
        %s1064 = scalar_lea.vmem %s2, 8
        %v1065 = vld [vmem:[%s1064] sm:$0x1f]
        %vm1066 = vcmask 39936
        %v1068 = vsel %vm1066, %v1041, 0
        %v1071 = vsel %vm1066, %v1044, 0
        %v1074 = vsel %vm1066, %v1047, 0
        %v1077 = vsel %vm1066, %v1050, 0
        %v1080 = vsel %vm1066, %v1053, 0
        %v1083 = vsel %vm1066, %v1056, 0
        %v1086 = vsel %vm1066, %v1059, 0
        %v1089 = vsel %vm1066, %v1062, 0
        %vm1091 = vcmask 1044480
        %v1093 = vsel %vm1091, %v1065, 0
        %1095 = vmatpush.msra.mxu0 0.0
        %1096 = vmatpush.msra.mxu0 0.0
        %1097 = vmatpush.msra.mxu0 0.0
        %1098 = vmatpush.msra.mxu0 0.0
        %1099 = vmatpush.msra.mxu0 0.0
        %1100 = vmatpush.msra.mxu0 0.0
        %1101 = vmatpush.msra.mxu0 0.0
        %1102 = vmatpush.msra.mxu0 0.0
        %1103 = vmatpush.msra.mxu0 0.0
        %1104 = vmatpush.msra.mxu0 0.0
        %1105 = vmatpush.msra.mxu0 0.0
        %1106 = vmatpush.msra.mxu0 0.0
        %1107 = vmatpush.msra.mxu0 0.0
        %1108 = vmatpush.msra.mxu0 0.0
        %1109 = vmatpush.msra.mxu0 0.0
        %1110 = vmatpush.msra.mxu0 %v1093
        %1111 = vmatmul.f32.gmra.mxu0 %v1068
        %v1112 = vpop.f32.mrf.mxu0
        %v1113 = vadd.f32 0.0, %v1112
        %1114 = vmatmul.f32.gmra.mxu0 %v1071
        %v1115 = vpop.f32.mrf.mxu0
        %v1116 = vadd.f32 0.0, %v1115
        %1117 = vmatmul.f32.gmra.mxu0 %v1074
        %v1118 = vpop.f32.mrf.mxu0
        %v1119 = vadd.f32 0.0, %v1118
        %1120 = vmatmul.f32.gmra.mxu0 %v1077
        %v1121 = vpop.f32.mrf.mxu0
        %v1122 = vadd.f32 0.0, %v1121
        %1123 = vmatmul.f32.gmra.mxu0 %v1080
        %v1124 = vpop.f32.mrf.mxu0
        %v1125 = vadd.f32 0.0, %v1124
        %1126 = vmatmul.f32.gmra.mxu0 %v1083
        %v1127 = vpop.f32.mrf.mxu0
        %v1128 = vadd.f32 0.0, %v1127
        %1129 = vmatmul.f32.gmra.mxu0 %v1086
        %v1130 = vpop.f32.mrf.mxu0
        %v1131 = vadd.f32 0.0, %v1130
        %1132 = vmatmul.f32.gmra.mxu0 %v1089
        %v1133 = vpop.f32.mrf.mxu0
        %v1134 = vadd.f32 0.0, %v1133
        %1135 = vdwg.mxu0
        %v1137 = vsel %vm1066, %v941, 0
        %v1140 = vsel %vm1066, %v944, 0
        %v1143 = vsel %vm1066, %v947, 0
        %v1146 = vsel %vm1066, %v950, 0
        %v1149 = vsel %vm1066, %v953, 0
        %v1152 = vsel %vm1066, %v956, 0
        %v1155 = vsel %vm1066, %v959, 0
        %v1158 = vsel %vm1066, %v962, 0
        %v1161 = vsel %vm1091, %v964, 0
        %1163 = vmatpush.msra.mxu0 0.0
        %1164 = vmatpush.msra.mxu0 0.0
        %1165 = vmatpush.msra.mxu0 0.0
        %1166 = vmatpush.msra.mxu0 0.0
        %1167 = vmatpush.msra.mxu0 0.0
        %1168 = vmatpush.msra.mxu0 0.0
        %1169 = vmatpush.msra.mxu0 0.0
        %1170 = vmatpush.msra.mxu0 0.0
        %1171 = vmatpush.msra.mxu0 0.0
        %1172 = vmatpush.msra.mxu0 0.0
        %1173 = vmatpush.msra.mxu0 0.0
        %1174 = vmatpush.msra.mxu0 0.0
        %1175 = vmatpush.msra.mxu0 0.0
        %1176 = vmatpush.msra.mxu0 0.0
        %1177 = vmatpush.msra.mxu0 0.0
        %1178 = vmatpush.msra.mxu0 %v1161
        %1179 = vmatmul.f32.gmra.mxu0 %v1137
        %v1180 = vpop.f32.mrf.mxu0
        %v1181 = vadd.f32 %v1113, %v1180
        %1182 = vmatmul.f32.gmra.mxu0 %v1140
        %v1183 = vpop.f32.mrf.mxu0
        %v1184 = vadd.f32 %v1116, %v1183
        %1185 = vmatmul.f32.gmra.mxu0 %v1143
        %v1186 = vpop.f32.mrf.mxu0
        %v1187 = vadd.f32 %v1119, %v1186
        %1188 = vmatmul.f32.gmra.mxu0 %v1146
        %v1189 = vpop.f32.mrf.mxu0
        %v1190 = vadd.f32 %v1122, %v1189
        %1191 = vmatmul.f32.gmra.mxu0 %v1149
        %v1192 = vpop.f32.mrf.mxu0
        %v1193 = vadd.f32 %v1125, %v1192
        %1194 = vmatmul.f32.gmra.mxu0 %v1152
        %v1195 = vpop.f32.mrf.mxu0
        %v1196 = vadd.f32 %v1128, %v1195
        %1197 = vmatmul.f32.gmra.mxu0 %v1155
        %v1198 = vpop.f32.mrf.mxu0
        %v1199 = vadd.f32 %v1131, %v1198
        %1200 = vmatmul.f32.gmra.mxu0 %v1158
        %v1201 = vpop.f32.mrf.mxu0
        %v1202 = vadd.f32 %v1134, %v1201
        %1203 = vdwg.mxu0
        %s1204 = scalar_lea.vmem [#allocation4], 256
        %v1205 = vld [vmem:[%s1204] sm:$0xff]
        %v1206 = vld [vmem:[%s1204 + $0x8] sm:$0xff]
        %v1207 = vld [vmem:[%s1204 + $0x10] sm:$0xff]
        %v1208 = vld [vmem:[%s1204 + $0x18] sm:$0xff]
        %v1209 = vld [vmem:[%s1204 + $0x20] sm:$0xff]
        %v1210 = vld [vmem:[%s1204 + $0x28] sm:$0xff]
        %v1211 = vld [vmem:[%s1204 + $0x30] sm:$0xff]
        %v1212 = vld [vmem:[%s1204 + $0x38] sm:$0xff]
        %v1213 = vld [vmem:[%s1204 + $0x40] sm:$0xff]
        %v1214 = vld [vmem:[%s1204 + $0x48] sm:$0xff]
        %v1215 = vld [vmem:[%s1204 + $0x50] sm:$0xff]
        %v1216 = vld [vmem:[%s1204 + $0x58] sm:$0xff]
        %v1217 = vld [vmem:[%s1204 + $0x60] sm:$0xff]
        %v1218 = vld [vmem:[%s1204 + $0x68] sm:$0xff]
        %v1219 = vld [vmem:[%s1204 + $0x70] sm:$0xff]
        %v1220 = vld [vmem:[%s1204 + $0x78] sm:$0xff]
        %1221 = vmatpush.msra.mxu0 %v849
        %1222 = vmatpush.msra.mxu0 %v848
        %1223 = vmatpush.msra.mxu0 %v847
        %1224 = vmatpush.msra.mxu0 %v846
        %1225 = vmatpush.msra.mxu0 %v845
        %1226 = vmatpush.msra.mxu0 %v844
        %1227 = vmatpush.msra.mxu0 %v843
        %1228 = vmatpush.msra.mxu0 %v842
        %1229 = vmatpush.msra.mxu0 %v841
        %1230 = vmatpush.msra.mxu0 %v840
        %1231 = vmatpush.msra.mxu0 %v839
        %1232 = vmatpush.msra.mxu0 %v838
        %1233 = vmatpush.msra.mxu0 %v837
        %1234 = vmatpush.msra.mxu0 %v836
        %1235 = vmatpush.msra.mxu0 %v835
        %1236 = vmatpush.msra.mxu0 %v834
        %1237 = vmatmul.f32.gmra.mxu0 %v1205
        %v1238 = vpop.f32.mrf.mxu0
        %v1239 = vadd.f32 0.0, %v1238
        %1240 = vmatmul.f32.gmra.mxu0 %v1207
        %v1241 = vpop.f32.mrf.mxu0
        %v1242 = vadd.f32 0.0, %v1241
        %1243 = vmatmul.f32.gmra.mxu0 %v1209
        %v1244 = vpop.f32.mrf.mxu0
        %v1245 = vadd.f32 0.0, %v1244
        %1246 = vmatmul.f32.gmra.mxu0 %v1211
        %v1247 = vpop.f32.mrf.mxu0
        %v1248 = vadd.f32 0.0, %v1247
        %1249 = vmatmul.f32.gmra.mxu0 %v1213
        %v1250 = vpop.f32.mrf.mxu0
        %v1251 = vadd.f32 0.0, %v1250
        %1252 = vmatmul.f32.gmra.mxu0 %v1215
        %v1253 = vpop.f32.mrf.mxu0
        %v1254 = vadd.f32 0.0, %v1253
        %1255 = vmatmul.f32.gmra.mxu0 %v1217
        %v1256 = vpop.f32.mrf.mxu0
        %v1257 = vadd.f32 0.0, %v1256
        %1258 = vmatmul.f32.gmra.mxu0 %v1219
        %v1259 = vpop.f32.mrf.mxu0
        %v1260 = vadd.f32 0.0, %v1259
        %1261 = vdwg.mxu0
        %1262 = vmatpush.msra.mxu0 %v865
        %1263 = vmatpush.msra.mxu0 %v864
        %1264 = vmatpush.msra.mxu0 %v863
        %1265 = vmatpush.msra.mxu0 %v862
        %1266 = vmatpush.msra.mxu0 %v861
        %1267 = vmatpush.msra.mxu0 %v860
        %1268 = vmatpush.msra.mxu0 %v859
        %1269 = vmatpush.msra.mxu0 %v858
        %1270 = vmatpush.msra.mxu0 %v857
        %1271 = vmatpush.msra.mxu0 %v856
        %1272 = vmatpush.msra.mxu0 %v855
        %1273 = vmatpush.msra.mxu0 %v854
        %1274 = vmatpush.msra.mxu0 %v853
        %1275 = vmatpush.msra.mxu0 %v852
        %1276 = vmatpush.msra.mxu0 %v851
        %1277 = vmatpush.msra.mxu0 %v850
        %1278 = vmatmul.f32.gmra.mxu0 %v1206
        %v1279 = vpop.f32.mrf.mxu0
        %v1280 = vadd.f32 %v1239, %v1279
        %1281 = vmatmul.f32.gmra.mxu0 %v1208
        %v1282 = vpop.f32.mrf.mxu0
        %v1283 = vadd.f32 %v1242, %v1282
        %1284 = vmatmul.f32.gmra.mxu0 %v1210
        %v1285 = vpop.f32.mrf.mxu0
        %v1286 = vadd.f32 %v1245, %v1285
        %1287 = vmatmul.f32.gmra.mxu0 %v1212
        %v1288 = vpop.f32.mrf.mxu0
        %v1289 = vadd.f32 %v1248, %v1288
        %1290 = vmatmul.f32.gmra.mxu0 %v1214
        %v1291 = vpop.f32.mrf.mxu0
        %v1292 = vadd.f32 %v1251, %v1291
        %1293 = vmatmul.f32.gmra.mxu0 %v1216
        %v1294 = vpop.f32.mrf.mxu0
        %v1295 = vadd.f32 %v1254, %v1294
        %1296 = vmatmul.f32.gmra.mxu0 %v1218
        %v1297 = vpop.f32.mrf.mxu0
        %v1298 = vadd.f32 %v1257, %v1297
        %1299 = vmatmul.f32.gmra.mxu0 %v1220
        %v1300 = vpop.f32.mrf.mxu0
        %v1301 = vadd.f32 %v1260, %v1300
        %1302 = vdwg.mxu0
        %s1303 = scalar_lea.vmem %s2, 16
        %v1304 = vld [vmem:[%s1303] sm:$0x1f]
        %v1306 = vsel %vm1066, %v1280, 0
        %v1309 = vsel %vm1066, %v1283, 0
        %v1312 = vsel %vm1066, %v1286, 0
        %v1315 = vsel %vm1066, %v1289, 0
        %v1318 = vsel %vm1066, %v1292, 0
        %v1321 = vsel %vm1066, %v1295, 0
        %v1324 = vsel %vm1066, %v1298, 0
        %v1327 = vsel %vm1066, %v1301, 0
        %v1330 = vsel %vm1091, %v1304, 0
        %1332 = vmatpush.msra.mxu0 0.0
        %1333 = vmatpush.msra.mxu0 0.0
        %1334 = vmatpush.msra.mxu0 0.0
        %1335 = vmatpush.msra.mxu0 0.0
        %1336 = vmatpush.msra.mxu0 0.0
        %1337 = vmatpush.msra.mxu0 0.0
        %1338 = vmatpush.msra.mxu0 0.0
        %1339 = vmatpush.msra.mxu0 0.0
        %1340 = vmatpush.msra.mxu0 0.0
        %1341 = vmatpush.msra.mxu0 0.0
        %1342 = vmatpush.msra.mxu0 0.0
        %1343 = vmatpush.msra.mxu0 0.0
        %1344 = vmatpush.msra.mxu0 0.0
        %1345 = vmatpush.msra.mxu0 0.0
        %1346 = vmatpush.msra.mxu0 0.0
        %1347 = vmatpush.msra.mxu0 %v1330
        %1348 = vmatmul.f32.gmra.mxu0 %v1306
        %v1349 = vpop.f32.mrf.mxu0
        %v1350 = vadd.f32 0.0, %v1349
        %1351 = vmatmul.f32.gmra.mxu0 %v1309
        %v1352 = vpop.f32.mrf.mxu0
        %v1353 = vadd.f32 0.0, %v1352
        %1354 = vmatmul.f32.gmra.mxu0 %v1312
        %v1355 = vpop.f32.mrf.mxu0
        %v1356 = vadd.f32 0.0, %v1355
        %1357 = vmatmul.f32.gmra.mxu0 %v1315
        %v1358 = vpop.f32.mrf.mxu0
        %v1359 = vadd.f32 0.0, %v1358
        %1360 = vmatmul.f32.gmra.mxu0 %v1318
        %v1361 = vpop.f32.mrf.mxu0
        %v1362 = vadd.f32 0.0, %v1361
        %1363 = vmatmul.f32.gmra.mxu0 %v1321
        %v1364 = vpop.f32.mrf.mxu0
        %v1365 = vadd.f32 0.0, %v1364
        %1366 = vmatmul.f32.gmra.mxu0 %v1324
        %v1367 = vpop.f32.mrf.mxu0
        %v1368 = vadd.f32 0.0, %v1367
        %1369 = vmatmul.f32.gmra.mxu0 %v1327
        %v1370 = vpop.f32.mrf.mxu0
        %v1371 = vadd.f32 0.0, %v1370
        %1372 = vdwg.mxu0
        %v1373 = vadd.f32 %v1181, %v1350
        %v1374 = vadd.f32 %v1184, %v1353
        %v1375 = vadd.f32 %v1187, %v1356
        %v1376 = vadd.f32 %v1190, %v1359
        %v1377 = vadd.f32 %v1193, %v1362
        %v1378 = vadd.f32 %v1196, %v1365
        %v1379 = vadd.f32 %v1199, %v1368
        %v1380 = vadd.f32 %v1202, %v1371
        %s1381 = scalar_lea.vmem [#allocation4], 384
        %v1382 = vld [vmem:[%s1381] sm:$0xff]
        %v1383 = vld [vmem:[%s1381 + $0x8] sm:$0xff]
        %v1384 = vld [vmem:[%s1381 + $0x10] sm:$0xff]
        %v1385 = vld [vmem:[%s1381 + $0x18] sm:$0xff]
        %v1386 = vld [vmem:[%s1381 + $0x20] sm:$0xff]
        %v1387 = vld [vmem:[%s1381 + $0x28] sm:$0xff]
        %v1388 = vld [vmem:[%s1381 + $0x30] sm:$0xff]
        %v1389 = vld [vmem:[%s1381 + $0x38] sm:$0xff]
        %v1390 = vld [vmem:[%s1381 + $0x40] sm:$0xff]
        %v1391 = vld [vmem:[%s1381 + $0x48] sm:$0xff]
        %v1392 = vld [vmem:[%s1381 + $0x50] sm:$0xff]
        %v1393 = vld [vmem:[%s1381 + $0x58] sm:$0xff]
        %v1394 = vld [vmem:[%s1381 + $0x60] sm:$0xff]
        %v1395 = vld [vmem:[%s1381 + $0x68] sm:$0xff]
        %v1396 = vld [vmem:[%s1381 + $0x70] sm:$0xff]
        %v1397 = vld [vmem:[%s1381 + $0x78] sm:$0xff]
        %1398 = vmatpush.msra.mxu0 %v849
        %1399 = vmatpush.msra.mxu0 %v848
        %1400 = vmatpush.msra.mxu0 %v847
        %1401 = vmatpush.msra.mxu0 %v846
        %1402 = vmatpush.msra.mxu0 %v845
        %1403 = vmatpush.msra.mxu0 %v844
        %1404 = vmatpush.msra.mxu0 %v843
        %1405 = vmatpush.msra.mxu0 %v842
        %1406 = vmatpush.msra.mxu0 %v841
        %1407 = vmatpush.msra.mxu0 %v840
        %1408 = vmatpush.msra.mxu0 %v839
        %1409 = vmatpush.msra.mxu0 %v838
        %1410 = vmatpush.msra.mxu0 %v837
        %1411 = vmatpush.msra.mxu0 %v836
        %1412 = vmatpush.msra.mxu0 %v835
        %1413 = vmatpush.msra.mxu0 %v834
        %1414 = vmatmul.f32.gmra.mxu0 %v1382
        %v1415 = vpop.f32.mrf.mxu0
        %v1416 = vadd.f32 0.0, %v1415
        %1417 = vmatmul.f32.gmra.mxu0 %v1384
        %v1418 = vpop.f32.mrf.mxu0
        %v1419 = vadd.f32 0.0, %v1418
        %1420 = vmatmul.f32.gmra.mxu0 %v1386
        %v1421 = vpop.f32.mrf.mxu0
        %v1422 = vadd.f32 0.0, %v1421
        %1423 = vmatmul.f32.gmra.mxu0 %v1388
        %v1424 = vpop.f32.mrf.mxu0
        %v1425 = vadd.f32 0.0, %v1424
        %1426 = vmatmul.f32.gmra.mxu0 %v1390
        %v1427 = vpop.f32.mrf.mxu0
        %v1428 = vadd.f32 0.0, %v1427
        %1429 = vmatmul.f32.gmra.mxu0 %v1392
        %v1430 = vpop.f32.mrf.mxu0
        %v1431 = vadd.f32 0.0, %v1430
        %1432 = vmatmul.f32.gmra.mxu0 %v1394
        %v1433 = vpop.f32.mrf.mxu0
        %v1434 = vadd.f32 0.0, %v1433
        %1435 = vmatmul.f32.gmra.mxu0 %v1396
        %v1436 = vpop.f32.mrf.mxu0
        %v1437 = vadd.f32 0.0, %v1436
        %1438 = vdwg.mxu0
        %1439 = vmatpush.msra.mxu0 %v865
        %1440 = vmatpush.msra.mxu0 %v864
        %1441 = vmatpush.msra.mxu0 %v863
        %1442 = vmatpush.msra.mxu0 %v862
        %1443 = vmatpush.msra.mxu0 %v861
        %1444 = vmatpush.msra.mxu0 %v860
        %1445 = vmatpush.msra.mxu0 %v859
        %1446 = vmatpush.msra.mxu0 %v858
        %1447 = vmatpush.msra.mxu0 %v857
        %1448 = vmatpush.msra.mxu0 %v856
        %1449 = vmatpush.msra.mxu0 %v855
        %1450 = vmatpush.msra.mxu0 %v854
        %1451 = vmatpush.msra.mxu0 %v853
        %1452 = vmatpush.msra.mxu0 %v852
        %1453 = vmatpush.msra.mxu0 %v851
        %1454 = vmatpush.msra.mxu0 %v850
        %1455 = vmatmul.f32.gmra.mxu0 %v1383
        %v1456 = vpop.f32.mrf.mxu0
        %v1457 = vadd.f32 %v1416, %v1456
        %1458 = vmatmul.f32.gmra.mxu0 %v1385
        %v1459 = vpop.f32.mrf.mxu0
        %v1460 = vadd.f32 %v1419, %v1459
        %1461 = vmatmul.f32.gmra.mxu0 %v1387
        %v1462 = vpop.f32.mrf.mxu0
        %v1463 = vadd.f32 %v1422, %v1462
        %1464 = vmatmul.f32.gmra.mxu0 %v1389
        %v1465 = vpop.f32.mrf.mxu0
        %v1466 = vadd.f32 %v1425, %v1465
        %1467 = vmatmul.f32.gmra.mxu0 %v1391
        %v1468 = vpop.f32.mrf.mxu0
        %v1469 = vadd.f32 %v1428, %v1468
        %1470 = vmatmul.f32.gmra.mxu0 %v1393
        %v1471 = vpop.f32.mrf.mxu0
        %v1472 = vadd.f32 %v1431, %v1471
        %1473 = vmatmul.f32.gmra.mxu0 %v1395
        %v1474 = vpop.f32.mrf.mxu0
        %v1475 = vadd.f32 %v1434, %v1474
        %1476 = vmatmul.f32.gmra.mxu0 %v1397
        %v1477 = vpop.f32.mrf.mxu0
        %v1478 = vadd.f32 %v1437, %v1477
        %1479 = vdwg.mxu0
        %s1480 = scalar_lea.vmem %s2, 24
        %v1481 = vld [vmem:[%s1480] sm:$0x1f]
        %v1483 = vsel %vm1066, %v1457, 0
        %v1486 = vsel %vm1066, %v1460, 0
        %v1489 = vsel %vm1066, %v1463, 0
        %v1492 = vsel %vm1066, %v1466, 0
        %v1495 = vsel %vm1066, %v1469, 0
        %v1498 = vsel %vm1066, %v1472, 0
        %v1501 = vsel %vm1066, %v1475, 0
        %v1504 = vsel %vm1066, %v1478, 0
        %v1507 = vsel %vm1091, %v1481, 0
        %1509 = vmatpush.msra.mxu0 0.0
        %1510 = vmatpush.msra.mxu0 0.0
        %1511 = vmatpush.msra.mxu0 0.0
        %1512 = vmatpush.msra.mxu0 0.0
        %1513 = vmatpush.msra.mxu0 0.0
        %1514 = vmatpush.msra.mxu0 0.0
        %1515 = vmatpush.msra.mxu0 0.0
        %1516 = vmatpush.msra.mxu0 0.0
        %1517 = vmatpush.msra.mxu0 0.0
        %1518 = vmatpush.msra.mxu0 0.0
        %1519 = vmatpush.msra.mxu0 0.0
        %1520 = vmatpush.msra.mxu0 0.0
        %1521 = vmatpush.msra.mxu0 0.0
        %1522 = vmatpush.msra.mxu0 0.0
        %1523 = vmatpush.msra.mxu0 0.0
        %1524 = vmatpush.msra.mxu0 %v1507
        %1525 = vmatmul.f32.gmra.mxu0 %v1483
        %v1526 = vpop.f32.mrf.mxu0
        %v1527 = vadd.f32 0.0, %v1526
        %1528 = vmatmul.f32.gmra.mxu0 %v1486
        %v1529 = vpop.f32.mrf.mxu0
        %v1530 = vadd.f32 0.0, %v1529
        %1531 = vmatmul.f32.gmra.mxu0 %v1489
        %v1532 = vpop.f32.mrf.mxu0
        %v1533 = vadd.f32 0.0, %v1532
        %1534 = vmatmul.f32.gmra.mxu0 %v1492
        %v1535 = vpop.f32.mrf.mxu0
        %v1536 = vadd.f32 0.0, %v1535
        %1537 = vmatmul.f32.gmra.mxu0 %v1495
        %v1538 = vpop.f32.mrf.mxu0
        %v1539 = vadd.f32 0.0, %v1538
        %1540 = vmatmul.f32.gmra.mxu0 %v1498
        %v1541 = vpop.f32.mrf.mxu0
        %v1542 = vadd.f32 0.0, %v1541
        %1543 = vmatmul.f32.gmra.mxu0 %v1501
        %v1544 = vpop.f32.mrf.mxu0
        %v1545 = vadd.f32 0.0, %v1544
        %1546 = vmatmul.f32.gmra.mxu0 %v1504
        %v1547 = vpop.f32.mrf.mxu0
        %v1548 = vadd.f32 0.0, %v1547
        %1549 = vdwg.mxu0
        %v1550 = vadd.f32 %v1373, %v1527
        %v1551 = vadd.f32 %v1374, %v1530
        %v1552 = vadd.f32 %v1375, %v1533
        %v1553 = vadd.f32 %v1376, %v1536
        %v1554 = vadd.f32 %v1377, %v1539
        %v1555 = vadd.f32 %v1378, %v1542
        %v1556 = vadd.f32 %v1379, %v1545
        %v1557 = vadd.f32 %v1380, %v1548
        %s1558 = scalar_lea.vmem [#allocation4], 512
        %v1559 = vld [vmem:[%s1558] sm:$0xff]
        %v1560 = vld [vmem:[%s1558 + $0x8] sm:$0xff]
        %v1561 = vld [vmem:[%s1558 + $0x10] sm:$0xff]
        %v1562 = vld [vmem:[%s1558 + $0x18] sm:$0xff]
        %v1563 = vld [vmem:[%s1558 + $0x20] sm:$0xff]
        %v1564 = vld [vmem:[%s1558 + $0x28] sm:$0xff]
        %v1565 = vld [vmem:[%s1558 + $0x30] sm:$0xff]
        %v1566 = vld [vmem:[%s1558 + $0x38] sm:$0xff]
        %v1567 = vld [vmem:[%s1558 + $0x40] sm:$0xff]
        %v1568 = vld [vmem:[%s1558 + $0x48] sm:$0xff]
        %v1569 = vld [vmem:[%s1558 + $0x50] sm:$0xff]
        %v1570 = vld [vmem:[%s1558 + $0x58] sm:$0xff]
        %v1571 = vld [vmem:[%s1558 + $0x60] sm:$0xff]
        %v1572 = vld [vmem:[%s1558 + $0x68] sm:$0xff]
        %v1573 = vld [vmem:[%s1558 + $0x70] sm:$0xff]
        %v1574 = vld [vmem:[%s1558 + $0x78] sm:$0xff]
        %1575 = vmatpush.msra.mxu0 %v849
        %1576 = vmatpush.msra.mxu0 %v848
        %1577 = vmatpush.msra.mxu0 %v847
        %1578 = vmatpush.msra.mxu0 %v846
        %1579 = vmatpush.msra.mxu0 %v845
        %1580 = vmatpush.msra.mxu0 %v844
        %1581 = vmatpush.msra.mxu0 %v843
        %1582 = vmatpush.msra.mxu0 %v842
        %1583 = vmatpush.msra.mxu0 %v841
        %1584 = vmatpush.msra.mxu0 %v840
        %1585 = vmatpush.msra.mxu0 %v839
        %1586 = vmatpush.msra.mxu0 %v838
        %1587 = vmatpush.msra.mxu0 %v837
        %1588 = vmatpush.msra.mxu0 %v836
        %1589 = vmatpush.msra.mxu0 %v835
        %1590 = vmatpush.msra.mxu0 %v834
        %1591 = vmatmul.f32.gmra.mxu0 %v1559
        %v1592 = vpop.f32.mrf.mxu0
        %v1593 = vadd.f32 0.0, %v1592
        %1594 = vmatmul.f32.gmra.mxu0 %v1561
        %v1595 = vpop.f32.mrf.mxu0
        %v1596 = vadd.f32 0.0, %v1595
        %1597 = vmatmul.f32.gmra.mxu0 %v1563
        %v1598 = vpop.f32.mrf.mxu0
        %v1599 = vadd.f32 0.0, %v1598
        %1600 = vmatmul.f32.gmra.mxu0 %v1565
        %v1601 = vpop.f32.mrf.mxu0
        %v1602 = vadd.f32 0.0, %v1601
        %1603 = vmatmul.f32.gmra.mxu0 %v1567
        %v1604 = vpop.f32.mrf.mxu0
        %v1605 = vadd.f32 0.0, %v1604
        %1606 = vmatmul.f32.gmra.mxu0 %v1569
        %v1607 = vpop.f32.mrf.mxu0
        %v1608 = vadd.f32 0.0, %v1607
        %1609 = vmatmul.f32.gmra.mxu0 %v1571
        %v1610 = vpop.f32.mrf.mxu0
        %v1611 = vadd.f32 0.0, %v1610
        %1612 = vmatmul.f32.gmra.mxu0 %v1573
        %v1613 = vpop.f32.mrf.mxu0
        %v1614 = vadd.f32 0.0, %v1613
        %1615 = vdwg.mxu0
        %1616 = vmatpush.msra.mxu0 %v865
        %1617 = vmatpush.msra.mxu0 %v864
        %1618 = vmatpush.msra.mxu0 %v863
        %1619 = vmatpush.msra.mxu0 %v862
        %1620 = vmatpush.msra.mxu0 %v861
        %1621 = vmatpush.msra.mxu0 %v860
        %1622 = vmatpush.msra.mxu0 %v859
        %1623 = vmatpush.msra.mxu0 %v858
        %1624 = vmatpush.msra.mxu0 %v857
        %1625 = vmatpush.msra.mxu0 %v856
        %1626 = vmatpush.msra.mxu0 %v855
        %1627 = vmatpush.msra.mxu0 %v854
        %1628 = vmatpush.msra.mxu0 %v853
        %1629 = vmatpush.msra.mxu0 %v852
        %1630 = vmatpush.msra.mxu0 %v851
        %1631 = vmatpush.msra.mxu0 %v850
        %1632 = vmatmul.f32.gmra.mxu0 %v1560
        %v1633 = vpop.f32.mrf.mxu0
        %v1634 = vadd.f32 %v1593, %v1633
        %1635 = vmatmul.f32.gmra.mxu0 %v1562
        %v1636 = vpop.f32.mrf.mxu0
        %v1637 = vadd.f32 %v1596, %v1636
        %1638 = vmatmul.f32.gmra.mxu0 %v1564
        %v1639 = vpop.f32.mrf.mxu0
        %v1640 = vadd.f32 %v1599, %v1639
        %1641 = vmatmul.f32.gmra.mxu0 %v1566
        %v1642 = vpop.f32.mrf.mxu0
        %v1643 = vadd.f32 %v1602, %v1642
        %1644 = vmatmul.f32.gmra.mxu0 %v1568
        %v1645 = vpop.f32.mrf.mxu0
        %v1646 = vadd.f32 %v1605, %v1645
        %1647 = vmatmul.f32.gmra.mxu0 %v1570
        %v1648 = vpop.f32.mrf.mxu0
        %v1649 = vadd.f32 %v1608, %v1648
        %1650 = vmatmul.f32.gmra.mxu0 %v1572
        %v1651 = vpop.f32.mrf.mxu0
        %v1652 = vadd.f32 %v1611, %v1651
        %1653 = vmatmul.f32.gmra.mxu0 %v1574
        %v1654 = vpop.f32.mrf.mxu0
        %v1655 = vadd.f32 %v1614, %v1654
        %1656 = vdwg.mxu0
        %s1657 = scalar_lea.vmem %s2, 32
        %v1658 = vld [vmem:[%s1657] sm:$0x1f]
        %v1660 = vsel %vm1066, %v1634, 0
        %v1663 = vsel %vm1066, %v1637, 0
        %v1666 = vsel %vm1066, %v1640, 0
        %v1669 = vsel %vm1066, %v1643, 0
        %v1672 = vsel %vm1066, %v1646, 0
        %v1675 = vsel %vm1066, %v1649, 0
        %v1678 = vsel %vm1066, %v1652, 0
        %v1681 = vsel %vm1066, %v1655, 0
        %v1684 = vsel %vm1091, %v1658, 0
        %1686 = vmatpush.msra.mxu0 0.0
        %1687 = vmatpush.msra.mxu0 0.0
        %1688 = vmatpush.msra.mxu0 0.0
        %1689 = vmatpush.msra.mxu0 0.0
        %1690 = vmatpush.msra.mxu0 0.0
        %1691 = vmatpush.msra.mxu0 0.0
        %1692 = vmatpush.msra.mxu0 0.0
        %1693 = vmatpush.msra.mxu0 0.0
        %1694 = vmatpush.msra.mxu0 0.0
        %1695 = vmatpush.msra.mxu0 0.0
        %1696 = vmatpush.msra.mxu0 0.0
        %1697 = vmatpush.msra.mxu0 0.0
        %1698 = vmatpush.msra.mxu0 0.0
        %1699 = vmatpush.msra.mxu0 0.0
        %1700 = vmatpush.msra.mxu0 0.0
        %1701 = vmatpush.msra.mxu0 %v1684
        %1702 = vmatmul.f32.gmra.mxu0 %v1660
        %v1703 = vpop.f32.mrf.mxu0
        %v1704 = vadd.f32 0.0, %v1703
        %1705 = vmatmul.f32.gmra.mxu0 %v1663
        %v1706 = vpop.f32.mrf.mxu0
        %v1707 = vadd.f32 0.0, %v1706
        %1708 = vmatmul.f32.gmra.mxu0 %v1666
        %v1709 = vpop.f32.mrf.mxu0
        %v1710 = vadd.f32 0.0, %v1709
        %1711 = vmatmul.f32.gmra.mxu0 %v1669
        %v1712 = vpop.f32.mrf.mxu0
        %v1713 = vadd.f32 0.0, %v1712
        %1714 = vmatmul.f32.gmra.mxu0 %v1672
        %v1715 = vpop.f32.mrf.mxu0
        %v1716 = vadd.f32 0.0, %v1715
        %1717 = vmatmul.f32.gmra.mxu0 %v1675
        %v1718 = vpop.f32.mrf.mxu0
        %v1719 = vadd.f32 0.0, %v1718
        %1720 = vmatmul.f32.gmra.mxu0 %v1678
        %v1721 = vpop.f32.mrf.mxu0
        %v1722 = vadd.f32 0.0, %v1721
        %1723 = vmatmul.f32.gmra.mxu0 %v1681
        %v1724 = vpop.f32.mrf.mxu0
        %v1725 = vadd.f32 0.0, %v1724
        %1726 = vdwg.mxu0
        %v1727 = vadd.f32 %v1550, %v1704
        %v1728 = vadd.f32 %v1551, %v1707
        %v1729 = vadd.f32 %v1552, %v1710
        %v1730 = vadd.f32 %v1553, %v1713
        %v1731 = vadd.f32 %v1554, %v1716
        %v1732 = vadd.f32 %v1555, %v1719
        %v1733 = vadd.f32 %v1556, %v1722
        %v1734 = vadd.f32 %v1557, %v1725
        %s1735 = scalar_lea.vmem [#allocation4], 640
        %v1736 = vld [vmem:[%s1735] sm:$0xff]
        %v1737 = vld [vmem:[%s1735 + $0x8] sm:$0xff]
        %v1738 = vld [vmem:[%s1735 + $0x10] sm:$0xff]
        %v1739 = vld [vmem:[%s1735 + $0x18] sm:$0xff]
        %v1740 = vld [vmem:[%s1735 + $0x20] sm:$0xff]
        %v1741 = vld [vmem:[%s1735 + $0x28] sm:$0xff]
        %v1742 = vld [vmem:[%s1735 + $0x30] sm:$0xff]
        %v1743 = vld [vmem:[%s1735 + $0x38] sm:$0xff]
        %v1744 = vld [vmem:[%s1735 + $0x40] sm:$0xff]
        %v1745 = vld [vmem:[%s1735 + $0x48] sm:$0xff]
        %v1746 = vld [vmem:[%s1735 + $0x50] sm:$0xff]
        %v1747 = vld [vmem:[%s1735 + $0x58] sm:$0xff]
        %v1748 = vld [vmem:[%s1735 + $0x60] sm:$0xff]
        %v1749 = vld [vmem:[%s1735 + $0x68] sm:$0xff]
        %v1750 = vld [vmem:[%s1735 + $0x70] sm:$0xff]
        %v1751 = vld [vmem:[%s1735 + $0x78] sm:$0xff]
        %1752 = vmatpush.msra.mxu0 %v849
        %1753 = vmatpush.msra.mxu0 %v848
        %1754 = vmatpush.msra.mxu0 %v847
        %1755 = vmatpush.msra.mxu0 %v846
        %1756 = vmatpush.msra.mxu0 %v845
        %1757 = vmatpush.msra.mxu0 %v844
        %1758 = vmatpush.msra.mxu0 %v843
        %1759 = vmatpush.msra.mxu0 %v842
        %1760 = vmatpush.msra.mxu0 %v841
        %1761 = vmatpush.msra.mxu0 %v840
        %1762 = vmatpush.msra.mxu0 %v839
        %1763 = vmatpush.msra.mxu0 %v838
        %1764 = vmatpush.msra.mxu0 %v837
        %1765 = vmatpush.msra.mxu0 %v836
        %1766 = vmatpush.msra.mxu0 %v835
        %1767 = vmatpush.msra.mxu0 %v834
        %1768 = vmatmul.f32.gmra.mxu0 %v1736
        %v1769 = vpop.f32.mrf.mxu0
        %v1770 = vadd.f32 0.0, %v1769
        %1771 = vmatmul.f32.gmra.mxu0 %v1738
        %v1772 = vpop.f32.mrf.mxu0
        %v1773 = vadd.f32 0.0, %v1772
        %1774 = vmatmul.f32.gmra.mxu0 %v1740
        %v1775 = vpop.f32.mrf.mxu0
        %v1776 = vadd.f32 0.0, %v1775
        %1777 = vmatmul.f32.gmra.mxu0 %v1742
        %v1778 = vpop.f32.mrf.mxu0
        %v1779 = vadd.f32 0.0, %v1778
        %1780 = vmatmul.f32.gmra.mxu0 %v1744
        %v1781 = vpop.f32.mrf.mxu0
        %v1782 = vadd.f32 0.0, %v1781
        %1783 = vmatmul.f32.gmra.mxu0 %v1746
        %v1784 = vpop.f32.mrf.mxu0
        %v1785 = vadd.f32 0.0, %v1784
        %1786 = vmatmul.f32.gmra.mxu0 %v1748
        %v1787 = vpop.f32.mrf.mxu0
        %v1788 = vadd.f32 0.0, %v1787
        %1789 = vmatmul.f32.gmra.mxu0 %v1750
        %v1790 = vpop.f32.mrf.mxu0
        %v1791 = vadd.f32 0.0, %v1790
        %1792 = vdwg.mxu0
        %1793 = vmatpush.msra.mxu0 %v865
        %1794 = vmatpush.msra.mxu0 %v864
        %1795 = vmatpush.msra.mxu0 %v863
        %1796 = vmatpush.msra.mxu0 %v862
        %1797 = vmatpush.msra.mxu0 %v861
        %1798 = vmatpush.msra.mxu0 %v860
        %1799 = vmatpush.msra.mxu0 %v859
        %1800 = vmatpush.msra.mxu0 %v858
        %1801 = vmatpush.msra.mxu0 %v857
        %1802 = vmatpush.msra.mxu0 %v856
        %1803 = vmatpush.msra.mxu0 %v855
        %1804 = vmatpush.msra.mxu0 %v854
        %1805 = vmatpush.msra.mxu0 %v853
        %1806 = vmatpush.msra.mxu0 %v852
        %1807 = vmatpush.msra.mxu0 %v851
        %1808 = vmatpush.msra.mxu0 %v850
        %1809 = vmatmul.f32.gmra.mxu0 %v1737
        %v1810 = vpop.f32.mrf.mxu0
        %v1811 = vadd.f32 %v1770, %v1810
        %1812 = vmatmul.f32.gmra.mxu0 %v1739
        %v1813 = vpop.f32.mrf.mxu0
        %v1814 = vadd.f32 %v1773, %v1813
        %1815 = vmatmul.f32.gmra.mxu0 %v1741
        %v1816 = vpop.f32.mrf.mxu0
        %v1817 = vadd.f32 %v1776, %v1816
        %1818 = vmatmul.f32.gmra.mxu0 %v1743
        %v1819 = vpop.f32.mrf.mxu0
        %v1820 = vadd.f32 %v1779, %v1819
        %1821 = vmatmul.f32.gmra.mxu0 %v1745
        %v1822 = vpop.f32.mrf.mxu0
        %v1823 = vadd.f32 %v1782, %v1822
        %1824 = vmatmul.f32.gmra.mxu0 %v1747
        %v1825 = vpop.f32.mrf.mxu0
        %v1826 = vadd.f32 %v1785, %v1825
        %1827 = vmatmul.f32.gmra.mxu0 %v1749
        %v1828 = vpop.f32.mrf.mxu0
        %v1829 = vadd.f32 %v1788, %v1828
        %1830 = vmatmul.f32.gmra.mxu0 %v1751
        %v1831 = vpop.f32.mrf.mxu0
        %v1832 = vadd.f32 %v1791, %v1831
        %1833 = vdwg.mxu0
        %s1834 = scalar_lea.vmem %s2, 40
        %v1835 = vld [vmem:[%s1834] sm:$0x1f]
        %v1837 = vsel %vm1066, %v1811, 0
        %v1840 = vsel %vm1066, %v1814, 0
        %v1843 = vsel %vm1066, %v1817, 0
        %v1846 = vsel %vm1066, %v1820, 0
        %v1849 = vsel %vm1066, %v1823, 0
        %v1852 = vsel %vm1066, %v1826, 0
        %v1855 = vsel %vm1066, %v1829, 0
        %v1858 = vsel %vm1066, %v1832, 0
        %v1861 = vsel %vm1091, %v1835, 0
        %1863 = vmatpush.msra.mxu0 0.0
        %1864 = vmatpush.msra.mxu0 0.0
        %1865 = vmatpush.msra.mxu0 0.0
        %1866 = vmatpush.msra.mxu0 0.0
        %1867 = vmatpush.msra.mxu0 0.0
        %1868 = vmatpush.msra.mxu0 0.0
        %1869 = vmatpush.msra.mxu0 0.0
        %1870 = vmatpush.msra.mxu0 0.0
        %1871 = vmatpush.msra.mxu0 0.0
        %1872 = vmatpush.msra.mxu0 0.0
        %1873 = vmatpush.msra.mxu0 0.0
        %1874 = vmatpush.msra.mxu0 0.0
        %1875 = vmatpush.msra.mxu0 0.0
        %1876 = vmatpush.msra.mxu0 0.0
        %1877 = vmatpush.msra.mxu0 0.0
        %1878 = vmatpush.msra.mxu0 %v1861
        %1879 = vmatmul.f32.gmra.mxu0 %v1837
        %v1880 = vpop.f32.mrf.mxu0
        %v1881 = vadd.f32 0.0, %v1880
        %1882 = vmatmul.f32.gmra.mxu0 %v1840
        %v1883 = vpop.f32.mrf.mxu0
        %v1884 = vadd.f32 0.0, %v1883
        %1885 = vmatmul.f32.gmra.mxu0 %v1843
        %v1886 = vpop.f32.mrf.mxu0
        %v1887 = vadd.f32 0.0, %v1886
        %1888 = vmatmul.f32.gmra.mxu0 %v1846
        %v1889 = vpop.f32.mrf.mxu0
        %v1890 = vadd.f32 0.0, %v1889
        %1891 = vmatmul.f32.gmra.mxu0 %v1849
        %v1892 = vpop.f32.mrf.mxu0
        %v1893 = vadd.f32 0.0, %v1892
        %1894 = vmatmul.f32.gmra.mxu0 %v1852
        %v1895 = vpop.f32.mrf.mxu0
        %v1896 = vadd.f32 0.0, %v1895
        %1897 = vmatmul.f32.gmra.mxu0 %v1855
        %v1898 = vpop.f32.mrf.mxu0
        %v1899 = vadd.f32 0.0, %v1898
        %1900 = vmatmul.f32.gmra.mxu0 %v1858
        %v1901 = vpop.f32.mrf.mxu0
        %v1902 = vadd.f32 0.0, %v1901
        %1903 = vdwg.mxu0
        %v1904 = vadd.f32 %v1727, %v1881
        %v1905 = vadd.f32 %v1728, %v1884
        %v1906 = vadd.f32 %v1729, %v1887
        %v1907 = vadd.f32 %v1730, %v1890
        %v1908 = vadd.f32 %v1731, %v1893
        %v1909 = vadd.f32 %v1732, %v1896
        %v1910 = vadd.f32 %v1733, %v1899
        %v1911 = vadd.f32 %v1734, %v1902
        %s1912 = scalar_lea.vmem [#allocation4], 768
        %v1913 = vld [vmem:[%s1912] sm:$0xff]
        %v1914 = vld [vmem:[%s1912 + $0x8] sm:$0xff]
        %v1915 = vld [vmem:[%s1912 + $0x10] sm:$0xff]
        %v1916 = vld [vmem:[%s1912 + $0x18] sm:$0xff]
        %v1917 = vld [vmem:[%s1912 + $0x20] sm:$0xff]
        %v1918 = vld [vmem:[%s1912 + $0x28] sm:$0xff]
        %v1919 = vld [vmem:[%s1912 + $0x30] sm:$0xff]
        %v1920 = vld [vmem:[%s1912 + $0x38] sm:$0xff]
        %v1921 = vld [vmem:[%s1912 + $0x40] sm:$0xff]
        %v1922 = vld [vmem:[%s1912 + $0x48] sm:$0xff]
        %v1923 = vld [vmem:[%s1912 + $0x50] sm:$0xff]
        %v1924 = vld [vmem:[%s1912 + $0x58] sm:$0xff]
        %v1925 = vld [vmem:[%s1912 + $0x60] sm:$0xff]
        %v1926 = vld [vmem:[%s1912 + $0x68] sm:$0xff]
        %v1927 = vld [vmem:[%s1912 + $0x70] sm:$0xff]
        %v1928 = vld [vmem:[%s1912 + $0x78] sm:$0xff]
        %1929 = vmatpush.msra.mxu0 %v849
        %1930 = vmatpush.msra.mxu0 %v848
        %1931 = vmatpush.msra.mxu0 %v847
        %1932 = vmatpush.msra.mxu0 %v846
        %1933 = vmatpush.msra.mxu0 %v845
        %1934 = vmatpush.msra.mxu0 %v844
        %1935 = vmatpush.msra.mxu0 %v843
        %1936 = vmatpush.msra.mxu0 %v842
        %1937 = vmatpush.msra.mxu0 %v841
        %1938 = vmatpush.msra.mxu0 %v840
        %1939 = vmatpush.msra.mxu0 %v839
        %1940 = vmatpush.msra.mxu0 %v838
        %1941 = vmatpush.msra.mxu0 %v837
        %1942 = vmatpush.msra.mxu0 %v836
        %1943 = vmatpush.msra.mxu0 %v835
        %1944 = vmatpush.msra.mxu0 %v834
        %1945 = vmatmul.f32.gmra.mxu0 %v1913
        %v1946 = vpop.f32.mrf.mxu0
        %v1947 = vadd.f32 0.0, %v1946
        %1948 = vmatmul.f32.gmra.mxu0 %v1915
        %v1949 = vpop.f32.mrf.mxu0
        %v1950 = vadd.f32 0.0, %v1949
        %1951 = vmatmul.f32.gmra.mxu0 %v1917
        %v1952 = vpop.f32.mrf.mxu0
        %v1953 = vadd.f32 0.0, %v1952
        %1954 = vmatmul.f32.gmra.mxu0 %v1919
        %v1955 = vpop.f32.mrf.mxu0
        %v1956 = vadd.f32 0.0, %v1955
        %1957 = vmatmul.f32.gmra.mxu0 %v1921
        %v1958 = vpop.f32.mrf.mxu0
        %v1959 = vadd.f32 0.0, %v1958
        %1960 = vmatmul.f32.gmra.mxu0 %v1923
        %v1961 = vpop.f32.mrf.mxu0
        %v1962 = vadd.f32 0.0, %v1961
        %1963 = vmatmul.f32.gmra.mxu0 %v1925
        %v1964 = vpop.f32.mrf.mxu0
        %v1965 = vadd.f32 0.0, %v1964
        %1966 = vmatmul.f32.gmra.mxu0 %v1927
        %v1967 = vpop.f32.mrf.mxu0
        %v1968 = vadd.f32 0.0, %v1967
        %1969 = vdwg.mxu0
        %1970 = vmatpush.msra.mxu0 %v865
        %1971 = vmatpush.msra.mxu0 %v864
        %1972 = vmatpush.msra.mxu0 %v863
        %1973 = vmatpush.msra.mxu0 %v862
        %1974 = vmatpush.msra.mxu0 %v861
        %1975 = vmatpush.msra.mxu0 %v860
        %1976 = vmatpush.msra.mxu0 %v859
        %1977 = vmatpush.msra.mxu0 %v858
        %1978 = vmatpush.msra.mxu0 %v857
        %1979 = vmatpush.msra.mxu0 %v856
        %1980 = vmatpush.msra.mxu0 %v855
        %1981 = vmatpush.msra.mxu0 %v854
        %1982 = vmatpush.msra.mxu0 %v853
        %1983 = vmatpush.msra.mxu0 %v852
        %1984 = vmatpush.msra.mxu0 %v851
        %1985 = vmatpush.msra.mxu0 %v850
        %1986 = vmatmul.f32.gmra.mxu0 %v1914
        %v1987 = vpop.f32.mrf.mxu0
        %v1988 = vadd.f32 %v1947, %v1987
        %1989 = vmatmul.f32.gmra.mxu0 %v1916
        %v1990 = vpop.f32.mrf.mxu0
        %v1991 = vadd.f32 %v1950, %v1990
        %1992 = vmatmul.f32.gmra.mxu0 %v1918
        %v1993 = vpop.f32.mrf.mxu0
        %v1994 = vadd.f32 %v1953, %v1993
        %1995 = vmatmul.f32.gmra.mxu0 %v1920
        %v1996 = vpop.f32.mrf.mxu0
        %v1997 = vadd.f32 %v1956, %v1996
        %1998 = vmatmul.f32.gmra.mxu0 %v1922
        %v1999 = vpop.f32.mrf.mxu0
        %v2000 = vadd.f32 %v1959, %v1999
        %2001 = vmatmul.f32.gmra.mxu0 %v1924
        %v2002 = vpop.f32.mrf.mxu0
        %v2003 = vadd.f32 %v1962, %v2002
        %2004 = vmatmul.f32.gmra.mxu0 %v1926
        %v2005 = vpop.f32.mrf.mxu0
        %v2006 = vadd.f32 %v1965, %v2005
        %2007 = vmatmul.f32.gmra.mxu0 %v1928
        %v2008 = vpop.f32.mrf.mxu0
        %v2009 = vadd.f32 %v1968, %v2008
        %2010 = vdwg.mxu0
        %s2011 = scalar_lea.vmem %s2, 48
        %v2012 = vld [vmem:[%s2011] sm:$0x1f]
        %v2014 = vsel %vm1066, %v1988, 0
        %v2017 = vsel %vm1066, %v1991, 0
        %v2020 = vsel %vm1066, %v1994, 0
        %v2023 = vsel %vm1066, %v1997, 0
        %v2026 = vsel %vm1066, %v2000, 0
        %v2029 = vsel %vm1066, %v2003, 0
        %v2032 = vsel %vm1066, %v2006, 0
        %v2035 = vsel %vm1066, %v2009, 0
        %v2038 = vsel %vm1091, %v2012, 0
        %2040 = vmatpush.msra.mxu0 0.0
        %2041 = vmatpush.msra.mxu0 0.0
        %2042 = vmatpush.msra.mxu0 0.0
        %2043 = vmatpush.msra.mxu0 0.0
        %2044 = vmatpush.msra.mxu0 0.0
        %2045 = vmatpush.msra.mxu0 0.0
        %2046 = vmatpush.msra.mxu0 0.0
        %2047 = vmatpush.msra.mxu0 0.0
        %2048 = vmatpush.msra.mxu0 0.0
        %2049 = vmatpush.msra.mxu0 0.0
        %2050 = vmatpush.msra.mxu0 0.0
        %2051 = vmatpush.msra.mxu0 0.0
        %2052 = vmatpush.msra.mxu0 0.0
        %2053 = vmatpush.msra.mxu0 0.0
        %2054 = vmatpush.msra.mxu0 0.0
        %2055 = vmatpush.msra.mxu0 %v2038
        %2056 = vmatmul.f32.gmra.mxu0 %v2014
        %v2057 = vpop.f32.mrf.mxu0
        %v2058 = vadd.f32 0.0, %v2057
        %2059 = vmatmul.f32.gmra.mxu0 %v2017
        %v2060 = vpop.f32.mrf.mxu0
        %v2061 = vadd.f32 0.0, %v2060
        %2062 = vmatmul.f32.gmra.mxu0 %v2020
        %v2063 = vpop.f32.mrf.mxu0
        %v2064 = vadd.f32 0.0, %v2063
        %2065 = vmatmul.f32.gmra.mxu0 %v2023
        %v2066 = vpop.f32.mrf.mxu0
        %v2067 = vadd.f32 0.0, %v2066
        %2068 = vmatmul.f32.gmra.mxu0 %v2026
        %v2069 = vpop.f32.mrf.mxu0
        %v2070 = vadd.f32 0.0, %v2069
        %2071 = vmatmul.f32.gmra.mxu0 %v2029
        %v2072 = vpop.f32.mrf.mxu0
        %v2073 = vadd.f32 0.0, %v2072
        %2074 = vmatmul.f32.gmra.mxu0 %v2032
        %v2075 = vpop.f32.mrf.mxu0
        %v2076 = vadd.f32 0.0, %v2075
        %2077 = vmatmul.f32.gmra.mxu0 %v2035
        %v2078 = vpop.f32.mrf.mxu0
        %v2079 = vadd.f32 0.0, %v2078
        %2080 = vdwg.mxu0
        %v2081 = vadd.f32 %v1904, %v2058
        %v2082 = vadd.f32 %v1905, %v2061
        %v2083 = vadd.f32 %v1906, %v2064
        %v2084 = vadd.f32 %v1907, %v2067
        %v2085 = vadd.f32 %v1908, %v2070
        %v2086 = vadd.f32 %v1909, %v2073
        %v2087 = vadd.f32 %v1910, %v2076
        %v2088 = vadd.f32 %v1911, %v2079
        %s2089 = scalar_lea.vmem [#allocation4], 896
        %v2090 = vld [vmem:[%s2089] sm:$0xff]
        %v2091 = vld [vmem:[%s2089 + $0x8] sm:$0xff]
        %v2092 = vld [vmem:[%s2089 + $0x10] sm:$0xff]
        %v2093 = vld [vmem:[%s2089 + $0x18] sm:$0xff]
        %v2094 = vld [vmem:[%s2089 + $0x20] sm:$0xff]
        %v2095 = vld [vmem:[%s2089 + $0x28] sm:$0xff]
        %v2096 = vld [vmem:[%s2089 + $0x30] sm:$0xff]
        %v2097 = vld [vmem:[%s2089 + $0x38] sm:$0xff]
        %v2098 = vld [vmem:[%s2089 + $0x40] sm:$0xff]
        %v2099 = vld [vmem:[%s2089 + $0x48] sm:$0xff]
        %v2100 = vld [vmem:[%s2089 + $0x50] sm:$0xff]
        %v2101 = vld [vmem:[%s2089 + $0x58] sm:$0xff]
        %v2102 = vld [vmem:[%s2089 + $0x60] sm:$0xff]
        %v2103 = vld [vmem:[%s2089 + $0x68] sm:$0xff]
        %v2104 = vld [vmem:[%s2089 + $0x70] sm:$0xff]
        %v2105 = vld [vmem:[%s2089 + $0x78] sm:$0xff]
        %2106 = vmatpush.msra.mxu0 %v849
        %2107 = vmatpush.msra.mxu0 %v848
        %2108 = vmatpush.msra.mxu0 %v847
        %2109 = vmatpush.msra.mxu0 %v846
        %2110 = vmatpush.msra.mxu0 %v845
        %2111 = vmatpush.msra.mxu0 %v844
        %2112 = vmatpush.msra.mxu0 %v843
        %2113 = vmatpush.msra.mxu0 %v842
        %2114 = vmatpush.msra.mxu0 %v841
        %2115 = vmatpush.msra.mxu0 %v840
        %2116 = vmatpush.msra.mxu0 %v839
        %2117 = vmatpush.msra.mxu0 %v838
        %2118 = vmatpush.msra.mxu0 %v837
        %2119 = vmatpush.msra.mxu0 %v836
        %2120 = vmatpush.msra.mxu0 %v835
        %2121 = vmatpush.msra.mxu0 %v834
        %2122 = vmatmul.f32.gmra.mxu0 %v2090
        %v2123 = vpop.f32.mrf.mxu0
        %v2124 = vadd.f32 0.0, %v2123
        %2125 = vmatmul.f32.gmra.mxu0 %v2092
        %v2126 = vpop.f32.mrf.mxu0
        %v2127 = vadd.f32 0.0, %v2126
        %2128 = vmatmul.f32.gmra.mxu0 %v2094
        %v2129 = vpop.f32.mrf.mxu0
        %v2130 = vadd.f32 0.0, %v2129
        %2131 = vmatmul.f32.gmra.mxu0 %v2096
        %v2132 = vpop.f32.mrf.mxu0
        %v2133 = vadd.f32 0.0, %v2132
        %2134 = vmatmul.f32.gmra.mxu0 %v2098
        %v2135 = vpop.f32.mrf.mxu0
        %v2136 = vadd.f32 0.0, %v2135
        %2137 = vmatmul.f32.gmra.mxu0 %v2100
        %v2138 = vpop.f32.mrf.mxu0
        %v2139 = vadd.f32 0.0, %v2138
        %2140 = vmatmul.f32.gmra.mxu0 %v2102
        %v2141 = vpop.f32.mrf.mxu0
        %v2142 = vadd.f32 0.0, %v2141
        %2143 = vmatmul.f32.gmra.mxu0 %v2104
        %v2144 = vpop.f32.mrf.mxu0
        %v2145 = vadd.f32 0.0, %v2144
        %2146 = vdwg.mxu0
        %2147 = vmatpush.msra.mxu0 %v865
        %2148 = vmatpush.msra.mxu0 %v864
        %2149 = vmatpush.msra.mxu0 %v863
        %2150 = vmatpush.msra.mxu0 %v862
        %2151 = vmatpush.msra.mxu0 %v861
        %2152 = vmatpush.msra.mxu0 %v860
        %2153 = vmatpush.msra.mxu0 %v859
        %2154 = vmatpush.msra.mxu0 %v858
        %2155 = vmatpush.msra.mxu0 %v857
        %2156 = vmatpush.msra.mxu0 %v856
        %2157 = vmatpush.msra.mxu0 %v855
        %2158 = vmatpush.msra.mxu0 %v854
        %2159 = vmatpush.msra.mxu0 %v853
        %2160 = vmatpush.msra.mxu0 %v852
        %2161 = vmatpush.msra.mxu0 %v851
        %2162 = vmatpush.msra.mxu0 %v850
        %2163 = vmatmul.f32.gmra.mxu0 %v2091
        %v2164 = vpop.f32.mrf.mxu0
        %v2165 = vadd.f32 %v2124, %v2164
        %2166 = vmatmul.f32.gmra.mxu0 %v2093
        %v2167 = vpop.f32.mrf.mxu0
        %v2168 = vadd.f32 %v2127, %v2167
        %2169 = vmatmul.f32.gmra.mxu0 %v2095
        %v2170 = vpop.f32.mrf.mxu0
        %v2171 = vadd.f32 %v2130, %v2170
        %2172 = vmatmul.f32.gmra.mxu0 %v2097
        %v2173 = vpop.f32.mrf.mxu0
        %v2174 = vadd.f32 %v2133, %v2173
        %2175 = vmatmul.f32.gmra.mxu0 %v2099
        %v2176 = vpop.f32.mrf.mxu0
        %v2177 = vadd.f32 %v2136, %v2176
        %2178 = vmatmul.f32.gmra.mxu0 %v2101
        %v2179 = vpop.f32.mrf.mxu0
        %v2180 = vadd.f32 %v2139, %v2179
        %2181 = vmatmul.f32.gmra.mxu0 %v2103
        %v2182 = vpop.f32.mrf.mxu0
        %v2183 = vadd.f32 %v2142, %v2182
        %2184 = vmatmul.f32.gmra.mxu0 %v2105
        %v2185 = vpop.f32.mrf.mxu0
        %v2186 = vadd.f32 %v2145, %v2185
        %2187 = vdwg.mxu0
        %s2188 = scalar_lea.vmem %s2, 56
        %v2189 = vld [vmem:[%s2188] sm:$0x1f]
        %v2191 = vsel %vm1066, %v2165, 0
        %v2194 = vsel %vm1066, %v2168, 0
        %v2197 = vsel %vm1066, %v2171, 0
        %v2200 = vsel %vm1066, %v2174, 0
        %v2203 = vsel %vm1066, %v2177, 0
        %v2206 = vsel %vm1066, %v2180, 0
        %v2209 = vsel %vm1066, %v2183, 0
        %v2212 = vsel %vm1066, %v2186, 0
        %v2215 = vsel %vm1091, %v2189, 0
        %2217 = vmatpush.msra.mxu0 0.0
        %2218 = vmatpush.msra.mxu0 0.0
        %2219 = vmatpush.msra.mxu0 0.0
        %2220 = vmatpush.msra.mxu0 0.0
        %2221 = vmatpush.msra.mxu0 0.0
        %2222 = vmatpush.msra.mxu0 0.0
        %2223 = vmatpush.msra.mxu0 0.0
        %2224 = vmatpush.msra.mxu0 0.0
        %2225 = vmatpush.msra.mxu0 0.0
        %2226 = vmatpush.msra.mxu0 0.0
        %2227 = vmatpush.msra.mxu0 0.0
        %2228 = vmatpush.msra.mxu0 0.0
        %2229 = vmatpush.msra.mxu0 0.0
        %2230 = vmatpush.msra.mxu0 0.0
        %2231 = vmatpush.msra.mxu0 0.0
        %2232 = vmatpush.msra.mxu0 %v2215
        %2233 = vmatmul.f32.gmra.mxu0 %v2191
        %v2234 = vpop.f32.mrf.mxu0
        %v2235 = vadd.f32 0.0, %v2234
        %2236 = vmatmul.f32.gmra.mxu0 %v2194
        %v2237 = vpop.f32.mrf.mxu0
        %v2238 = vadd.f32 0.0, %v2237
        %2239 = vmatmul.f32.gmra.mxu0 %v2197
        %v2240 = vpop.f32.mrf.mxu0
        %v2241 = vadd.f32 0.0, %v2240
        %2242 = vmatmul.f32.gmra.mxu0 %v2200
        %v2243 = vpop.f32.mrf.mxu0
        %v2244 = vadd.f32 0.0, %v2243
        %2245 = vmatmul.f32.gmra.mxu0 %v2203
        %v2246 = vpop.f32.mrf.mxu0
        %v2247 = vadd.f32 0.0, %v2246
        %2248 = vmatmul.f32.gmra.mxu0 %v2206
        %v2249 = vpop.f32.mrf.mxu0
        %v2250 = vadd.f32 0.0, %v2249
        %2251 = vmatmul.f32.gmra.mxu0 %v2209
        %v2252 = vpop.f32.mrf.mxu0
        %v2253 = vadd.f32 0.0, %v2252
        %2254 = vmatmul.f32.gmra.mxu0 %v2212
        %v2255 = vpop.f32.mrf.mxu0
        %v2256 = vadd.f32 0.0, %v2255
        %2257 = vdwg.mxu0
        %v2258 = vadd.f32 %v2081, %v2235
        %v2259 = vadd.f32 %v2082, %v2238
        %v2260 = vadd.f32 %v2083, %v2241
        %v2261 = vadd.f32 %v2084, %v2244
        %v2262 = vadd.f32 %v2085, %v2247
        %v2263 = vadd.f32 %v2086, %v2250
        %v2264 = vadd.f32 %v2087, %v2253
        %v2265 = vadd.f32 %v2088, %v2256
        %s2266 = scalar_lea.vmem [#allocation4], 1024
        %v2267 = vld [vmem:[%s2266] sm:$0xff]
        %v2268 = vld [vmem:[%s2266 + $0x8] sm:$0xff]
        %v2269 = vld [vmem:[%s2266 + $0x10] sm:$0xff]
        %v2270 = vld [vmem:[%s2266 + $0x18] sm:$0xff]
        %v2271 = vld [vmem:[%s2266 + $0x20] sm:$0xff]
        %v2272 = vld [vmem:[%s2266 + $0x28] sm:$0xff]
        %v2273 = vld [vmem:[%s2266 + $0x30] sm:$0xff]
        %v2274 = vld [vmem:[%s2266 + $0x38] sm:$0xff]
        %v2275 = vld [vmem:[%s2266 + $0x40] sm:$0xff]
        %v2276 = vld [vmem:[%s2266 + $0x48] sm:$0xff]
        %v2277 = vld [vmem:[%s2266 + $0x50] sm:$0xff]
        %v2278 = vld [vmem:[%s2266 + $0x58] sm:$0xff]
        %v2279 = vld [vmem:[%s2266 + $0x60] sm:$0xff]
        %v2280 = vld [vmem:[%s2266 + $0x68] sm:$0xff]
        %v2281 = vld [vmem:[%s2266 + $0x70] sm:$0xff]
        %v2282 = vld [vmem:[%s2266 + $0x78] sm:$0xff]
        %2283 = vmatpush.msra.mxu0 %v849
        %2284 = vmatpush.msra.mxu0 %v848
        %2285 = vmatpush.msra.mxu0 %v847
        %2286 = vmatpush.msra.mxu0 %v846
        %2287 = vmatpush.msra.mxu0 %v845
        %2288 = vmatpush.msra.mxu0 %v844
        %2289 = vmatpush.msra.mxu0 %v843
        %2290 = vmatpush.msra.mxu0 %v842
        %2291 = vmatpush.msra.mxu0 %v841
        %2292 = vmatpush.msra.mxu0 %v840
        %2293 = vmatpush.msra.mxu0 %v839
        %2294 = vmatpush.msra.mxu0 %v838
        %2295 = vmatpush.msra.mxu0 %v837
        %2296 = vmatpush.msra.mxu0 %v836
        %2297 = vmatpush.msra.mxu0 %v835
        %2298 = vmatpush.msra.mxu0 %v834
        %2299 = vmatmul.f32.gmra.mxu0 %v2267
        %v2300 = vpop.f32.mrf.mxu0
        %v2301 = vadd.f32 0.0, %v2300
        %2302 = vmatmul.f32.gmra.mxu0 %v2269
        %v2303 = vpop.f32.mrf.mxu0
        %v2304 = vadd.f32 0.0, %v2303
        %2305 = vmatmul.f32.gmra.mxu0 %v2271
        %v2306 = vpop.f32.mrf.mxu0
        %v2307 = vadd.f32 0.0, %v2306
        %2308 = vmatmul.f32.gmra.mxu0 %v2273
        %v2309 = vpop.f32.mrf.mxu0
        %v2310 = vadd.f32 0.0, %v2309
        %2311 = vmatmul.f32.gmra.mxu0 %v2275
        %v2312 = vpop.f32.mrf.mxu0
        %v2313 = vadd.f32 0.0, %v2312
        %2314 = vmatmul.f32.gmra.mxu0 %v2277
        %v2315 = vpop.f32.mrf.mxu0
        %v2316 = vadd.f32 0.0, %v2315
        %2317 = vmatmul.f32.gmra.mxu0 %v2279
        %v2318 = vpop.f32.mrf.mxu0
        %v2319 = vadd.f32 0.0, %v2318
        %2320 = vmatmul.f32.gmra.mxu0 %v2281
        %v2321 = vpop.f32.mrf.mxu0
        %v2322 = vadd.f32 0.0, %v2321
        %2323 = vdwg.mxu0
        %2324 = vmatpush.msra.mxu0 %v865
        %2325 = vmatpush.msra.mxu0 %v864
        %2326 = vmatpush.msra.mxu0 %v863
        %2327 = vmatpush.msra.mxu0 %v862
        %2328 = vmatpush.msra.mxu0 %v861
        %2329 = vmatpush.msra.mxu0 %v860
        %2330 = vmatpush.msra.mxu0 %v859
        %2331 = vmatpush.msra.mxu0 %v858
        %2332 = vmatpush.msra.mxu0 %v857
        %2333 = vmatpush.msra.mxu0 %v856
        %2334 = vmatpush.msra.mxu0 %v855
        %2335 = vmatpush.msra.mxu0 %v854
        %2336 = vmatpush.msra.mxu0 %v853
        %2337 = vmatpush.msra.mxu0 %v852
        %2338 = vmatpush.msra.mxu0 %v851
        %2339 = vmatpush.msra.mxu0 %v850
        %2340 = vmatmul.f32.gmra.mxu0 %v2268
        %v2341 = vpop.f32.mrf.mxu0
        %v2342 = vadd.f32 %v2301, %v2341
        %2343 = vmatmul.f32.gmra.mxu0 %v2270
        %v2344 = vpop.f32.mrf.mxu0
        %v2345 = vadd.f32 %v2304, %v2344
        %2346 = vmatmul.f32.gmra.mxu0 %v2272
        %v2347 = vpop.f32.mrf.mxu0
        %v2348 = vadd.f32 %v2307, %v2347
        %2349 = vmatmul.f32.gmra.mxu0 %v2274
        %v2350 = vpop.f32.mrf.mxu0
        %v2351 = vadd.f32 %v2310, %v2350
        %2352 = vmatmul.f32.gmra.mxu0 %v2276
        %v2353 = vpop.f32.mrf.mxu0
        %v2354 = vadd.f32 %v2313, %v2353
        %2355 = vmatmul.f32.gmra.mxu0 %v2278
        %v2356 = vpop.f32.mrf.mxu0
        %v2357 = vadd.f32 %v2316, %v2356
        %2358 = vmatmul.f32.gmra.mxu0 %v2280
        %v2359 = vpop.f32.mrf.mxu0
        %v2360 = vadd.f32 %v2319, %v2359
        %2361 = vmatmul.f32.gmra.mxu0 %v2282
        %v2362 = vpop.f32.mrf.mxu0
        %v2363 = vadd.f32 %v2322, %v2362
        %2364 = vdwg.mxu0
        %s2365 = scalar_lea.vmem %s2, 64
        %v2366 = vld [vmem:[%s2365] sm:$0x1f]
        %v2368 = vsel %vm1066, %v2342, 0
        %v2371 = vsel %vm1066, %v2345, 0
        %v2374 = vsel %vm1066, %v2348, 0
        %v2377 = vsel %vm1066, %v2351, 0
        %v2380 = vsel %vm1066, %v2354, 0
        %v2383 = vsel %vm1066, %v2357, 0
        %v2386 = vsel %vm1066, %v2360, 0
        %v2389 = vsel %vm1066, %v2363, 0
        %v2392 = vsel %vm1091, %v2366, 0
        %2394 = vmatpush.msra.mxu0 0.0
        %2395 = vmatpush.msra.mxu0 0.0
        %2396 = vmatpush.msra.mxu0 0.0
        %2397 = vmatpush.msra.mxu0 0.0
        %2398 = vmatpush.msra.mxu0 0.0
        %2399 = vmatpush.msra.mxu0 0.0
        %2400 = vmatpush.msra.mxu0 0.0
        %2401 = vmatpush.msra.mxu0 0.0
        %2402 = vmatpush.msra.mxu0 0.0
        %2403 = vmatpush.msra.mxu0 0.0
        %2404 = vmatpush.msra.mxu0 0.0
        %2405 = vmatpush.msra.mxu0 0.0
        %2406 = vmatpush.msra.mxu0 0.0
        %2407 = vmatpush.msra.mxu0 0.0
        %2408 = vmatpush.msra.mxu0 0.0
        %2409 = vmatpush.msra.mxu0 %v2392
        %2410 = vmatmul.f32.gmra.mxu0 %v2368
        %v2411 = vpop.f32.mrf.mxu0
        %v2412 = vadd.f32 0.0, %v2411
        %2413 = vmatmul.f32.gmra.mxu0 %v2371
        %v2414 = vpop.f32.mrf.mxu0
        %v2415 = vadd.f32 0.0, %v2414
        %2416 = vmatmul.f32.gmra.mxu0 %v2374
        %v2417 = vpop.f32.mrf.mxu0
        %v2418 = vadd.f32 0.0, %v2417
        %2419 = vmatmul.f32.gmra.mxu0 %v2377
        %v2420 = vpop.f32.mrf.mxu0
        %v2421 = vadd.f32 0.0, %v2420
        %2422 = vmatmul.f32.gmra.mxu0 %v2380
        %v2423 = vpop.f32.mrf.mxu0
        %v2424 = vadd.f32 0.0, %v2423
        %2425 = vmatmul.f32.gmra.mxu0 %v2383
        %v2426 = vpop.f32.mrf.mxu0
        %v2427 = vadd.f32 0.0, %v2426
        %2428 = vmatmul.f32.gmra.mxu0 %v2386
        %v2429 = vpop.f32.mrf.mxu0
        %v2430 = vadd.f32 0.0, %v2429
        %2431 = vmatmul.f32.gmra.mxu0 %v2389
        %v2432 = vpop.f32.mrf.mxu0
        %v2433 = vadd.f32 0.0, %v2432
        %2434 = vdwg.mxu0
        %v2435 = vadd.f32 %v2258, %v2412
        %v2436 = vadd.f32 %v2259, %v2415
        %v2437 = vadd.f32 %v2260, %v2418
        %v2438 = vadd.f32 %v2261, %v2421
        %v2439 = vadd.f32 %v2262, %v2424
        %v2440 = vadd.f32 %v2263, %v2427
        %v2441 = vadd.f32 %v2264, %v2430
        %v2442 = vadd.f32 %v2265, %v2433
        %v2443 = vld [vmem:[%s3] sm:$0x1]
        %v2445 = vperm.slane %v2443, 0
        %v2447 = vmul.f32 %v2435, %v2445
        %v2448 = vmul.f32 %v2436, %v2445
        %v2449 = vmul.f32 %v2437, %v2445
        %v2450 = vmul.f32 %v2438, %v2445
        %v2451 = vmul.f32 %v2439, %v2445
        %v2452 = vmul.f32 %v2440, %v2445
        %v2453 = vmul.f32 %v2441, %v2445
        %v2454 = vmul.f32 %v2442, %v2445
        %v2455 = vld [vmem:[%s4] sm:$0x1]
        %v2457 = vperm.slane %v2455, 0
        %v2459 = vadd.f32 %v2447, %v2457
        %v2460 = vadd.f32 %v2448, %v2457
        %v2461 = vadd.f32 %v2449, %v2457
        %v2462 = vadd.f32 %v2450, %v2457
        %v2463 = vadd.f32 %v2451, %v2457
        %v2464 = vadd.f32 %v2452, %v2457
        %v2465 = vadd.f32 %v2453, %v2457
        %v2466 = vadd.f32 %v2454, %v2457
        %vm2467 = vcmask 130048
        %v2468 = vsel %vm2467, %v2459, 0.0
        %v2469 = vsel %vm2467, %v2460, 0.0
        %v2470 = vadd.f32 %v2468, %v2469
        %v2471 = vsel %vm2467, %v2461, 0.0
        %v2472 = vadd.f32 %v2470, %v2471
        %v2473 = vsel %vm2467, %v2462, 0.0
        %v2474 = vadd.f32 %v2472, %v2473
        %v2475 = vsel %vm2467, %v2463, 0.0
        %v2476 = vadd.f32 %v2474, %v2475
        %v2477 = vsel %vm2467, %v2464, 0.0
        %v2478 = vadd.f32 %v2476, %v2477
        %v2479 = vsel %vm2467, %v2465, 0.0
        %v2480 = vadd.f32 %v2478, %v2479
        %v2481 = vsel %vm2467, %v2466, 0.0
        %v2482 = vadd.f32 %v2480, %v2481
        %v2483 = vrot.slane %v2482, 4
        %v2484 = vadd.f32 %v2482, %v2483
        %v2485 = vrot.slane %v2484, 2
        %v2486 = vadd.f32 %v2484, %v2485
        %v2487 = vrot.slane %v2486, 1
        %v2488 = vadd.f32 %v2486, %v2487
        %v2489 = vrcp.pop 64.0
        %v2490 = vmul.f32 64.0, %v2489
        %v2491 = vsub.f32 1.0, %v2490
        %v2492 = vmul.f32 %v2489, %v2491
        %v2493 = vadd.f32 %v2489, %v2492
        %vm2494 = vweird.f32 %v2489
        %v2495 = vsel %vm2494, %v2489, %v2493
        %v2496 = vmul.f32 %v2488, %v2495
        %v2497 = vsel %vm2467, %v2459, -inf
        %v2498 = vsel %vm2467, %v2460, -inf
        %v2499 = vsel %vm2467, %v2461, -inf
        %v2500 = vsel %vm2467, %v2462, -inf
        %v2501 = vsel %vm2467, %v2463, -inf
        %v2502 = vmax.f32 %v2497, %v2501
        %v2503 = vsel %vm2467, %v2464, -inf
        %v2504 = vmax.f32 %v2498, %v2503
        %v2505 = vsel %vm2467, %v2465, -inf
        %v2506 = vmax.f32 %v2499, %v2505
        %v2507 = vsel %vm2467, %v2466, -inf
        %v2508 = vmax.f32 %v2500, %v2507
        %v2509 = vmax.f32 %v2502, %v2504
        %v2510 = vmax.f32 %v2506, %v2508
        %v2511 = vmax.f32 %v2509, %v2510
        %v2512 = vrot.slane %v2511, 4
        %v2513 = vmax.f32 %v2511, %v2512
        %v2514 = vrot.slane %v2513, 2
        %v2515 = vmax.f32 %v2513, %v2514
        %v2516 = vrot.slane %v2515, 1
        %v2517 = vmax.f32 %v2515, %v2516
        %v2518 = vld [vmem:[%s5] sm:$0x1]
        %v2519 = vmul.f32 %v2496, %v2518
        %vm2520 = vcmask 122880
        %v2521 = vsel %vm2520, %v2519, 0.0
        %2522 = vadd.xlane.f32.xlu0 %v2521
        %v2523 = vpop.xlane.xlu0 %2522
        %v2524 = vld [vmem:[#allocation2] sm:$0x1]
        %v2525 = vadd.f32 %v2523, %v2524
        %v2526 = vmax.f32 %v2525, 0.0
        %v2527 = vld [vmem:[%s7] sm:$0x1]
        %2529 = vset.pattern.permute.xlu0 0
        %2530 = vperm.xlu0 %2529, %v2526
        %v2531 = vpop.permute.xlu0 %2530
        %v2533 = vmul.f32 %v2531, %v2527
        %v2534 = vld [vmem:[%s8] sm:$0x1]
        %v2535 = vadd.f32 %v2533, %v2534
        %v2536 = vmul.f32 %v2517, %v2518
        %v2537 = vsel %vm2520, %v2536, 0.0
        %2538 = vadd.xlane.f32.xlu0 %v2537
        %v2539 = vpop.xlane.xlu0 %2538
        %v2540 = vadd.f32 %v2539, %v2524
        %v2541 = vmax.f32 %v2540, 0.0
        %2543 = vset.pattern.permute.xlu0 0
        %2544 = vperm.xlu0 %2543, %v2541
        %v2545 = vpop.permute.xlu0 %2544
        %v2547 = vmul.f32 %v2545, %v2527
        %v2548 = vadd.f32 %v2547, %v2534
        %v2549 = vadd.f32 %v2535, %v2548
        %v2550 = vsub.f32 0.0, %v2549
        %v2551 = vmul.f32 %v2550, 1.442695
        %v2552 = vpow.pop %v2551
        %v2553 = vadd.f32 %v2552, 1.0
        %v2554 = vrcp.pop %v2553
        %v2555 = vmul.f32 %v2553, %v2554
        %v2556 = vsub.f32 1.0, %v2555
        %v2557 = vmul.f32 %v2554, %v2556
        %v2558 = vadd.f32 %v2554, %v2557
        %vm2559 = vweird.f32 %v2553
        %vm2560 = vweird.f32 %v2554
        %vm2561 = vmor %vm2559, %vm2560
        %v2562 = vsel %vm2561, %v2554, %v2558
        %v2563 = vand.u32 2147483647, %v2553
        %vm2564 = vcmp.eq.f32.partialorder %v2563, 8.507059e+37
        %v2565 = vand.u32 %v2553, 2147483648
        %v2566 = vor.u32 1.1754944e-38, %v2565
        %v2567 = vsel %vm2564, %v2566, %v2562
        %v2568 = vmul.f32 1.0, %v2567
        %v2569 = vperm.slane %v2568, 0
        %v2570 = vmul.f32 %v2459, %v2569
        %v2571 = vmul.f32 %v2460, %v2569
        %v2572 = vmul.f32 %v2461, %v2569
        %v2573 = vmul.f32 %v2462, %v2569
        %v2574 = vmul.f32 %v2463, %v2569
        %v2575 = vmul.f32 %v2464, %v2569
        %v2576 = vmul.f32 %v2465, %v2569
        %v2577 = vmul.f32 %v2466, %v2569
        %v2578 = vsel %vm2467, %v2570, -inf
        %2579 = vmax.xlane.f32.xlu0 %v2578
        %v2580 = vpop.xlane.xlu0 %2579
        %v2581 = vsel %vm2467, %v2571, -inf
        %2582 = vmax.xlane.f32.xlu0 %v2581
        %v2583 = vpop.xlane.xlu0 %2582
        %v2584 = vsel %vm2467, %v2572, -inf
        %2585 = vmax.xlane.f32.xlu0 %v2584
        %v2586 = vpop.xlane.xlu0 %2585
        %v2587 = vsel %vm2467, %v2573, -inf
        %2588 = vmax.xlane.f32.xlu0 %v2587
        %v2589 = vpop.xlane.xlu0 %2588
        %v2590 = vsel %vm2467, %v2574, -inf
        %2591 = vmax.xlane.f32.xlu0 %v2590
        %v2592 = vpop.xlane.xlu0 %2591
        %v2593 = vsel %vm2467, %v2575, -inf
        %2594 = vmax.xlane.f32.xlu0 %v2593
        %v2595 = vpop.xlane.xlu0 %2594
        %v2596 = vsel %vm2467, %v2576, -inf
        %2597 = vmax.xlane.f32.xlu0 %v2596
        %v2598 = vpop.xlane.xlu0 %2597
        %v2599 = vsel %vm2467, %v2577, -inf
        %2600 = vmax.xlane.f32.xlu0 %v2599
        %v2601 = vpop.xlane.xlu0 %2600
        %v2602 = vsel %vm2467, %v2570, 0.0
        %2603 = vadd.xlane.f32.xlu0 %v2602
        %v2604 = vpop.xlane.xlu0 %2603
        %v2605 = vsel %vm2467, %v2571, 0.0
        %2606 = vadd.xlane.f32.xlu0 %v2605
        %v2607 = vpop.xlane.xlu0 %2606
        %v2608 = vsel %vm2467, %v2572, 0.0
        %2609 = vadd.xlane.f32.xlu0 %v2608
        %v2610 = vpop.xlane.xlu0 %2609
        %v2611 = vsel %vm2467, %v2573, 0.0
        %2612 = vadd.xlane.f32.xlu0 %v2611
        %v2613 = vpop.xlane.xlu0 %2612
        %v2614 = vsel %vm2467, %v2574, 0.0
        %2615 = vadd.xlane.f32.xlu0 %v2614
        %v2616 = vpop.xlane.xlu0 %2615
        %v2617 = vsel %vm2467, %v2575, 0.0
        %2618 = vadd.xlane.f32.xlu0 %v2617
        %v2619 = vpop.xlane.xlu0 %2618
        %v2620 = vsel %vm2467, %v2576, 0.0
        %2621 = vadd.xlane.f32.xlu0 %v2620
        %v2622 = vpop.xlane.xlu0 %2621
        %v2623 = vsel %vm2467, %v2577, 0.0
        %2624 = vadd.xlane.f32.xlu0 %v2623
        %v2625 = vpop.xlane.xlu0 %2624
        %v2626 = vrcp.pop 16.0
        %v2627 = vmul.f32 16.0, %v2626
        %v2628 = vsub.f32 1.0, %v2627
        %v2629 = vmul.f32 %v2626, %v2628
        %v2630 = vadd.f32 %v2626, %v2629
        %vm2631 = vweird.f32 %v2626
        %v2632 = vsel %vm2631, %v2626, %v2630
        %v2633 = vmul.f32 %v2604, %v2632
        %v2634 = vmul.f32 %v2607, %v2632
        %v2635 = vmul.f32 %v2610, %v2632
        %v2636 = vmul.f32 %v2613, %v2632
        %v2637 = vmul.f32 %v2616, %v2632
        %v2638 = vmul.f32 %v2619, %v2632
        %v2639 = vmul.f32 %v2622, %v2632
        %v2640 = vmul.f32 %v2625, %v2632
        %v2641 = vld [vmem:[#allocation7] sm:$0xff]
        %v2642 = vld [vmem:[#allocation7 + $0x8] sm:$0xff]
        %v2643 = vld [vmem:[#allocation7 + $0x10] sm:$0xff]
        %v2644 = vld [vmem:[#allocation7 + $0x18] sm:$0xff]
        %v2645 = vld [vmem:[#allocation7 + $0x20] sm:$0xff]
        %v2646 = vld [vmem:[#allocation7 + $0x28] sm:$0xff]
        %v2647 = vld [vmem:[#allocation7 + $0x30] sm:$0xff]
        %v2648 = vld [vmem:[#allocation7 + $0x38] sm:$0xff]
        %v2649 = vld [vmem:[#allocation9] sm:$0xff]
        %v2650 = vld [vmem:[#allocation9 + $0x8] sm:$0xff]
        %v2651 = vld [vmem:[#allocation9 + $0x10] sm:$0xff]
        %v2652 = vld [vmem:[#allocation9 + $0x18] sm:$0xff]
        %v2653 = vld [vmem:[#allocation9 + $0x20] sm:$0xff]
        %v2654 = vld [vmem:[#allocation9 + $0x28] sm:$0xff]
        %v2655 = vld [vmem:[#allocation9 + $0x30] sm:$0xff]
        %v2656 = vld [vmem:[#allocation9 + $0x38] sm:$0xff]
        %vm2657 = vcmask 523264
        %v2659 = vsel %vm2657, %v2649, 0
        %v2662 = vsel %vm2657, %v2650, 0
        %v2665 = vsel %vm2657, %v2651, 0
        %v2668 = vsel %vm2657, %v2652, 0
        %v2671 = vsel %vm2657, %v2653, 0
        %v2674 = vsel %vm2657, %v2654, 0
        %v2677 = vsel %vm2657, %v2655, 0
        %v2680 = vsel %vm2657, %v2656, 0
        %2682 = vmatpush.msra.mxu0 0.0
        %2683 = vmatpush.msra.mxu0 0.0
        %2684 = vmatpush.msra.mxu0 0.0
        %2685 = vmatpush.msra.mxu0 0.0
        %2686 = vmatpush.msra.mxu0 0.0
        %2687 = vmatpush.msra.mxu0 0.0
        %2688 = vmatpush.msra.mxu0 0.0
        %2689 = vmatpush.msra.mxu0 0.0
        %2690 = vmatpush.msra.mxu0 %v2640
        %2691 = vmatpush.msra.mxu0 %v2639
        %2692 = vmatpush.msra.mxu0 %v2638
        %2693 = vmatpush.msra.mxu0 %v2637
        %2694 = vmatpush.msra.mxu0 %v2636
        %2695 = vmatpush.msra.mxu0 %v2635
        %2696 = vmatpush.msra.mxu0 %v2634
        %2697 = vmatpush.msra.mxu0 %v2633
        %2698 = vmatmul.f32.gmra.mxu0 %v2659
        %v2699 = vpop.f32.mrf.mxu0
        %v2700 = vadd.f32 0.0, %v2699
        %2701 = vmatmul.f32.gmra.mxu0 %v2662
        %v2702 = vpop.f32.mrf.mxu0
        %v2703 = vadd.f32 0.0, %v2702
        %2704 = vmatmul.f32.gmra.mxu0 %v2665
        %v2705 = vpop.f32.mrf.mxu0
        %v2706 = vadd.f32 0.0, %v2705
        %2707 = vmatmul.f32.gmra.mxu0 %v2668
        %v2708 = vpop.f32.mrf.mxu0
        %v2709 = vadd.f32 0.0, %v2708
        %2710 = vmatmul.f32.gmra.mxu0 %v2671
        %v2711 = vpop.f32.mrf.mxu0
        %v2712 = vadd.f32 0.0, %v2711
        %2713 = vmatmul.f32.gmra.mxu0 %v2674
        %v2714 = vpop.f32.mrf.mxu0
        %v2715 = vadd.f32 0.0, %v2714
        %2716 = vmatmul.f32.gmra.mxu0 %v2677
        %v2717 = vpop.f32.mrf.mxu0
        %v2718 = vadd.f32 0.0, %v2717
        %2719 = vmatmul.f32.gmra.mxu0 %v2680
        %v2720 = vpop.f32.mrf.mxu0
        %v2721 = vadd.f32 0.0, %v2720
        %2722 = vdwg.mxu0
        %v2724 = vsel %vm2657, %v2641, 0
        %v2727 = vsel %vm2657, %v2642, 0
        %v2730 = vsel %vm2657, %v2643, 0
        %v2733 = vsel %vm2657, %v2644, 0
        %v2736 = vsel %vm2657, %v2645, 0
        %v2739 = vsel %vm2657, %v2646, 0
        %v2742 = vsel %vm2657, %v2647, 0
        %v2745 = vsel %vm2657, %v2648, 0
        %2747 = vmatpush.msra.mxu0 0.0
        %2748 = vmatpush.msra.mxu0 0.0
        %2749 = vmatpush.msra.mxu0 0.0
        %2750 = vmatpush.msra.mxu0 0.0
        %2751 = vmatpush.msra.mxu0 0.0
        %2752 = vmatpush.msra.mxu0 0.0
        %2753 = vmatpush.msra.mxu0 0.0
        %2754 = vmatpush.msra.mxu0 0.0
        %2755 = vmatpush.msra.mxu0 %v2601
        %2756 = vmatpush.msra.mxu0 %v2598
        %2757 = vmatpush.msra.mxu0 %v2595
        %2758 = vmatpush.msra.mxu0 %v2592
        %2759 = vmatpush.msra.mxu0 %v2589
        %2760 = vmatpush.msra.mxu0 %v2586
        %2761 = vmatpush.msra.mxu0 %v2583
        %2762 = vmatpush.msra.mxu0 %v2580
        %2763 = vmatmul.f32.gmra.mxu0 %v2724
        %v2764 = vpop.f32.mrf.mxu0
        %v2765 = vadd.f32 %v2700, %v2764
        %2766 = vmatmul.f32.gmra.mxu0 %v2727
        %v2767 = vpop.f32.mrf.mxu0
        %v2768 = vadd.f32 %v2703, %v2767
        %2769 = vmatmul.f32.gmra.mxu0 %v2730
        %v2770 = vpop.f32.mrf.mxu0
        %v2771 = vadd.f32 %v2706, %v2770
        %2772 = vmatmul.f32.gmra.mxu0 %v2733
        %v2773 = vpop.f32.mrf.mxu0
        %v2774 = vadd.f32 %v2709, %v2773
        %2775 = vmatmul.f32.gmra.mxu0 %v2736
        %v2776 = vpop.f32.mrf.mxu0
        %v2777 = vadd.f32 %v2712, %v2776
        %2778 = vmatmul.f32.gmra.mxu0 %v2739
        %v2779 = vpop.f32.mrf.mxu0
        %v2780 = vadd.f32 %v2715, %v2779
        %2781 = vmatmul.f32.gmra.mxu0 %v2742
        %v2782 = vpop.f32.mrf.mxu0
        %v2783 = vadd.f32 %v2718, %v2782
        %2784 = vmatmul.f32.gmra.mxu0 %v2745
        %v2785 = vpop.f32.mrf.mxu0
        %v2786 = vadd.f32 %v2721, %v2785
        %2787 = vdwg.mxu0
        %v2788 = vld [vmem:[#allocation3] sm:$0x1]
        %v2790 = vperm.slane %v2788, 0
        %v2792 = vadd.f32 %v2765, %v2790
        %v2793 = vadd.f32 %v2768, %v2790
        %v2794 = vadd.f32 %v2771, %v2790
        %v2795 = vadd.f32 %v2774, %v2790
        %v2796 = vadd.f32 %v2777, %v2790
        %v2797 = vadd.f32 %v2780, %v2790
        %v2798 = vadd.f32 %v2783, %v2790
        %v2799 = vadd.f32 %v2786, %v2790
        %v2800 = vsub.f32 0.0, %v2792
        %v2801 = vsub.f32 0.0, %v2793
        %v2802 = vsub.f32 0.0, %v2794
        %v2803 = vsub.f32 0.0, %v2795
        %v2804 = vsub.f32 0.0, %v2796
        %v2805 = vsub.f32 0.0, %v2797
        %v2806 = vsub.f32 0.0, %v2798
        %v2807 = vsub.f32 0.0, %v2799
        %v2808 = vmul.f32 %v2800, 1.442695
        %v2809 = vpow.pop %v2808
        %v2810 = vmul.f32 %v2801, 1.442695
        %v2811 = vpow.pop %v2810
        %v2812 = vmul.f32 %v2802, 1.442695
        %v2813 = vpow.pop %v2812
        %v2814 = vmul.f32 %v2803, 1.442695
        %v2815 = vpow.pop %v2814
        %v2816 = vmul.f32 %v2804, 1.442695
        %v2817 = vpow.pop %v2816
        %v2818 = vmul.f32 %v2805, 1.442695
        %v2819 = vpow.pop %v2818
        %v2820 = vmul.f32 %v2806, 1.442695
        %v2821 = vpow.pop %v2820
        %v2822 = vmul.f32 %v2807, 1.442695
        %v2823 = vpow.pop %v2822
        %v2824 = vadd.f32 %v2809, 1.0
        %v2825 = vadd.f32 %v2811, 1.0
        %v2826 = vadd.f32 %v2813, 1.0
        %v2827 = vadd.f32 %v2815, 1.0
        %v2828 = vadd.f32 %v2817, 1.0
        %v2829 = vadd.f32 %v2819, 1.0
        %v2830 = vadd.f32 %v2821, 1.0
        %v2831 = vadd.f32 %v2823, 1.0
        %v2832 = vrcp.pop %v2824
        %v2833 = vmul.f32 %v2824, %v2832
        %v2834 = vsub.f32 1.0, %v2833
        %v2835 = vmul.f32 %v2832, %v2834
        %v2836 = vadd.f32 %v2832, %v2835
        %vm2837 = vweird.f32 %v2824
        %vm2838 = vweird.f32 %v2832
        %vm2839 = vmor %vm2837, %vm2838
        %v2840 = vsel %vm2839, %v2832, %v2836
        %v2841 = vand.u32 2147483647, %v2824
        %vm2842 = vcmp.eq.f32.partialorder %v2841, 8.507059e+37
        %v2843 = vand.u32 %v2824, 2147483648
        %v2844 = vor.u32 1.1754944e-38, %v2843
        %v2845 = vsel %vm2842, %v2844, %v2840
        %v2846 = vmul.f32 1.0, %v2845
        %v2847 = vrcp.pop %v2825
        %v2848 = vmul.f32 %v2825, %v2847
        %v2849 = vsub.f32 1.0, %v2848
        %v2850 = vmul.f32 %v2847, %v2849
        %v2851 = vadd.f32 %v2847, %v2850
        %vm2852 = vweird.f32 %v2825
        %vm2853 = vweird.f32 %v2847
        %vm2854 = vmor %vm2852, %vm2853
        %v2855 = vsel %vm2854, %v2847, %v2851
        %v2856 = vand.u32 2147483647, %v2825
        %vm2857 = vcmp.eq.f32.partialorder %v2856, 8.507059e+37
        %v2858 = vand.u32 %v2825, 2147483648
        %v2859 = vor.u32 1.1754944e-38, %v2858
        %v2860 = vsel %vm2857, %v2859, %v2855
        %v2861 = vmul.f32 1.0, %v2860
        %v2862 = vrcp.pop %v2826
        %v2863 = vmul.f32 %v2826, %v2862
        %v2864 = vsub.f32 1.0, %v2863
        %v2865 = vmul.f32 %v2862, %v2864
        %v2866 = vadd.f32 %v2862, %v2865
        %vm2867 = vweird.f32 %v2826
        %vm2868 = vweird.f32 %v2862
        %vm2869 = vmor %vm2867, %vm2868
        %v2870 = vsel %vm2869, %v2862, %v2866
        %v2871 = vand.u32 2147483647, %v2826
        %vm2872 = vcmp.eq.f32.partialorder %v2871, 8.507059e+37
        %v2873 = vand.u32 %v2826, 2147483648
        %v2874 = vor.u32 1.1754944e-38, %v2873
        %v2875 = vsel %vm2872, %v2874, %v2870
        %v2876 = vmul.f32 1.0, %v2875
        %v2877 = vrcp.pop %v2827
        %v2878 = vmul.f32 %v2827, %v2877
        %v2879 = vsub.f32 1.0, %v2878
        %v2880 = vmul.f32 %v2877, %v2879
        %v2881 = vadd.f32 %v2877, %v2880
        %vm2882 = vweird.f32 %v2827
        %vm2883 = vweird.f32 %v2877
        %vm2884 = vmor %vm2882, %vm2883
        %v2885 = vsel %vm2884, %v2877, %v2881
        %v2886 = vand.u32 2147483647, %v2827
        %vm2887 = vcmp.eq.f32.partialorder %v2886, 8.507059e+37
        %v2888 = vand.u32 %v2827, 2147483648
        %v2889 = vor.u32 1.1754944e-38, %v2888
        %v2890 = vsel %vm2887, %v2889, %v2885
        %v2891 = vmul.f32 1.0, %v2890
        %v2892 = vrcp.pop %v2828
        %v2893 = vmul.f32 %v2828, %v2892
        %v2894 = vsub.f32 1.0, %v2893
        %v2895 = vmul.f32 %v2892, %v2894
        %v2896 = vadd.f32 %v2892, %v2895
        %vm2897 = vweird.f32 %v2828
        %vm2898 = vweird.f32 %v2892
        %vm2899 = vmor %vm2897, %vm2898
        %v2900 = vsel %vm2899, %v2892, %v2896
        %v2901 = vand.u32 2147483647, %v2828
        %vm2902 = vcmp.eq.f32.partialorder %v2901, 8.507059e+37
        %v2903 = vand.u32 %v2828, 2147483648
        %v2904 = vor.u32 1.1754944e-38, %v2903
        %v2905 = vsel %vm2902, %v2904, %v2900
        %v2906 = vmul.f32 1.0, %v2905
        %v2907 = vrcp.pop %v2829
        %v2908 = vmul.f32 %v2829, %v2907
        %v2909 = vsub.f32 1.0, %v2908
        %v2910 = vmul.f32 %v2907, %v2909
        %v2911 = vadd.f32 %v2907, %v2910
        %vm2912 = vweird.f32 %v2829
        %vm2913 = vweird.f32 %v2907
        %vm2914 = vmor %vm2912, %vm2913
        %v2915 = vsel %vm2914, %v2907, %v2911
        %v2916 = vand.u32 2147483647, %v2829
        %vm2917 = vcmp.eq.f32.partialorder %v2916, 8.507059e+37
        %v2918 = vand.u32 %v2829, 2147483648
        %v2919 = vor.u32 1.1754944e-38, %v2918
        %v2920 = vsel %vm2917, %v2919, %v2915
        %v2921 = vmul.f32 1.0, %v2920
        %v2922 = vrcp.pop %v2830
        %v2923 = vmul.f32 %v2830, %v2922
        %v2924 = vsub.f32 1.0, %v2923
        %v2925 = vmul.f32 %v2922, %v2924
        %v2926 = vadd.f32 %v2922, %v2925
        %vm2927 = vweird.f32 %v2830
        %vm2928 = vweird.f32 %v2922
        %vm2929 = vmor %vm2927, %vm2928
        %v2930 = vsel %vm2929, %v2922, %v2926
        %v2931 = vand.u32 2147483647, %v2830
        %vm2932 = vcmp.eq.f32.partialorder %v2931, 8.507059e+37
        %v2933 = vand.u32 %v2830, 2147483648
        %v2934 = vor.u32 1.1754944e-38, %v2933
        %v2935 = vsel %vm2932, %v2934, %v2930
        %v2936 = vmul.f32 1.0, %v2935
        %v2937 = vrcp.pop %v2831
        %v2938 = vmul.f32 %v2831, %v2937
        %v2939 = vsub.f32 1.0, %v2938
        %v2940 = vmul.f32 %v2937, %v2939
        %v2941 = vadd.f32 %v2937, %v2940
        %vm2942 = vweird.f32 %v2831
        %vm2943 = vweird.f32 %v2937
        %vm2944 = vmor %vm2942, %vm2943
        %v2945 = vsel %vm2944, %v2937, %v2941
        %v2946 = vand.u32 2147483647, %v2831
        %vm2947 = vcmp.eq.f32.partialorder %v2946, 8.507059e+37
        %v2948 = vand.u32 %v2831, 2147483648
        %v2949 = vor.u32 1.1754944e-38, %v2948
        %v2950 = vsel %vm2947, %v2949, %v2945
        %v2951 = vmul.f32 1.0, %v2950
        %2953 = vset.pattern.permute.xlu0 0
        %2954 = vperm.xlu0 %2953, %v2846
        %v2955 = vpop.permute.xlu0 %2954
        %2958 = vset.pattern.permute.xlu0 0
        %2959 = vperm.xlu0 %2958, %v2861
        %v2960 = vpop.permute.xlu0 %2959
        %2963 = vset.pattern.permute.xlu0 0
        %2964 = vperm.xlu0 %2963, %v2876
        %v2965 = vpop.permute.xlu0 %2964
        %2968 = vset.pattern.permute.xlu0 0
        %2969 = vperm.xlu0 %2968, %v2891
        %v2970 = vpop.permute.xlu0 %2969
        %2973 = vset.pattern.permute.xlu0 0
        %2974 = vperm.xlu0 %2973, %v2906
        %v2975 = vpop.permute.xlu0 %2974
        %2978 = vset.pattern.permute.xlu0 0
        %2979 = vperm.xlu0 %2978, %v2921
        %v2980 = vpop.permute.xlu0 %2979
        %2983 = vset.pattern.permute.xlu0 0
        %2984 = vperm.xlu0 %2983, %v2936
        %v2985 = vpop.permute.xlu0 %2984
        %2988 = vset.pattern.permute.xlu0 0
        %2989 = vperm.xlu0 %2988, %v2951
        %v2990 = vpop.permute.xlu0 %2989
        %v2992 = vmul.f32 %v2570, %v2955
        %v2993 = vmul.f32 %v2571, %v2960
        %v2994 = vmul.f32 %v2572, %v2965
        %v2995 = vmul.f32 %v2573, %v2970
        %v2996 = vmul.f32 %v2574, %v2975
        %v2997 = vmul.f32 %v2575, %v2980
        %v2998 = vmul.f32 %v2576, %v2985
        %v2999 = vmul.f32 %v2577, %v2990
        %v3000 = vld [vmem:[%s12] sm:$0xff]
        %v3001 = vld [vmem:[%s12 + $0x8] sm:$0xff]
        %v3003 = vsel %vm2467, %v2992, 0
        %v3006 = vsel %vm2467, %v2993, 0
        %v3009 = vsel %vm2467, %v2994, 0
        %v3012 = vsel %vm2467, %v2995, 0
        %v3015 = vsel %vm2467, %v2996, 0
        %v3018 = vsel %vm2467, %v2997, 0
        %v3021 = vsel %vm2467, %v2998, 0
        %v3024 = vsel %vm2467, %v2999, 0
        %3026 = vmatpush.msra.mxu0 0.0
        %3027 = vmatpush.msra.mxu0 0.0
        %3028 = vmatpush.msra.mxu0 0.0
        %3029 = vmatpush.msra.mxu0 0.0
        %3030 = vmatpush.msra.mxu0 0.0
        %3031 = vmatpush.msra.mxu0 0.0
        %3032 = vmatpush.msra.mxu0 0.0
        %3033 = vmatpush.msra.mxu0 0.0
        %3034 = vmatpush.msra.mxu0 0.0
        %3035 = vmatpush.msra.mxu0 0.0
        %3036 = vmatpush.msra.mxu0 0.0
        %3037 = vmatpush.msra.mxu0 0.0
        %3038 = vmatpush.msra.mxu0 0.0
        %3039 = vmatpush.msra.mxu0 0.0
        %3040 = vmatpush.msra.mxu0 %v3001
        %3041 = vmatpush.msra.mxu0 %v3000
        %3042 = vmatmul.f32.gmra.mxu0 %v3003
        %v3043 = vpop.f32.mrf.mxu0
        %v3044 = vadd.f32 0.0, %v3043
        %3045 = vmatmul.f32.gmra.mxu0 %v3006
        %v3046 = vpop.f32.mrf.mxu0
        %v3047 = vadd.f32 0.0, %v3046
        %3048 = vmatmul.f32.gmra.mxu0 %v3009
        %v3049 = vpop.f32.mrf.mxu0
        %v3050 = vadd.f32 0.0, %v3049
        %3051 = vmatmul.f32.gmra.mxu0 %v3012
        %v3052 = vpop.f32.mrf.mxu0
        %v3053 = vadd.f32 0.0, %v3052
        %3054 = vmatmul.f32.gmra.mxu0 %v3015
        %v3055 = vpop.f32.mrf.mxu0
        %v3056 = vadd.f32 0.0, %v3055
        %3057 = vmatmul.f32.gmra.mxu0 %v3018
        %v3058 = vpop.f32.mrf.mxu0
        %v3059 = vadd.f32 0.0, %v3058
        %3060 = vmatmul.f32.gmra.mxu0 %v3021
        %v3061 = vpop.f32.mrf.mxu0
        %v3062 = vadd.f32 0.0, %v3061
        %3063 = vmatmul.f32.gmra.mxu0 %v3024
        %v3064 = vpop.f32.mrf.mxu0
        %v3065 = vadd.f32 0.0, %v3064
        %3066 = vdwg.mxu0
        %v3067 = vld [vmem:[%s13] sm:$0x1]
        %v3069 = vperm.slane %v3067, 0
        %v3071 = vmul.f32 %v3044, %v3069
        %v3072 = vmul.f32 %v3047, %v3069
        %v3073 = vmul.f32 %v3050, %v3069
        %v3074 = vmul.f32 %v3053, %v3069
        %v3075 = vmul.f32 %v3056, %v3069
        %v3076 = vmul.f32 %v3059, %v3069
        %v3077 = vmul.f32 %v3062, %v3069
        %v3078 = vmul.f32 %v3065, %v3069
        %v3079 = vld [vmem:[%s14] sm:$0x1]
        %v3081 = vperm.slane %v3079, 0
        %v3083 = vadd.f32 %v3071, %v3081
        %v3084 = vadd.f32 %v3072, %v3081
        %v3085 = vadd.f32 %v3073, %v3081
        %v3086 = vadd.f32 %v3074, %v3081
        %v3087 = vadd.f32 %v3075, %v3081
        %v3088 = vadd.f32 %v3076, %v3081
        %v3089 = vadd.f32 %v3077, %v3081
        %v3090 = vadd.f32 %v3078, %v3081
        %v3091 = vmax.f32 %v3083, 0.0
        %v3092 = vmax.f32 %v3084, 0.0
        %v3093 = vmax.f32 %v3085, 0.0
        %v3094 = vmax.f32 %v3086, 0.0
        %v3095 = vmax.f32 %v3087, 0.0
        %v3096 = vmax.f32 %v3088, 0.0
        %v3097 = vmax.f32 %v3089, 0.0
        %v3098 = vmax.f32 %v3090, 0.0
        %v3099 = vld [vmem:[%s15] sm:$0xff]
        %v3100 = vld [vmem:[%s15 + $0x8] sm:$0xff]
        %v3102 = vsel %vm2657, %v3099, 0
        %v3105 = vsel %vm2657, %v3100, 0
        %3107 = vmatpush.msra.mxu0 0.0
        %3108 = vmatpush.msra.mxu0 0.0
        %3109 = vmatpush.msra.mxu0 0.0
        %3110 = vmatpush.msra.mxu0 0.0
        %3111 = vmatpush.msra.mxu0 0.0
        %3112 = vmatpush.msra.mxu0 0.0
        %3113 = vmatpush.msra.mxu0 0.0
        %3114 = vmatpush.msra.mxu0 0.0
        %3115 = vmatpush.msra.mxu0 %v3098
        %3116 = vmatpush.msra.mxu0 %v3097
        %3117 = vmatpush.msra.mxu0 %v3096
        %3118 = vmatpush.msra.mxu0 %v3095
        %3119 = vmatpush.msra.mxu0 %v3094
        %3120 = vmatpush.msra.mxu0 %v3093
        %3121 = vmatpush.msra.mxu0 %v3092
        %3122 = vmatpush.msra.mxu0 %v3091
        %3123 = vmatmul.f32.gmra.mxu0 %v3102
        %v3124 = vpop.f32.mrf.mxu0
        %v3125 = vadd.f32 0.0, %v3124
        %3126 = vmatmul.f32.gmra.mxu0 %v3105
        %v3127 = vpop.f32.mrf.mxu0
        %v3128 = vadd.f32 0.0, %v3127
        %3129 = vdwg.mxu0
        %v3130 = vld [vmem:[#allocation10] sm:$0xff]
        %s3131 = scalar_lea.vmem %s15, 16
        %v3132 = vld [vmem:[%s3131] sm:$0xff]
        %v3133 = vld [vmem:[%s3131 + $0x8] sm:$0xff]
        %v3135 = vsel %vm2657, %v3132, 0
        %v3138 = vsel %vm2657, %v3133, 0
        %3140 = vmatpush.msra.mxu0 0.0
        %3141 = vmatpush.msra.mxu0 0.0
        %3142 = vmatpush.msra.mxu0 0.0
        %3143 = vmatpush.msra.mxu0 0.0
        %3144 = vmatpush.msra.mxu0 0.0
        %3145 = vmatpush.msra.mxu0 0.0
        %3146 = vmatpush.msra.mxu0 0.0
        %3147 = vmatpush.msra.mxu0 0.0
        %3148 = vmatpush.msra.mxu0 %v3098
        %3149 = vmatpush.msra.mxu0 %v3097
        %3150 = vmatpush.msra.mxu0 %v3096
        %3151 = vmatpush.msra.mxu0 %v3095
        %3152 = vmatpush.msra.mxu0 %v3094
        %3153 = vmatpush.msra.mxu0 %v3093
        %3154 = vmatpush.msra.mxu0 %v3092
        %3155 = vmatpush.msra.mxu0 %v3091
        %3156 = vmatmul.f32.gmra.mxu0 %v3135
        %v3157 = vpop.f32.mrf.mxu0
        %v3158 = vadd.f32 0.0, %v3157
        %3159 = vmatmul.f32.gmra.mxu0 %v3138
        %v3160 = vpop.f32.mrf.mxu0
        %v3161 = vadd.f32 0.0, %v3160
        %3162 = vdwg.mxu0
        %s3163 = scalar_lea.vmem [#allocation10], 8
        %v3164 = vld [vmem:[%s3163] sm:$0xff]
        %vm3165 = vcmask 64512
        %v3167 = vsel %vm3165, %v3158, 0
        %v3170 = vsel %vm3165, %v3161, 0
        %3172 = vmatpush.msra.mxu0 0.0
        %3173 = vmatpush.msra.mxu0 0.0
        %3174 = vmatpush.msra.mxu0 0.0
        %3175 = vmatpush.msra.mxu0 0.0
        %3176 = vmatpush.msra.mxu0 0.0
        %3177 = vmatpush.msra.mxu0 0.0
        %3178 = vmatpush.msra.mxu0 0.0
        %3179 = vmatpush.msra.mxu0 0.0
        %3180 = vmatpush.msra.mxu0 0.0
        %3181 = vmatpush.msra.mxu0 0.0
        %3182 = vmatpush.msra.mxu0 0.0
        %3183 = vmatpush.msra.mxu0 0.0
        %3184 = vmatpush.msra.mxu0 0.0
        %3185 = vmatpush.msra.mxu0 0.0
        %3186 = vmatpush.msra.mxu0 0.0
        %3187 = vmatpush.msra.mxu0 %v3164
        %3188 = vmatmul.f32.gmra.mxu0 %v3167
        %v3189 = vpop.f32.mrf.mxu0
        %v3190 = vadd.f32 0.0, %v3189
        %3191 = vmatmul.f32.gmra.mxu0 %v3170
        %v3192 = vpop.f32.mrf.mxu0
        %v3193 = vadd.f32 0.0, %v3192
        %3194 = vdwg.mxu0
        %v3196 = vsel %vm3165, %v3125, 0
        %v3199 = vsel %vm3165, %v3128, 0
        %3201 = vmatpush.msra.mxu0 0.0
        %3202 = vmatpush.msra.mxu0 0.0
        %3203 = vmatpush.msra.mxu0 0.0
        %3204 = vmatpush.msra.mxu0 0.0
        %3205 = vmatpush.msra.mxu0 0.0
        %3206 = vmatpush.msra.mxu0 0.0
        %3207 = vmatpush.msra.mxu0 0.0
        %3208 = vmatpush.msra.mxu0 0.0
        %3209 = vmatpush.msra.mxu0 0.0
        %3210 = vmatpush.msra.mxu0 0.0
        %3211 = vmatpush.msra.mxu0 0.0
        %3212 = vmatpush.msra.mxu0 0.0
        %3213 = vmatpush.msra.mxu0 0.0
        %3214 = vmatpush.msra.mxu0 0.0
        %3215 = vmatpush.msra.mxu0 0.0
        %3216 = vmatpush.msra.mxu0 %v3130
        %3217 = vmatmul.f32.gmra.mxu0 %v3196
        %v3218 = vpop.f32.mrf.mxu0
        %v3219 = vadd.f32 %v3190, %v3218
        %3220 = vmatmul.f32.gmra.mxu0 %v3199
        %v3221 = vpop.f32.mrf.mxu0
        %v3222 = vadd.f32 %v3193, %v3221
        %3223 = vdwg.mxu0
        %s3224 = scalar_lea.vmem %s15, 32
        %v3225 = vld [vmem:[%s3224] sm:$0xff]
        %v3226 = vld [vmem:[%s3224 + $0x8] sm:$0xff]
        %v3228 = vsel %vm2657, %v3225, 0
        %v3231 = vsel %vm2657, %v3226, 0
        %3233 = vmatpush.msra.mxu0 0.0
        %3234 = vmatpush.msra.mxu0 0.0
        %3235 = vmatpush.msra.mxu0 0.0
        %3236 = vmatpush.msra.mxu0 0.0
        %3237 = vmatpush.msra.mxu0 0.0
        %3238 = vmatpush.msra.mxu0 0.0
        %3239 = vmatpush.msra.mxu0 0.0
        %3240 = vmatpush.msra.mxu0 0.0
        %3241 = vmatpush.msra.mxu0 %v3098
        %3242 = vmatpush.msra.mxu0 %v3097
        %3243 = vmatpush.msra.mxu0 %v3096
        %3244 = vmatpush.msra.mxu0 %v3095
        %3245 = vmatpush.msra.mxu0 %v3094
        %3246 = vmatpush.msra.mxu0 %v3093
        %3247 = vmatpush.msra.mxu0 %v3092
        %3248 = vmatpush.msra.mxu0 %v3091
        %3249 = vmatmul.f32.gmra.mxu0 %v3228
        %v3250 = vpop.f32.mrf.mxu0
        %v3251 = vadd.f32 0.0, %v3250
        %3252 = vmatmul.f32.gmra.mxu0 %v3231
        %v3253 = vpop.f32.mrf.mxu0
        %v3254 = vadd.f32 0.0, %v3253
        %3255 = vdwg.mxu0
        %s3256 = scalar_lea.vmem [#allocation10], 16
        %v3257 = vld [vmem:[%s3256] sm:$0xff]
        %v3259 = vsel %vm3165, %v3251, 0
        %v3262 = vsel %vm3165, %v3254, 0
        %3264 = vmatpush.msra.mxu0 0.0
        %3265 = vmatpush.msra.mxu0 0.0
        %3266 = vmatpush.msra.mxu0 0.0
        %3267 = vmatpush.msra.mxu0 0.0
        %3268 = vmatpush.msra.mxu0 0.0
        %3269 = vmatpush.msra.mxu0 0.0
        %3270 = vmatpush.msra.mxu0 0.0
        %3271 = vmatpush.msra.mxu0 0.0
        %3272 = vmatpush.msra.mxu0 0.0
        %3273 = vmatpush.msra.mxu0 0.0
        %3274 = vmatpush.msra.mxu0 0.0
        %3275 = vmatpush.msra.mxu0 0.0
        %3276 = vmatpush.msra.mxu0 0.0
        %3277 = vmatpush.msra.mxu0 0.0
        %3278 = vmatpush.msra.mxu0 0.0
        %3279 = vmatpush.msra.mxu0 %v3257
        %3280 = vmatmul.f32.gmra.mxu0 %v3259
        %v3281 = vpop.f32.mrf.mxu0
        %v3282 = vadd.f32 0.0, %v3281
        %3283 = vmatmul.f32.gmra.mxu0 %v3262
        %v3284 = vpop.f32.mrf.mxu0
        %v3285 = vadd.f32 0.0, %v3284
        %3286 = vdwg.mxu0
        %v3287 = vadd.f32 %v3219, %v3282
        %v3288 = vadd.f32 %v3222, %v3285
        %s3289 = scalar_lea.vmem %s15, 48
        %v3290 = vld [vmem:[%s3289] sm:$0xff]
        %v3291 = vld [vmem:[%s3289 + $0x8] sm:$0xff]
        %v3293 = vsel %vm2657, %v3290, 0
        %v3296 = vsel %vm2657, %v3291, 0
        %3298 = vmatpush.msra.mxu0 0.0
        %3299 = vmatpush.msra.mxu0 0.0
        %3300 = vmatpush.msra.mxu0 0.0
        %3301 = vmatpush.msra.mxu0 0.0
        %3302 = vmatpush.msra.mxu0 0.0
        %3303 = vmatpush.msra.mxu0 0.0
        %3304 = vmatpush.msra.mxu0 0.0
        %3305 = vmatpush.msra.mxu0 0.0
        %3306 = vmatpush.msra.mxu0 %v3098
        %3307 = vmatpush.msra.mxu0 %v3097
        %3308 = vmatpush.msra.mxu0 %v3096
        %3309 = vmatpush.msra.mxu0 %v3095
        %3310 = vmatpush.msra.mxu0 %v3094
        %3311 = vmatpush.msra.mxu0 %v3093
        %3312 = vmatpush.msra.mxu0 %v3092
        %3313 = vmatpush.msra.mxu0 %v3091
        %3314 = vmatmul.f32.gmra.mxu0 %v3293
        %v3315 = vpop.f32.mrf.mxu0
        %v3316 = vadd.f32 0.0, %v3315
        %3317 = vmatmul.f32.gmra.mxu0 %v3296
        %v3318 = vpop.f32.mrf.mxu0
        %v3319 = vadd.f32 0.0, %v3318
        %3320 = vdwg.mxu0
        %s3321 = scalar_lea.vmem [#allocation10], 24
        %v3322 = vld [vmem:[%s3321] sm:$0xff]
        %v3324 = vsel %vm3165, %v3316, 0
        %v3327 = vsel %vm3165, %v3319, 0
        %3329 = vmatpush.msra.mxu0 0.0
        %3330 = vmatpush.msra.mxu0 0.0
        %3331 = vmatpush.msra.mxu0 0.0
        %3332 = vmatpush.msra.mxu0 0.0
        %3333 = vmatpush.msra.mxu0 0.0
        %3334 = vmatpush.msra.mxu0 0.0
        %3335 = vmatpush.msra.mxu0 0.0
        %3336 = vmatpush.msra.mxu0 0.0
        %3337 = vmatpush.msra.mxu0 0.0
        %3338 = vmatpush.msra.mxu0 0.0
        %3339 = vmatpush.msra.mxu0 0.0
        %3340 = vmatpush.msra.mxu0 0.0
        %3341 = vmatpush.msra.mxu0 0.0
        %3342 = vmatpush.msra.mxu0 0.0
        %3343 = vmatpush.msra.mxu0 0.0
        %3344 = vmatpush.msra.mxu0 %v3322
        %3345 = vmatmul.f32.gmra.mxu0 %v3324
        %v3346 = vpop.f32.mrf.mxu0
        %v3347 = vadd.f32 0.0, %v3346
        %3348 = vmatmul.f32.gmra.mxu0 %v3327
        %v3349 = vpop.f32.mrf.mxu0
        %v3350 = vadd.f32 0.0, %v3349
        %3351 = vdwg.mxu0
        %v3352 = vadd.f32 %v3287, %v3347
        %v3353 = vadd.f32 %v3288, %v3350
        %s3354 = scalar_lea.vmem %s15, 64
        %v3355 = vld [vmem:[%s3354] sm:$0xff]
        %v3356 = vld [vmem:[%s3354 + $0x8] sm:$0xff]
        %v3358 = vsel %vm2657, %v3355, 0
        %v3361 = vsel %vm2657, %v3356, 0
        %3363 = vmatpush.msra.mxu0 0.0
        %3364 = vmatpush.msra.mxu0 0.0
        %3365 = vmatpush.msra.mxu0 0.0
        %3366 = vmatpush.msra.mxu0 0.0
        %3367 = vmatpush.msra.mxu0 0.0
        %3368 = vmatpush.msra.mxu0 0.0
        %3369 = vmatpush.msra.mxu0 0.0
        %3370 = vmatpush.msra.mxu0 0.0
        %3371 = vmatpush.msra.mxu0 %v3098
        %3372 = vmatpush.msra.mxu0 %v3097
        %3373 = vmatpush.msra.mxu0 %v3096
        %3374 = vmatpush.msra.mxu0 %v3095
        %3375 = vmatpush.msra.mxu0 %v3094
        %3376 = vmatpush.msra.mxu0 %v3093
        %3377 = vmatpush.msra.mxu0 %v3092
        %3378 = vmatpush.msra.mxu0 %v3091
        %3379 = vmatmul.f32.gmra.mxu0 %v3358
        %v3380 = vpop.f32.mrf.mxu0
        %v3381 = vadd.f32 0.0, %v3380
        %3382 = vmatmul.f32.gmra.mxu0 %v3361
        %v3383 = vpop.f32.mrf.mxu0
        %v3384 = vadd.f32 0.0, %v3383
        %3385 = vdwg.mxu0
        %s3386 = scalar_lea.vmem [#allocation10], 32
        %v3387 = vld [vmem:[%s3386] sm:$0xff]
        %v3389 = vsel %vm3165, %v3381, 0
        %v3392 = vsel %vm3165, %v3384, 0
        %3394 = vmatpush.msra.mxu0 0.0
        %3395 = vmatpush.msra.mxu0 0.0
        %3396 = vmatpush.msra.mxu0 0.0
        %3397 = vmatpush.msra.mxu0 0.0
        %3398 = vmatpush.msra.mxu0 0.0
        %3399 = vmatpush.msra.mxu0 0.0
        %3400 = vmatpush.msra.mxu0 0.0
        %3401 = vmatpush.msra.mxu0 0.0
        %3402 = vmatpush.msra.mxu0 0.0
        %3403 = vmatpush.msra.mxu0 0.0
        %3404 = vmatpush.msra.mxu0 0.0
        %3405 = vmatpush.msra.mxu0 0.0
        %3406 = vmatpush.msra.mxu0 0.0
        %3407 = vmatpush.msra.mxu0 0.0
        %3408 = vmatpush.msra.mxu0 0.0
        %3409 = vmatpush.msra.mxu0 %v3387
        %3410 = vmatmul.f32.gmra.mxu0 %v3389
        %v3411 = vpop.f32.mrf.mxu0
        %v3412 = vadd.f32 0.0, %v3411
        %3413 = vmatmul.f32.gmra.mxu0 %v3392
        %v3414 = vpop.f32.mrf.mxu0
        %v3415 = vadd.f32 0.0, %v3414
        %3416 = vdwg.mxu0
        %v3417 = vadd.f32 %v3352, %v3412
        %v3418 = vadd.f32 %v3353, %v3415
        %s3419 = scalar_lea.vmem %s15, 80
        %v3420 = vld [vmem:[%s3419] sm:$0xff]
        %v3421 = vld [vmem:[%s3419 + $0x8] sm:$0xff]
        %v3423 = vsel %vm2657, %v3420, 0
        %v3426 = vsel %vm2657, %v3421, 0
        %3428 = vmatpush.msra.mxu0 0.0
        %3429 = vmatpush.msra.mxu0 0.0
        %3430 = vmatpush.msra.mxu0 0.0
        %3431 = vmatpush.msra.mxu0 0.0
        %3432 = vmatpush.msra.mxu0 0.0
        %3433 = vmatpush.msra.mxu0 0.0
        %3434 = vmatpush.msra.mxu0 0.0
        %3435 = vmatpush.msra.mxu0 0.0
        %3436 = vmatpush.msra.mxu0 %v3098
        %3437 = vmatpush.msra.mxu0 %v3097
        %3438 = vmatpush.msra.mxu0 %v3096
        %3439 = vmatpush.msra.mxu0 %v3095
        %3440 = vmatpush.msra.mxu0 %v3094
        %3441 = vmatpush.msra.mxu0 %v3093
        %3442 = vmatpush.msra.mxu0 %v3092
        %3443 = vmatpush.msra.mxu0 %v3091
        %3444 = vmatmul.f32.gmra.mxu0 %v3423
        %v3445 = vpop.f32.mrf.mxu0
        %v3446 = vadd.f32 0.0, %v3445
        %3447 = vmatmul.f32.gmra.mxu0 %v3426
        %v3448 = vpop.f32.mrf.mxu0
        %v3449 = vadd.f32 0.0, %v3448
        %3450 = vdwg.mxu0
        %s3451 = scalar_lea.vmem [#allocation10], 40
        %v3452 = vld [vmem:[%s3451] sm:$0xff]
        %v3454 = vsel %vm3165, %v3446, 0
        %v3457 = vsel %vm3165, %v3449, 0
        %3459 = vmatpush.msra.mxu0 0.0
        %3460 = vmatpush.msra.mxu0 0.0
        %3461 = vmatpush.msra.mxu0 0.0
        %3462 = vmatpush.msra.mxu0 0.0
        %3463 = vmatpush.msra.mxu0 0.0
        %3464 = vmatpush.msra.mxu0 0.0
        %3465 = vmatpush.msra.mxu0 0.0
        %3466 = vmatpush.msra.mxu0 0.0
        %3467 = vmatpush.msra.mxu0 0.0
        %3468 = vmatpush.msra.mxu0 0.0
        %3469 = vmatpush.msra.mxu0 0.0
        %3470 = vmatpush.msra.mxu0 0.0
        %3471 = vmatpush.msra.mxu0 0.0
        %3472 = vmatpush.msra.mxu0 0.0
        %3473 = vmatpush.msra.mxu0 0.0
        %3474 = vmatpush.msra.mxu0 %v3452
        %3475 = vmatmul.f32.gmra.mxu0 %v3454
        %v3476 = vpop.f32.mrf.mxu0
        %v3477 = vadd.f32 0.0, %v3476
        %3478 = vmatmul.f32.gmra.mxu0 %v3457
        %v3479 = vpop.f32.mrf.mxu0
        %v3480 = vadd.f32 0.0, %v3479
        %3481 = vdwg.mxu0
        %v3482 = vadd.f32 %v3417, %v3477
        %v3483 = vadd.f32 %v3418, %v3480
        %s3484 = scalar_lea.vmem %s15, 96
        %v3485 = vld [vmem:[%s3484] sm:$0xff]
        %v3486 = vld [vmem:[%s3484 + $0x8] sm:$0xff]
        %v3488 = vsel %vm2657, %v3485, 0
        %v3491 = vsel %vm2657, %v3486, 0
        %3493 = vmatpush.msra.mxu0 0.0
        %3494 = vmatpush.msra.mxu0 0.0
        %3495 = vmatpush.msra.mxu0 0.0
        %3496 = vmatpush.msra.mxu0 0.0
        %3497 = vmatpush.msra.mxu0 0.0
        %3498 = vmatpush.msra.mxu0 0.0
        %3499 = vmatpush.msra.mxu0 0.0
        %3500 = vmatpush.msra.mxu0 0.0
        %3501 = vmatpush.msra.mxu0 %v3098
        %3502 = vmatpush.msra.mxu0 %v3097
        %3503 = vmatpush.msra.mxu0 %v3096
        %3504 = vmatpush.msra.mxu0 %v3095
        %3505 = vmatpush.msra.mxu0 %v3094
        %3506 = vmatpush.msra.mxu0 %v3093
        %3507 = vmatpush.msra.mxu0 %v3092
        %3508 = vmatpush.msra.mxu0 %v3091
        %3509 = vmatmul.f32.gmra.mxu0 %v3488
        %v3510 = vpop.f32.mrf.mxu0
        %v3511 = vadd.f32 0.0, %v3510
        %3512 = vmatmul.f32.gmra.mxu0 %v3491
        %v3513 = vpop.f32.mrf.mxu0
        %v3514 = vadd.f32 0.0, %v3513
        %3515 = vdwg.mxu0
        %s3516 = scalar_lea.vmem [#allocation10], 48
        %v3517 = vld [vmem:[%s3516] sm:$0xff]
        %v3519 = vsel %vm3165, %v3511, 0
        %v3522 = vsel %vm3165, %v3514, 0
        %3524 = vmatpush.msra.mxu0 0.0
        %3525 = vmatpush.msra.mxu0 0.0
        %3526 = vmatpush.msra.mxu0 0.0
        %3527 = vmatpush.msra.mxu0 0.0
        %3528 = vmatpush.msra.mxu0 0.0
        %3529 = vmatpush.msra.mxu0 0.0
        %3530 = vmatpush.msra.mxu0 0.0
        %3531 = vmatpush.msra.mxu0 0.0
        %3532 = vmatpush.msra.mxu0 0.0
        %3533 = vmatpush.msra.mxu0 0.0
        %3534 = vmatpush.msra.mxu0 0.0
        %3535 = vmatpush.msra.mxu0 0.0
        %3536 = vmatpush.msra.mxu0 0.0
        %3537 = vmatpush.msra.mxu0 0.0
        %3538 = vmatpush.msra.mxu0 0.0
        %3539 = vmatpush.msra.mxu0 %v3517
        %3540 = vmatmul.f32.gmra.mxu0 %v3519
        %v3541 = vpop.f32.mrf.mxu0
        %v3542 = vadd.f32 0.0, %v3541
        %3543 = vmatmul.f32.gmra.mxu0 %v3522
        %v3544 = vpop.f32.mrf.mxu0
        %v3545 = vadd.f32 0.0, %v3544
        %3546 = vdwg.mxu0
        %v3547 = vadd.f32 %v3482, %v3542
        %v3548 = vadd.f32 %v3483, %v3545
        %s3549 = scalar_lea.vmem %s15, 112
        %v3550 = vld [vmem:[%s3549] sm:$0xff]
        %v3551 = vld [vmem:[%s3549 + $0x8] sm:$0xff]
        %v3553 = vsel %vm2657, %v3550, 0
        %v3556 = vsel %vm2657, %v3551, 0
        %3558 = vmatpush.msra.mxu0 0.0
        %3559 = vmatpush.msra.mxu0 0.0
        %3560 = vmatpush.msra.mxu0 0.0
        %3561 = vmatpush.msra.mxu0 0.0
        %3562 = vmatpush.msra.mxu0 0.0
        %3563 = vmatpush.msra.mxu0 0.0
        %3564 = vmatpush.msra.mxu0 0.0
        %3565 = vmatpush.msra.mxu0 0.0
        %3566 = vmatpush.msra.mxu0 %v3098
        %3567 = vmatpush.msra.mxu0 %v3097
        %3568 = vmatpush.msra.mxu0 %v3096
        %3569 = vmatpush.msra.mxu0 %v3095
        %3570 = vmatpush.msra.mxu0 %v3094
        %3571 = vmatpush.msra.mxu0 %v3093
        %3572 = vmatpush.msra.mxu0 %v3092
        %3573 = vmatpush.msra.mxu0 %v3091
        %3574 = vmatmul.f32.gmra.mxu0 %v3553
        %v3575 = vpop.f32.mrf.mxu0
        %v3576 = vadd.f32 0.0, %v3575
        %3577 = vmatmul.f32.gmra.mxu0 %v3556
        %v3578 = vpop.f32.mrf.mxu0
        %v3579 = vadd.f32 0.0, %v3578
        %3580 = vdwg.mxu0
        %s3581 = scalar_lea.vmem [#allocation10], 56
        %v3582 = vld [vmem:[%s3581] sm:$0xff]
        %v3584 = vsel %vm3165, %v3576, 0
        %v3587 = vsel %vm3165, %v3579, 0
        %3589 = vmatpush.msra.mxu0 0.0
        %3590 = vmatpush.msra.mxu0 0.0
        %3591 = vmatpush.msra.mxu0 0.0
        %3592 = vmatpush.msra.mxu0 0.0
        %3593 = vmatpush.msra.mxu0 0.0
        %3594 = vmatpush.msra.mxu0 0.0
        %3595 = vmatpush.msra.mxu0 0.0
        %3596 = vmatpush.msra.mxu0 0.0
        %3597 = vmatpush.msra.mxu0 0.0
        %3598 = vmatpush.msra.mxu0 0.0
        %3599 = vmatpush.msra.mxu0 0.0
        %3600 = vmatpush.msra.mxu0 0.0
        %3601 = vmatpush.msra.mxu0 0.0
        %3602 = vmatpush.msra.mxu0 0.0
        %3603 = vmatpush.msra.mxu0 0.0
        %3604 = vmatpush.msra.mxu0 %v3582
        %3605 = vmatmul.f32.gmra.mxu0 %v3584
        %v3606 = vpop.f32.mrf.mxu0
        %v3607 = vadd.f32 0.0, %v3606
        %3608 = vmatmul.f32.gmra.mxu0 %v3587
        %v3609 = vpop.f32.mrf.mxu0
        %v3610 = vadd.f32 0.0, %v3609
        %3611 = vdwg.mxu0
        %v3612 = vadd.f32 %v3547, %v3607
        %v3613 = vadd.f32 %v3548, %v3610
        %s3614 = scalar_lea.vmem %s15, 128
        %v3615 = vld [vmem:[%s3614] sm:$0xff]
        %v3616 = vld [vmem:[%s3614 + $0x8] sm:$0xff]
        %v3618 = vsel %vm2657, %v3615, 0
        %v3621 = vsel %vm2657, %v3616, 0
        %3623 = vmatpush.msra.mxu0 0.0
        %3624 = vmatpush.msra.mxu0 0.0
        %3625 = vmatpush.msra.mxu0 0.0
        %3626 = vmatpush.msra.mxu0 0.0
        %3627 = vmatpush.msra.mxu0 0.0
        %3628 = vmatpush.msra.mxu0 0.0
        %3629 = vmatpush.msra.mxu0 0.0
        %3630 = vmatpush.msra.mxu0 0.0
        %3631 = vmatpush.msra.mxu0 %v3098
        %3632 = vmatpush.msra.mxu0 %v3097
        %3633 = vmatpush.msra.mxu0 %v3096
        %3634 = vmatpush.msra.mxu0 %v3095
        %3635 = vmatpush.msra.mxu0 %v3094
        %3636 = vmatpush.msra.mxu0 %v3093
        %3637 = vmatpush.msra.mxu0 %v3092
        %3638 = vmatpush.msra.mxu0 %v3091
        %3639 = vmatmul.f32.gmra.mxu0 %v3618
        %v3640 = vpop.f32.mrf.mxu0
        %v3641 = vadd.f32 0.0, %v3640
        %3642 = vmatmul.f32.gmra.mxu0 %v3621
        %v3643 = vpop.f32.mrf.mxu0
        %v3644 = vadd.f32 0.0, %v3643
        %3645 = vdwg.mxu0
        %s3646 = scalar_lea.vmem [#allocation10], 64
        %v3647 = vld [vmem:[%s3646] sm:$0xff]
        %v3649 = vsel %vm3165, %v3641, 0
        %v3652 = vsel %vm3165, %v3644, 0
        %3654 = vmatpush.msra.mxu0 0.0
        %3655 = vmatpush.msra.mxu0 0.0
        %3656 = vmatpush.msra.mxu0 0.0
        %3657 = vmatpush.msra.mxu0 0.0
        %3658 = vmatpush.msra.mxu0 0.0
        %3659 = vmatpush.msra.mxu0 0.0
        %3660 = vmatpush.msra.mxu0 0.0
        %3661 = vmatpush.msra.mxu0 0.0
        %3662 = vmatpush.msra.mxu0 0.0
        %3663 = vmatpush.msra.mxu0 0.0
        %3664 = vmatpush.msra.mxu0 0.0
        %3665 = vmatpush.msra.mxu0 0.0
        %3666 = vmatpush.msra.mxu0 0.0
        %3667 = vmatpush.msra.mxu0 0.0
        %3668 = vmatpush.msra.mxu0 0.0
        %3669 = vmatpush.msra.mxu0 %v3647
        %3670 = vmatmul.f32.gmra.mxu0 %v3649
        %v3671 = vpop.f32.mrf.mxu0
        %v3672 = vadd.f32 0.0, %v3671
        %3673 = vmatmul.f32.gmra.mxu0 %v3652
        %v3674 = vpop.f32.mrf.mxu0
        %v3675 = vadd.f32 0.0, %v3674
        %3676 = vdwg.mxu0
        %v3677 = vadd.f32 %v3612, %v3672
        %v3678 = vadd.f32 %v3613, %v3675
        %v3679 = vld [vmem:[%s18] sm:$0x1]
        %v3681 = vperm.slane %v3679, 0
        %v3683 = vmul.f32 %v3677, %v3681
        %v3684 = vmul.f32 %v3678, %v3681
        %v3685 = vld [vmem:[%s19] sm:$0x1]
        %v3687 = vperm.slane %v3685, 0
        %v3689 = vadd.f32 %v3683, %v3687
        %v3690 = vadd.f32 %v3684, %v3687
        %v3691 = vmax.f32 %v3689, 0.0
        %v3692 = vmax.f32 %v3690, 0.0
        %v3693 = vld [vmem:[%s16] sm:$0xff]
        %v3694 = vld [vmem:[%s16 + $0x8] sm:$0xff]
        %3696 = vset.pattern.permute.xlu0 0
        %3697 = vperm.xlu0 %3696, %v3693
        %v3698 = vpop.permute.xlu0 %3697
        %3701 = vset.pattern.permute.xlu0 0
        %3702 = vperm.xlu0 %3701, %v3694
        %v3703 = vpop.permute.xlu0 %3702
        %3705 = vmatpush.msra.mxu0 0.0
        %3706 = vmatpush.msra.mxu0 0.0
        %3707 = vmatpush.msra.mxu0 0.0
        %3708 = vmatpush.msra.mxu0 0.0
        %3709 = vmatpush.msra.mxu0 0.0
        %3710 = vmatpush.msra.mxu0 0.0
        %3711 = vmatpush.msra.mxu0 0.0
        %3712 = vmatpush.msra.mxu0 0.0
        %3713 = vmatpush.msra.mxu0 %v2999
        %3714 = vmatpush.msra.mxu0 %v2998
        %3715 = vmatpush.msra.mxu0 %v2997
        %3716 = vmatpush.msra.mxu0 %v2996
        %3717 = vmatpush.msra.mxu0 %v2995
        %3718 = vmatpush.msra.mxu0 %v2994
        %3719 = vmatpush.msra.mxu0 %v2993
        %3720 = vmatpush.msra.mxu0 %v2992
        %3721 = vmatmul.f32.gmra.mxu0 %v3102
        %v3722 = vpop.f32.mrf.mxu0
        %v3723 = vadd.f32 %v3698, %v3722
        %3724 = vmatmul.f32.gmra.mxu0 %v3105
        %v3725 = vpop.f32.mrf.mxu0
        %v3726 = vadd.f32 %v3703, %v3725
        %3727 = vdwg.mxu0
        %s3728 = scalar_lea.vmem %s16, 16
        %v3729 = vld [vmem:[%s3728] sm:$0xff]
        %v3730 = vld [vmem:[%s3728 + $0x8] sm:$0xff]
        %3732 = vset.pattern.permute.xlu0 0
        %3733 = vperm.xlu0 %3732, %v3729
        %v3734 = vpop.permute.xlu0 %3733
        %3737 = vset.pattern.permute.xlu0 0
        %3738 = vperm.xlu0 %3737, %v3730
        %v3739 = vpop.permute.xlu0 %3738
        %3741 = vmatpush.msra.mxu0 0.0
        %3742 = vmatpush.msra.mxu0 0.0
        %3743 = vmatpush.msra.mxu0 0.0
        %3744 = vmatpush.msra.mxu0 0.0
        %3745 = vmatpush.msra.mxu0 0.0
        %3746 = vmatpush.msra.mxu0 0.0
        %3747 = vmatpush.msra.mxu0 0.0
        %3748 = vmatpush.msra.mxu0 0.0
        %3749 = vmatpush.msra.mxu0 %v2999
        %3750 = vmatpush.msra.mxu0 %v2998
        %3751 = vmatpush.msra.mxu0 %v2997
        %3752 = vmatpush.msra.mxu0 %v2996
        %3753 = vmatpush.msra.mxu0 %v2995
        %3754 = vmatpush.msra.mxu0 %v2994
        %3755 = vmatpush.msra.mxu0 %v2993
        %3756 = vmatpush.msra.mxu0 %v2992
        %3757 = vmatmul.f32.gmra.mxu0 %v3135
        %v3758 = vpop.f32.mrf.mxu0
        %v3759 = vadd.f32 %v3734, %v3758
        %3760 = vmatmul.f32.gmra.mxu0 %v3138
        %v3761 = vpop.f32.mrf.mxu0
        %v3762 = vadd.f32 %v3739, %v3761
        %3763 = vdwg.mxu0
        %v3764 = vmax.f32 %v3723, %v3759
        %v3765 = vmax.f32 %v3726, %v3762
        %s3766 = scalar_lea.vmem %s16, 32
        %v3767 = vld [vmem:[%s3766] sm:$0xff]
        %v3768 = vld [vmem:[%s3766 + $0x8] sm:$0xff]
        %3770 = vset.pattern.permute.xlu0 0
        %3771 = vperm.xlu0 %3770, %v3767
        %v3772 = vpop.permute.xlu0 %3771
        %3775 = vset.pattern.permute.xlu0 0
        %3776 = vperm.xlu0 %3775, %v3768
        %v3777 = vpop.permute.xlu0 %3776
        %3779 = vmatpush.msra.mxu0 0.0
        %3780 = vmatpush.msra.mxu0 0.0
        %3781 = vmatpush.msra.mxu0 0.0
        %3782 = vmatpush.msra.mxu0 0.0
        %3783 = vmatpush.msra.mxu0 0.0
        %3784 = vmatpush.msra.mxu0 0.0
        %3785 = vmatpush.msra.mxu0 0.0
        %3786 = vmatpush.msra.mxu0 0.0
        %3787 = vmatpush.msra.mxu0 %v2999
        %3788 = vmatpush.msra.mxu0 %v2998
        %3789 = vmatpush.msra.mxu0 %v2997
        %3790 = vmatpush.msra.mxu0 %v2996
        %3791 = vmatpush.msra.mxu0 %v2995
        %3792 = vmatpush.msra.mxu0 %v2994
        %3793 = vmatpush.msra.mxu0 %v2993
        %3794 = vmatpush.msra.mxu0 %v2992
        %3795 = vmatmul.f32.gmra.mxu0 %v3228
        %v3796 = vpop.f32.mrf.mxu0
        %v3797 = vadd.f32 %v3772, %v3796
        %3798 = vmatmul.f32.gmra.mxu0 %v3231
        %v3799 = vpop.f32.mrf.mxu0
        %v3800 = vadd.f32 %v3777, %v3799
        %3801 = vdwg.mxu0
        %v3802 = vmax.f32 %v3764, %v3797
        %v3803 = vmax.f32 %v3765, %v3800
        %s3804 = scalar_lea.vmem %s16, 48
        %v3805 = vld [vmem:[%s3804] sm:$0xff]
        %v3806 = vld [vmem:[%s3804 + $0x8] sm:$0xff]
        %3808 = vset.pattern.permute.xlu0 0
        %3809 = vperm.xlu0 %3808, %v3805
        %v3810 = vpop.permute.xlu0 %3809
        %3813 = vset.pattern.permute.xlu0 0
        %3814 = vperm.xlu0 %3813, %v3806
        %v3815 = vpop.permute.xlu0 %3814
        %3817 = vmatpush.msra.mxu0 0.0
        %3818 = vmatpush.msra.mxu0 0.0
        %3819 = vmatpush.msra.mxu0 0.0
        %3820 = vmatpush.msra.mxu0 0.0
        %3821 = vmatpush.msra.mxu0 0.0
        %3822 = vmatpush.msra.mxu0 0.0
        %3823 = vmatpush.msra.mxu0 0.0
        %3824 = vmatpush.msra.mxu0 0.0
        %3825 = vmatpush.msra.mxu0 %v2999
        %3826 = vmatpush.msra.mxu0 %v2998
        %3827 = vmatpush.msra.mxu0 %v2997
        %3828 = vmatpush.msra.mxu0 %v2996
        %3829 = vmatpush.msra.mxu0 %v2995
        %3830 = vmatpush.msra.mxu0 %v2994
        %3831 = vmatpush.msra.mxu0 %v2993
        %3832 = vmatpush.msra.mxu0 %v2992
        %3833 = vmatmul.f32.gmra.mxu0 %v3293
        %v3834 = vpop.f32.mrf.mxu0
        %v3835 = vadd.f32 %v3810, %v3834
        %3836 = vmatmul.f32.gmra.mxu0 %v3296
        %v3837 = vpop.f32.mrf.mxu0
        %v3838 = vadd.f32 %v3815, %v3837
        %3839 = vdwg.mxu0
        %v3840 = vmax.f32 %v3802, %v3835
        %v3841 = vmax.f32 %v3803, %v3838
        %s3842 = scalar_lea.vmem %s16, 64
        %v3843 = vld [vmem:[%s3842] sm:$0xff]
        %v3844 = vld [vmem:[%s3842 + $0x8] sm:$0xff]
        %3846 = vset.pattern.permute.xlu0 0
        %3847 = vperm.xlu0 %3846, %v3843
        %v3848 = vpop.permute.xlu0 %3847
        %3851 = vset.pattern.permute.xlu0 0
        %3852 = vperm.xlu0 %3851, %v3844
        %v3853 = vpop.permute.xlu0 %3852
        %3855 = vmatpush.msra.mxu0 0.0
        %3856 = vmatpush.msra.mxu0 0.0
        %3857 = vmatpush.msra.mxu0 0.0
        %3858 = vmatpush.msra.mxu0 0.0
        %3859 = vmatpush.msra.mxu0 0.0
        %3860 = vmatpush.msra.mxu0 0.0
        %3861 = vmatpush.msra.mxu0 0.0
        %3862 = vmatpush.msra.mxu0 0.0
        %3863 = vmatpush.msra.mxu0 %v2999
        %3864 = vmatpush.msra.mxu0 %v2998
        %3865 = vmatpush.msra.mxu0 %v2997
        %3866 = vmatpush.msra.mxu0 %v2996
        %3867 = vmatpush.msra.mxu0 %v2995
        %3868 = vmatpush.msra.mxu0 %v2994
        %3869 = vmatpush.msra.mxu0 %v2993
        %3870 = vmatpush.msra.mxu0 %v2992
        %3871 = vmatmul.f32.gmra.mxu0 %v3358
        %v3872 = vpop.f32.mrf.mxu0
        %v3873 = vadd.f32 %v3848, %v3872
        %3874 = vmatmul.f32.gmra.mxu0 %v3361
        %v3875 = vpop.f32.mrf.mxu0
        %v3876 = vadd.f32 %v3853, %v3875
        %3877 = vdwg.mxu0
        %v3878 = vmax.f32 %v3840, %v3873
        %v3879 = vmax.f32 %v3841, %v3876
        %s3880 = scalar_lea.vmem %s16, 80
        %v3881 = vld [vmem:[%s3880] sm:$0xff]
        %v3882 = vld [vmem:[%s3880 + $0x8] sm:$0xff]
        %3884 = vset.pattern.permute.xlu0 0
        %3885 = vperm.xlu0 %3884, %v3881
        %v3886 = vpop.permute.xlu0 %3885
        %3889 = vset.pattern.permute.xlu0 0
        %3890 = vperm.xlu0 %3889, %v3882
        %v3891 = vpop.permute.xlu0 %3890
        %3893 = vmatpush.msra.mxu0 0.0
        %3894 = vmatpush.msra.mxu0 0.0
        %3895 = vmatpush.msra.mxu0 0.0
        %3896 = vmatpush.msra.mxu0 0.0
        %3897 = vmatpush.msra.mxu0 0.0
        %3898 = vmatpush.msra.mxu0 0.0
        %3899 = vmatpush.msra.mxu0 0.0
        %3900 = vmatpush.msra.mxu0 0.0
        %3901 = vmatpush.msra.mxu0 %v2999
        %3902 = vmatpush.msra.mxu0 %v2998
        %3903 = vmatpush.msra.mxu0 %v2997
        %3904 = vmatpush.msra.mxu0 %v2996
        %3905 = vmatpush.msra.mxu0 %v2995
        %3906 = vmatpush.msra.mxu0 %v2994
        %3907 = vmatpush.msra.mxu0 %v2993
        %3908 = vmatpush.msra.mxu0 %v2992
        %3909 = vmatmul.f32.gmra.mxu0 %v3423
        %v3910 = vpop.f32.mrf.mxu0
        %v3911 = vadd.f32 %v3886, %v3910
        %3912 = vmatmul.f32.gmra.mxu0 %v3426
        %v3913 = vpop.f32.mrf.mxu0
        %v3914 = vadd.f32 %v3891, %v3913
        %3915 = vdwg.mxu0
        %v3916 = vmax.f32 %v3878, %v3911
        %v3917 = vmax.f32 %v3879, %v3914
        %s3918 = scalar_lea.vmem %s16, 96
        %v3919 = vld [vmem:[%s3918] sm:$0xff]
        %v3920 = vld [vmem:[%s3918 + $0x8] sm:$0xff]
        %3922 = vset.pattern.permute.xlu0 0
        %3923 = vperm.xlu0 %3922, %v3919
        %v3924 = vpop.permute.xlu0 %3923
        %3927 = vset.pattern.permute.xlu0 0
        %3928 = vperm.xlu0 %3927, %v3920
        %v3929 = vpop.permute.xlu0 %3928
        %3931 = vmatpush.msra.mxu0 0.0
        %3932 = vmatpush.msra.mxu0 0.0
        %3933 = vmatpush.msra.mxu0 0.0
        %3934 = vmatpush.msra.mxu0 0.0
        %3935 = vmatpush.msra.mxu0 0.0
        %3936 = vmatpush.msra.mxu0 0.0
        %3937 = vmatpush.msra.mxu0 0.0
        %3938 = vmatpush.msra.mxu0 0.0
        %3939 = vmatpush.msra.mxu0 %v2999
        %3940 = vmatpush.msra.mxu0 %v2998
        %3941 = vmatpush.msra.mxu0 %v2997
        %3942 = vmatpush.msra.mxu0 %v2996
        %3943 = vmatpush.msra.mxu0 %v2995
        %3944 = vmatpush.msra.mxu0 %v2994
        %3945 = vmatpush.msra.mxu0 %v2993
        %3946 = vmatpush.msra.mxu0 %v2992
        %3947 = vmatmul.f32.gmra.mxu0 %v3488
        %v3948 = vpop.f32.mrf.mxu0
        %v3949 = vadd.f32 %v3924, %v3948
        %3950 = vmatmul.f32.gmra.mxu0 %v3491
        %v3951 = vpop.f32.mrf.mxu0
        %v3952 = vadd.f32 %v3929, %v3951
        %3953 = vdwg.mxu0
        %v3954 = vmax.f32 %v3916, %v3949
        %v3955 = vmax.f32 %v3917, %v3952
        %s3956 = scalar_lea.vmem %s16, 112
        %v3957 = vld [vmem:[%s3956] sm:$0xff]
        %v3958 = vld [vmem:[%s3956 + $0x8] sm:$0xff]
        %3960 = vset.pattern.permute.xlu0 0
        %3961 = vperm.xlu0 %3960, %v3957
        %v3962 = vpop.permute.xlu0 %3961
        %3965 = vset.pattern.permute.xlu0 0
        %3966 = vperm.xlu0 %3965, %v3958
        %v3967 = vpop.permute.xlu0 %3966
        %3969 = vmatpush.msra.mxu0 0.0
        %3970 = vmatpush.msra.mxu0 0.0
        %3971 = vmatpush.msra.mxu0 0.0
        %3972 = vmatpush.msra.mxu0 0.0
        %3973 = vmatpush.msra.mxu0 0.0
        %3974 = vmatpush.msra.mxu0 0.0
        %3975 = vmatpush.msra.mxu0 0.0
        %3976 = vmatpush.msra.mxu0 0.0
        %3977 = vmatpush.msra.mxu0 %v2999
        %3978 = vmatpush.msra.mxu0 %v2998
        %3979 = vmatpush.msra.mxu0 %v2997
        %3980 = vmatpush.msra.mxu0 %v2996
        %3981 = vmatpush.msra.mxu0 %v2995
        %3982 = vmatpush.msra.mxu0 %v2994
        %3983 = vmatpush.msra.mxu0 %v2993
        %3984 = vmatpush.msra.mxu0 %v2992
        %3985 = vmatmul.f32.gmra.mxu0 %v3553
        %v3986 = vpop.f32.mrf.mxu0
        %v3987 = vadd.f32 %v3962, %v3986
        %3988 = vmatmul.f32.gmra.mxu0 %v3556
        %v3989 = vpop.f32.mrf.mxu0
        %v3990 = vadd.f32 %v3967, %v3989
        %3991 = vdwg.mxu0
        %v3992 = vmax.f32 %v3954, %v3987
        %v3993 = vmax.f32 %v3955, %v3990
        %s3994 = scalar_lea.vmem %s16, 128
        %v3995 = vld [vmem:[%s3994] sm:$0xff]
        %v3996 = vld [vmem:[%s3994 + $0x8] sm:$0xff]
        %3998 = vset.pattern.permute.xlu0 0
        %3999 = vperm.xlu0 %3998, %v3995
        %v4000 = vpop.permute.xlu0 %3999
        %4003 = vset.pattern.permute.xlu0 0
        %4004 = vperm.xlu0 %4003, %v3996
        %v4005 = vpop.permute.xlu0 %4004
        %4007 = vmatpush.msra.mxu0 0.0
        %4008 = vmatpush.msra.mxu0 0.0
        %4009 = vmatpush.msra.mxu0 0.0
        %4010 = vmatpush.msra.mxu0 0.0
        %4011 = vmatpush.msra.mxu0 0.0
        %4012 = vmatpush.msra.mxu0 0.0
        %4013 = vmatpush.msra.mxu0 0.0
        %4014 = vmatpush.msra.mxu0 0.0
        %4015 = vmatpush.msra.mxu0 %v2999
        %4016 = vmatpush.msra.mxu0 %v2998
        %4017 = vmatpush.msra.mxu0 %v2997
        %4018 = vmatpush.msra.mxu0 %v2996
        %4019 = vmatpush.msra.mxu0 %v2995
        %4020 = vmatpush.msra.mxu0 %v2994
        %4021 = vmatpush.msra.mxu0 %v2993
        %4022 = vmatpush.msra.mxu0 %v2992
        %4023 = vmatmul.f32.gmra.mxu0 %v3618
        %v4024 = vpop.f32.mrf.mxu0
        %v4025 = vadd.f32 %v4000, %v4024
        %4026 = vmatmul.f32.gmra.mxu0 %v3621
        %v4027 = vpop.f32.mrf.mxu0
        %v4028 = vadd.f32 %v4005, %v4027
        %4029 = vdwg.mxu0
        %v4030 = vmax.f32 %v3992, %v4025
        %v4031 = vmax.f32 %v3993, %v4028
        %v4032 = vld [vmem:[%s20] sm:$0xff]
        %v4033 = vld [vmem:[%s20 + $0x8] sm:$0xff]
        %v4035 = vsel %vm2467, %v4032, 0
        %v4038 = vsel %vm2467, %v4033, 0
        %4040 = vmatpush.msra.mxu0 0.0
        %4041 = vmatpush.msra.mxu0 0.0
        %4042 = vmatpush.msra.mxu0 0.0
        %4043 = vmatpush.msra.mxu0 0.0
        %4044 = vmatpush.msra.mxu0 0.0
        %4045 = vmatpush.msra.mxu0 0.0
        %4046 = vmatpush.msra.mxu0 0.0
        %4047 = vmatpush.msra.mxu0 0.0
        %4048 = vmatpush.msra.mxu0 0.0
        %4049 = vmatpush.msra.mxu0 0.0
        %4050 = vmatpush.msra.mxu0 0.0
        %4051 = vmatpush.msra.mxu0 0.0
        %4052 = vmatpush.msra.mxu0 0.0
        %4053 = vmatpush.msra.mxu0 0.0
        %4054 = vmatpush.msra.mxu0 %v3692
        %4055 = vmatpush.msra.mxu0 %v3691
        %4056 = vmatmul.f32.gmra.mxu0 %v4035
        %v4057 = vpop.f32.mrf.mxu0
        %v4058 = vadd.f32 0.0, %v4057
        %4059 = vmatmul.f32.gmra.mxu0 %v4038
        %v4060 = vpop.f32.mrf.mxu0
        %v4061 = vadd.f32 0.0, %v4060
        %4062 = vdwg.mxu0
        %v4063 = vld [vmem:[%s21] sm:$0xff]
        %v4064 = vld [vmem:[%s21 + $0x8] sm:$0xff]
        %4065 = vmatpush.msra.mxu0 0.0
        %4066 = vmatpush.msra.mxu0 0.0
        %4067 = vmatpush.msra.mxu0 0.0
        %4068 = vmatpush.msra.mxu0 0.0
        %4069 = vmatpush.msra.mxu0 0.0
        %4070 = vmatpush.msra.mxu0 0.0
        %4071 = vmatpush.msra.mxu0 0.0
        %4072 = vmatpush.msra.mxu0 0.0
        %4073 = vmatpush.msra.mxu0 0.0
        %4074 = vmatpush.msra.mxu0 0.0
        %4075 = vmatpush.msra.mxu0 0.0
        %4076 = vmatpush.msra.mxu0 0.0
        %4077 = vmatpush.msra.mxu0 0.0
        %4078 = vmatpush.msra.mxu0 0.0
        %4079 = vmatpush.msra.mxu0 %v4031
        %4080 = vmatpush.msra.mxu0 %v4030
        %4081 = vmatmul.f32.gmra.mxu0 %v4035
        %v4082 = vpop.f32.mrf.mxu0
        %v4083 = vadd.f32 0.0, %v4082
        %4084 = vmatmul.f32.gmra.mxu0 %v4038
        %v4085 = vpop.f32.mrf.mxu0
        %v4086 = vadd.f32 0.0, %v4085
        %4087 = vdwg.mxu0
        %v4088 = vld [vmem:[%s22] sm:$0xff]
        %v4089 = vld [vmem:[%s22 + $0x8] sm:$0xff]
        %v4091 = vsel %vm2467, %v4083, 0
        %v4094 = vsel %vm2467, %v4086, 0
        %4096 = vmatpush.msra.mxu0 0.0
        %4097 = vmatpush.msra.mxu0 0.0
        %4098 = vmatpush.msra.mxu0 0.0
        %4099 = vmatpush.msra.mxu0 0.0
        %4100 = vmatpush.msra.mxu0 0.0
        %4101 = vmatpush.msra.mxu0 0.0
        %4102 = vmatpush.msra.mxu0 0.0
        %4103 = vmatpush.msra.mxu0 0.0
        %4104 = vmatpush.msra.mxu0 0.0
        %4105 = vmatpush.msra.mxu0 0.0
        %4106 = vmatpush.msra.mxu0 0.0
        %4107 = vmatpush.msra.mxu0 0.0
        %4108 = vmatpush.msra.mxu0 0.0
        %4109 = vmatpush.msra.mxu0 0.0
        %4110 = vmatpush.msra.mxu0 %v4089
        %4111 = vmatpush.msra.mxu0 %v4088
        %4112 = vmatmul.f32.gmra.mxu0 %v4091
        %v4113 = vpop.f32.mrf.mxu0
        %v4114 = vadd.f32 0.0, %v4113
        %4115 = vmatmul.f32.gmra.mxu0 %v4094
        %v4116 = vpop.f32.mrf.mxu0
        %v4117 = vadd.f32 0.0, %v4116
        %4118 = vdwg.mxu0
        %v4120 = vsel %vm2467, %v4058, 0
        %v4123 = vsel %vm2467, %v4061, 0
        %4125 = vmatpush.msra.mxu0 0.0
        %4126 = vmatpush.msra.mxu0 0.0
        %4127 = vmatpush.msra.mxu0 0.0
        %4128 = vmatpush.msra.mxu0 0.0
        %4129 = vmatpush.msra.mxu0 0.0
        %4130 = vmatpush.msra.mxu0 0.0
        %4131 = vmatpush.msra.mxu0 0.0
        %4132 = vmatpush.msra.mxu0 0.0
        %4133 = vmatpush.msra.mxu0 0.0
        %4134 = vmatpush.msra.mxu0 0.0
        %4135 = vmatpush.msra.mxu0 0.0
        %4136 = vmatpush.msra.mxu0 0.0
        %4137 = vmatpush.msra.mxu0 0.0
        %4138 = vmatpush.msra.mxu0 0.0
        %4139 = vmatpush.msra.mxu0 %v4064
        %4140 = vmatpush.msra.mxu0 %v4063
        %4141 = vmatmul.f32.gmra.mxu0 %v4120
        %v4142 = vpop.f32.mrf.mxu0
        %v4143 = vadd.f32 %v4114, %v4142
        %4144 = vmatmul.f32.gmra.mxu0 %v4123
        %v4145 = vpop.f32.mrf.mxu0
        %v4146 = vadd.f32 %v4117, %v4145
        %4147 = vdwg.mxu0
        %s4148 = scalar_lea.vmem %s20, 16
        %v4149 = vld [vmem:[%s4148] sm:$0xff]
        %v4150 = vld [vmem:[%s4148 + $0x8] sm:$0xff]
        %v4152 = vsel %vm2467, %v4149, 0
        %v4155 = vsel %vm2467, %v4150, 0
        %4157 = vmatpush.msra.mxu0 0.0
        %4158 = vmatpush.msra.mxu0 0.0
        %4159 = vmatpush.msra.mxu0 0.0
        %4160 = vmatpush.msra.mxu0 0.0
        %4161 = vmatpush.msra.mxu0 0.0
        %4162 = vmatpush.msra.mxu0 0.0
        %4163 = vmatpush.msra.mxu0 0.0
        %4164 = vmatpush.msra.mxu0 0.0
        %4165 = vmatpush.msra.mxu0 0.0
        %4166 = vmatpush.msra.mxu0 0.0
        %4167 = vmatpush.msra.mxu0 0.0
        %4168 = vmatpush.msra.mxu0 0.0
        %4169 = vmatpush.msra.mxu0 0.0
        %4170 = vmatpush.msra.mxu0 0.0
        %4171 = vmatpush.msra.mxu0 %v3692
        %4172 = vmatpush.msra.mxu0 %v3691
        %4173 = vmatmul.f32.gmra.mxu0 %v4152
        %v4174 = vpop.f32.mrf.mxu0
        %v4175 = vadd.f32 0.0, %v4174
        %4176 = vmatmul.f32.gmra.mxu0 %v4155
        %v4177 = vpop.f32.mrf.mxu0
        %v4178 = vadd.f32 0.0, %v4177
        %4179 = vdwg.mxu0
        %s4180 = scalar_lea.vmem %s21, 16
        %v4181 = vld [vmem:[%s4180] sm:$0xff]
        %v4182 = vld [vmem:[%s4180 + $0x8] sm:$0xff]
        %v4184 = vsel %vm2467, %v4175, 0
        %v4187 = vsel %vm2467, %v4178, 0
        %4189 = vmatpush.msra.mxu0 0.0
        %4190 = vmatpush.msra.mxu0 0.0
        %4191 = vmatpush.msra.mxu0 0.0
        %4192 = vmatpush.msra.mxu0 0.0
        %4193 = vmatpush.msra.mxu0 0.0
        %4194 = vmatpush.msra.mxu0 0.0
        %4195 = vmatpush.msra.mxu0 0.0
        %4196 = vmatpush.msra.mxu0 0.0
        %4197 = vmatpush.msra.mxu0 0.0
        %4198 = vmatpush.msra.mxu0 0.0
        %4199 = vmatpush.msra.mxu0 0.0
        %4200 = vmatpush.msra.mxu0 0.0
        %4201 = vmatpush.msra.mxu0 0.0
        %4202 = vmatpush.msra.mxu0 0.0
        %4203 = vmatpush.msra.mxu0 %v4182
        %4204 = vmatpush.msra.mxu0 %v4181
        %4205 = vmatmul.f32.gmra.mxu0 %v4184
        %v4206 = vpop.f32.mrf.mxu0
        %v4207 = vadd.f32 0.0, %v4206
        %4208 = vmatmul.f32.gmra.mxu0 %v4187
        %v4209 = vpop.f32.mrf.mxu0
        %v4210 = vadd.f32 0.0, %v4209
        %4211 = vdwg.mxu0
        %v4212 = vadd.f32 %v4143, %v4207
        %v4213 = vadd.f32 %v4146, %v4210
        %4214 = vmatpush.msra.mxu0 0.0
        %4215 = vmatpush.msra.mxu0 0.0
        %4216 = vmatpush.msra.mxu0 0.0
        %4217 = vmatpush.msra.mxu0 0.0
        %4218 = vmatpush.msra.mxu0 0.0
        %4219 = vmatpush.msra.mxu0 0.0
        %4220 = vmatpush.msra.mxu0 0.0
        %4221 = vmatpush.msra.mxu0 0.0
        %4222 = vmatpush.msra.mxu0 0.0
        %4223 = vmatpush.msra.mxu0 0.0
        %4224 = vmatpush.msra.mxu0 0.0
        %4225 = vmatpush.msra.mxu0 0.0
        %4226 = vmatpush.msra.mxu0 0.0
        %4227 = vmatpush.msra.mxu0 0.0
        %4228 = vmatpush.msra.mxu0 %v4031
        %4229 = vmatpush.msra.mxu0 %v4030
        %4230 = vmatmul.f32.gmra.mxu0 %v4152
        %v4231 = vpop.f32.mrf.mxu0
        %v4232 = vadd.f32 0.0, %v4231
        %4233 = vmatmul.f32.gmra.mxu0 %v4155
        %v4234 = vpop.f32.mrf.mxu0
        %v4235 = vadd.f32 0.0, %v4234
        %4236 = vdwg.mxu0
        %s4237 = scalar_lea.vmem %s22, 16
        %v4238 = vld [vmem:[%s4237] sm:$0xff]
        %v4239 = vld [vmem:[%s4237 + $0x8] sm:$0xff]
        %v4241 = vsel %vm2467, %v4232, 0
        %v4244 = vsel %vm2467, %v4235, 0
        %4246 = vmatpush.msra.mxu0 0.0
        %4247 = vmatpush.msra.mxu0 0.0
        %4248 = vmatpush.msra.mxu0 0.0
        %4249 = vmatpush.msra.mxu0 0.0
        %4250 = vmatpush.msra.mxu0 0.0
        %4251 = vmatpush.msra.mxu0 0.0
        %4252 = vmatpush.msra.mxu0 0.0
        %4253 = vmatpush.msra.mxu0 0.0
        %4254 = vmatpush.msra.mxu0 0.0
        %4255 = vmatpush.msra.mxu0 0.0
        %4256 = vmatpush.msra.mxu0 0.0
        %4257 = vmatpush.msra.mxu0 0.0
        %4258 = vmatpush.msra.mxu0 0.0
        %4259 = vmatpush.msra.mxu0 0.0
        %4260 = vmatpush.msra.mxu0 %v4239
        %4261 = vmatpush.msra.mxu0 %v4238
        %4262 = vmatmul.f32.gmra.mxu0 %v4241
        %v4263 = vpop.f32.mrf.mxu0
        %v4264 = vadd.f32 0.0, %v4263
        %4265 = vmatmul.f32.gmra.mxu0 %v4244
        %v4266 = vpop.f32.mrf.mxu0
        %v4267 = vadd.f32 0.0, %v4266
        %4268 = vdwg.mxu0
        %v4269 = vadd.f32 %v4212, %v4264
        %v4270 = vadd.f32 %v4213, %v4267
        %s4271 = scalar_lea.vmem %s20, 32
        %v4272 = vld [vmem:[%s4271] sm:$0xff]
        %v4273 = vld [vmem:[%s4271 + $0x8] sm:$0xff]
        %v4275 = vsel %vm2467, %v4272, 0
        %v4278 = vsel %vm2467, %v4273, 0
        %4280 = vmatpush.msra.mxu0 0.0
        %4281 = vmatpush.msra.mxu0 0.0
        %4282 = vmatpush.msra.mxu0 0.0
        %4283 = vmatpush.msra.mxu0 0.0
        %4284 = vmatpush.msra.mxu0 0.0
        %4285 = vmatpush.msra.mxu0 0.0
        %4286 = vmatpush.msra.mxu0 0.0
        %4287 = vmatpush.msra.mxu0 0.0
        %4288 = vmatpush.msra.mxu0 0.0
        %4289 = vmatpush.msra.mxu0 0.0
        %4290 = vmatpush.msra.mxu0 0.0
        %4291 = vmatpush.msra.mxu0 0.0
        %4292 = vmatpush.msra.mxu0 0.0
        %4293 = vmatpush.msra.mxu0 0.0
        %4294 = vmatpush.msra.mxu0 %v3692
        %4295 = vmatpush.msra.mxu0 %v3691
        %4296 = vmatmul.f32.gmra.mxu0 %v4275
        %v4297 = vpop.f32.mrf.mxu0
        %v4298 = vadd.f32 0.0, %v4297
        %4299 = vmatmul.f32.gmra.mxu0 %v4278
        %v4300 = vpop.f32.mrf.mxu0
        %v4301 = vadd.f32 0.0, %v4300
        %4302 = vdwg.mxu0
        %s4303 = scalar_lea.vmem %s21, 32
        %v4304 = vld [vmem:[%s4303] sm:$0xff]
        %v4305 = vld [vmem:[%s4303 + $0x8] sm:$0xff]
        %v4307 = vsel %vm2467, %v4298, 0
        %v4310 = vsel %vm2467, %v4301, 0
        %4312 = vmatpush.msra.mxu0 0.0
        %4313 = vmatpush.msra.mxu0 0.0
        %4314 = vmatpush.msra.mxu0 0.0
        %4315 = vmatpush.msra.mxu0 0.0
        %4316 = vmatpush.msra.mxu0 0.0
        %4317 = vmatpush.msra.mxu0 0.0
        %4318 = vmatpush.msra.mxu0 0.0
        %4319 = vmatpush.msra.mxu0 0.0
        %4320 = vmatpush.msra.mxu0 0.0
        %4321 = vmatpush.msra.mxu0 0.0
        %4322 = vmatpush.msra.mxu0 0.0
        %4323 = vmatpush.msra.mxu0 0.0
        %4324 = vmatpush.msra.mxu0 0.0
        %4325 = vmatpush.msra.mxu0 0.0
        %4326 = vmatpush.msra.mxu0 %v4305
        %4327 = vmatpush.msra.mxu0 %v4304
        %4328 = vmatmul.f32.gmra.mxu0 %v4307
        %v4329 = vpop.f32.mrf.mxu0
        %v4330 = vadd.f32 0.0, %v4329
        %4331 = vmatmul.f32.gmra.mxu0 %v4310
        %v4332 = vpop.f32.mrf.mxu0
        %v4333 = vadd.f32 0.0, %v4332
        %4334 = vdwg.mxu0
        %v4335 = vadd.f32 %v4269, %v4330
        %v4336 = vadd.f32 %v4270, %v4333
        %4337 = vmatpush.msra.mxu0 0.0
        %4338 = vmatpush.msra.mxu0 0.0
        %4339 = vmatpush.msra.mxu0 0.0
        %4340 = vmatpush.msra.mxu0 0.0
        %4341 = vmatpush.msra.mxu0 0.0
        %4342 = vmatpush.msra.mxu0 0.0
        %4343 = vmatpush.msra.mxu0 0.0
        %4344 = vmatpush.msra.mxu0 0.0
        %4345 = vmatpush.msra.mxu0 0.0
        %4346 = vmatpush.msra.mxu0 0.0
        %4347 = vmatpush.msra.mxu0 0.0
        %4348 = vmatpush.msra.mxu0 0.0
        %4349 = vmatpush.msra.mxu0 0.0
        %4350 = vmatpush.msra.mxu0 0.0
        %4351 = vmatpush.msra.mxu0 %v4031
        %4352 = vmatpush.msra.mxu0 %v4030
        %4353 = vmatmul.f32.gmra.mxu0 %v4275
        %v4354 = vpop.f32.mrf.mxu0
        %v4355 = vadd.f32 0.0, %v4354
        %4356 = vmatmul.f32.gmra.mxu0 %v4278
        %v4357 = vpop.f32.mrf.mxu0
        %v4358 = vadd.f32 0.0, %v4357
        %4359 = vdwg.mxu0
        %s4360 = scalar_lea.vmem %s22, 32
        %v4361 = vld [vmem:[%s4360] sm:$0xff]
        %v4362 = vld [vmem:[%s4360 + $0x8] sm:$0xff]
        %v4364 = vsel %vm2467, %v4355, 0
        %v4367 = vsel %vm2467, %v4358, 0
        %4369 = vmatpush.msra.mxu0 0.0
        %4370 = vmatpush.msra.mxu0 0.0
        %4371 = vmatpush.msra.mxu0 0.0
        %4372 = vmatpush.msra.mxu0 0.0
        %4373 = vmatpush.msra.mxu0 0.0
        %4374 = vmatpush.msra.mxu0 0.0
        %4375 = vmatpush.msra.mxu0 0.0
        %4376 = vmatpush.msra.mxu0 0.0
        %4377 = vmatpush.msra.mxu0 0.0
        %4378 = vmatpush.msra.mxu0 0.0
        %4379 = vmatpush.msra.mxu0 0.0
        %4380 = vmatpush.msra.mxu0 0.0
        %4381 = vmatpush.msra.mxu0 0.0
        %4382 = vmatpush.msra.mxu0 0.0
        %4383 = vmatpush.msra.mxu0 %v4362
        %4384 = vmatpush.msra.mxu0 %v4361
        %4385 = vmatmul.f32.gmra.mxu0 %v4364
        %v4386 = vpop.f32.mrf.mxu0
        %v4387 = vadd.f32 0.0, %v4386
        %4388 = vmatmul.f32.gmra.mxu0 %v4367
        %v4389 = vpop.f32.mrf.mxu0
        %v4390 = vadd.f32 0.0, %v4389
        %4391 = vdwg.mxu0
        %v4392 = vadd.f32 %v4335, %v4387
        %v4393 = vadd.f32 %v4336, %v4390
        %s4394 = scalar_lea.vmem %s20, 48
        %v4395 = vld [vmem:[%s4394] sm:$0xff]
        %v4396 = vld [vmem:[%s4394 + $0x8] sm:$0xff]
        %v4398 = vsel %vm2467, %v4395, 0
        %v4401 = vsel %vm2467, %v4396, 0
        %4403 = vmatpush.msra.mxu0 0.0
        %4404 = vmatpush.msra.mxu0 0.0
        %4405 = vmatpush.msra.mxu0 0.0
        %4406 = vmatpush.msra.mxu0 0.0
        %4407 = vmatpush.msra.mxu0 0.0
        %4408 = vmatpush.msra.mxu0 0.0
        %4409 = vmatpush.msra.mxu0 0.0
        %4410 = vmatpush.msra.mxu0 0.0
        %4411 = vmatpush.msra.mxu0 0.0
        %4412 = vmatpush.msra.mxu0 0.0
        %4413 = vmatpush.msra.mxu0 0.0
        %4414 = vmatpush.msra.mxu0 0.0
        %4415 = vmatpush.msra.mxu0 0.0
        %4416 = vmatpush.msra.mxu0 0.0
        %4417 = vmatpush.msra.mxu0 %v3692
        %4418 = vmatpush.msra.mxu0 %v3691
        %4419 = vmatmul.f32.gmra.mxu0 %v4398
        %v4420 = vpop.f32.mrf.mxu0
        %v4421 = vadd.f32 0.0, %v4420
        %4422 = vmatmul.f32.gmra.mxu0 %v4401
        %v4423 = vpop.f32.mrf.mxu0
        %v4424 = vadd.f32 0.0, %v4423
        %4425 = vdwg.mxu0
        %s4426 = scalar_lea.vmem %s21, 48
        %v4427 = vld [vmem:[%s4426] sm:$0xff]
        %v4428 = vld [vmem:[%s4426 + $0x8] sm:$0xff]
        %v4430 = vsel %vm2467, %v4421, 0
        %v4433 = vsel %vm2467, %v4424, 0
        %4435 = vmatpush.msra.mxu0 0.0
        %4436 = vmatpush.msra.mxu0 0.0
        %4437 = vmatpush.msra.mxu0 0.0
        %4438 = vmatpush.msra.mxu0 0.0
        %4439 = vmatpush.msra.mxu0 0.0
        %4440 = vmatpush.msra.mxu0 0.0
        %4441 = vmatpush.msra.mxu0 0.0
        %4442 = vmatpush.msra.mxu0 0.0
        %4443 = vmatpush.msra.mxu0 0.0
        %4444 = vmatpush.msra.mxu0 0.0
        %4445 = vmatpush.msra.mxu0 0.0
        %4446 = vmatpush.msra.mxu0 0.0
        %4447 = vmatpush.msra.mxu0 0.0
        %4448 = vmatpush.msra.mxu0 0.0
        %4449 = vmatpush.msra.mxu0 %v4428
        %4450 = vmatpush.msra.mxu0 %v4427
        %4451 = vmatmul.f32.gmra.mxu0 %v4430
        %v4452 = vpop.f32.mrf.mxu0
        %v4453 = vadd.f32 0.0, %v4452
        %4454 = vmatmul.f32.gmra.mxu0 %v4433
        %v4455 = vpop.f32.mrf.mxu0
        %v4456 = vadd.f32 0.0, %v4455
        %4457 = vdwg.mxu0
        %v4458 = vadd.f32 %v4392, %v4453
        %v4459 = vadd.f32 %v4393, %v4456
        %4460 = vmatpush.msra.mxu0 0.0
        %4461 = vmatpush.msra.mxu0 0.0
        %4462 = vmatpush.msra.mxu0 0.0
        %4463 = vmatpush.msra.mxu0 0.0
        %4464 = vmatpush.msra.mxu0 0.0
        %4465 = vmatpush.msra.mxu0 0.0
        %4466 = vmatpush.msra.mxu0 0.0
        %4467 = vmatpush.msra.mxu0 0.0
        %4468 = vmatpush.msra.mxu0 0.0
        %4469 = vmatpush.msra.mxu0 0.0
        %4470 = vmatpush.msra.mxu0 0.0
        %4471 = vmatpush.msra.mxu0 0.0
        %4472 = vmatpush.msra.mxu0 0.0
        %4473 = vmatpush.msra.mxu0 0.0
        %4474 = vmatpush.msra.mxu0 %v4031
        %4475 = vmatpush.msra.mxu0 %v4030
        %4476 = vmatmul.f32.gmra.mxu0 %v4398
        %v4477 = vpop.f32.mrf.mxu0
        %v4478 = vadd.f32 0.0, %v4477
        %4479 = vmatmul.f32.gmra.mxu0 %v4401
        %v4480 = vpop.f32.mrf.mxu0
        %v4481 = vadd.f32 0.0, %v4480
        %4482 = vdwg.mxu0
        %s4483 = scalar_lea.vmem %s22, 48
        %v4484 = vld [vmem:[%s4483] sm:$0xff]
        %v4485 = vld [vmem:[%s4483 + $0x8] sm:$0xff]
        %v4487 = vsel %vm2467, %v4478, 0
        %v4490 = vsel %vm2467, %v4481, 0
        %4492 = vmatpush.msra.mxu0 0.0
        %4493 = vmatpush.msra.mxu0 0.0
        %4494 = vmatpush.msra.mxu0 0.0
        %4495 = vmatpush.msra.mxu0 0.0
        %4496 = vmatpush.msra.mxu0 0.0
        %4497 = vmatpush.msra.mxu0 0.0
        %4498 = vmatpush.msra.mxu0 0.0
        %4499 = vmatpush.msra.mxu0 0.0
        %4500 = vmatpush.msra.mxu0 0.0
        %4501 = vmatpush.msra.mxu0 0.0
        %4502 = vmatpush.msra.mxu0 0.0
        %4503 = vmatpush.msra.mxu0 0.0
        %4504 = vmatpush.msra.mxu0 0.0
        %4505 = vmatpush.msra.mxu0 0.0
        %4506 = vmatpush.msra.mxu0 %v4485
        %4507 = vmatpush.msra.mxu0 %v4484
        %4508 = vmatmul.f32.gmra.mxu0 %v4487
        %v4509 = vpop.f32.mrf.mxu0
        %v4510 = vadd.f32 0.0, %v4509
        %4511 = vmatmul.f32.gmra.mxu0 %v4490
        %v4512 = vpop.f32.mrf.mxu0
        %v4513 = vadd.f32 0.0, %v4512
        %4514 = vdwg.mxu0
        %v4515 = vadd.f32 %v4458, %v4510
        %v4516 = vadd.f32 %v4459, %v4513
        %s4517 = scalar_lea.vmem %s20, 64
        %v4518 = vld [vmem:[%s4517] sm:$0xff]
        %v4519 = vld [vmem:[%s4517 + $0x8] sm:$0xff]
        %v4521 = vsel %vm2467, %v4518, 0
        %v4524 = vsel %vm2467, %v4519, 0
        %4526 = vmatpush.msra.mxu0 0.0
        %4527 = vmatpush.msra.mxu0 0.0
        %4528 = vmatpush.msra.mxu0 0.0
        %4529 = vmatpush.msra.mxu0 0.0
        %4530 = vmatpush.msra.mxu0 0.0
        %4531 = vmatpush.msra.mxu0 0.0
        %4532 = vmatpush.msra.mxu0 0.0
        %4533 = vmatpush.msra.mxu0 0.0
        %4534 = vmatpush.msra.mxu0 0.0
        %4535 = vmatpush.msra.mxu0 0.0
        %4536 = vmatpush.msra.mxu0 0.0
        %4537 = vmatpush.msra.mxu0 0.0
        %4538 = vmatpush.msra.mxu0 0.0
        %4539 = vmatpush.msra.mxu0 0.0
        %4540 = vmatpush.msra.mxu0 %v3692
        %4541 = vmatpush.msra.mxu0 %v3691
        %4542 = vmatmul.f32.gmra.mxu0 %v4521
        %v4543 = vpop.f32.mrf.mxu0
        %v4544 = vadd.f32 0.0, %v4543
        %4545 = vmatmul.f32.gmra.mxu0 %v4524
        %v4546 = vpop.f32.mrf.mxu0
        %v4547 = vadd.f32 0.0, %v4546
        %4548 = vdwg.mxu0
        %s4549 = scalar_lea.vmem %s21, 64
        %v4550 = vld [vmem:[%s4549] sm:$0xff]
        %v4551 = vld [vmem:[%s4549 + $0x8] sm:$0xff]
        %v4553 = vsel %vm2467, %v4544, 0
        %v4556 = vsel %vm2467, %v4547, 0
        %4558 = vmatpush.msra.mxu0 0.0
        %4559 = vmatpush.msra.mxu0 0.0
        %4560 = vmatpush.msra.mxu0 0.0
        %4561 = vmatpush.msra.mxu0 0.0
        %4562 = vmatpush.msra.mxu0 0.0
        %4563 = vmatpush.msra.mxu0 0.0
        %4564 = vmatpush.msra.mxu0 0.0
        %4565 = vmatpush.msra.mxu0 0.0
        %4566 = vmatpush.msra.mxu0 0.0
        %4567 = vmatpush.msra.mxu0 0.0
        %4568 = vmatpush.msra.mxu0 0.0
        %4569 = vmatpush.msra.mxu0 0.0
        %4570 = vmatpush.msra.mxu0 0.0
        %4571 = vmatpush.msra.mxu0 0.0
        %4572 = vmatpush.msra.mxu0 %v4551
        %4573 = vmatpush.msra.mxu0 %v4550
        %4574 = vmatmul.f32.gmra.mxu0 %v4553
        %v4575 = vpop.f32.mrf.mxu0
        %v4576 = vadd.f32 0.0, %v4575
        %4577 = vmatmul.f32.gmra.mxu0 %v4556
        %v4578 = vpop.f32.mrf.mxu0
        %v4579 = vadd.f32 0.0, %v4578
        %4580 = vdwg.mxu0
        %v4581 = vadd.f32 %v4515, %v4576
        %v4582 = vadd.f32 %v4516, %v4579
        %4583 = vmatpush.msra.mxu0 0.0
        %4584 = vmatpush.msra.mxu0 0.0
        %4585 = vmatpush.msra.mxu0 0.0
        %4586 = vmatpush.msra.mxu0 0.0
        %4587 = vmatpush.msra.mxu0 0.0
        %4588 = vmatpush.msra.mxu0 0.0
        %4589 = vmatpush.msra.mxu0 0.0
        %4590 = vmatpush.msra.mxu0 0.0
        %4591 = vmatpush.msra.mxu0 0.0
        %4592 = vmatpush.msra.mxu0 0.0
        %4593 = vmatpush.msra.mxu0 0.0
        %4594 = vmatpush.msra.mxu0 0.0
        %4595 = vmatpush.msra.mxu0 0.0
        %4596 = vmatpush.msra.mxu0 0.0
        %4597 = vmatpush.msra.mxu0 %v4031
        %4598 = vmatpush.msra.mxu0 %v4030
        %4599 = vmatmul.f32.gmra.mxu0 %v4521
        %v4600 = vpop.f32.mrf.mxu0
        %v4601 = vadd.f32 0.0, %v4600
        %4602 = vmatmul.f32.gmra.mxu0 %v4524
        %v4603 = vpop.f32.mrf.mxu0
        %v4604 = vadd.f32 0.0, %v4603
        %4605 = vdwg.mxu0
        %s4606 = scalar_lea.vmem %s22, 64
        %v4607 = vld [vmem:[%s4606] sm:$0xff]
        %v4608 = vld [vmem:[%s4606 + $0x8] sm:$0xff]
        %v4610 = vsel %vm2467, %v4601, 0
        %v4613 = vsel %vm2467, %v4604, 0
        %4615 = vmatpush.msra.mxu0 0.0
        %4616 = vmatpush.msra.mxu0 0.0
        %4617 = vmatpush.msra.mxu0 0.0
        %4618 = vmatpush.msra.mxu0 0.0
        %4619 = vmatpush.msra.mxu0 0.0
        %4620 = vmatpush.msra.mxu0 0.0
        %4621 = vmatpush.msra.mxu0 0.0
        %4622 = vmatpush.msra.mxu0 0.0
        %4623 = vmatpush.msra.mxu0 0.0
        %4624 = vmatpush.msra.mxu0 0.0
        %4625 = vmatpush.msra.mxu0 0.0
        %4626 = vmatpush.msra.mxu0 0.0
        %4627 = vmatpush.msra.mxu0 0.0
        %4628 = vmatpush.msra.mxu0 0.0
        %4629 = vmatpush.msra.mxu0 %v4608
        %4630 = vmatpush.msra.mxu0 %v4607
        %4631 = vmatmul.f32.gmra.mxu0 %v4610
        %v4632 = vpop.f32.mrf.mxu0
        %v4633 = vadd.f32 0.0, %v4632
        %4634 = vmatmul.f32.gmra.mxu0 %v4613
        %v4635 = vpop.f32.mrf.mxu0
        %v4636 = vadd.f32 0.0, %v4635
        %4637 = vdwg.mxu0
        %v4638 = vadd.f32 %v4581, %v4633
        %v4639 = vadd.f32 %v4582, %v4636
        %s4640 = scalar_lea.vmem %s20, 80
        %v4641 = vld [vmem:[%s4640] sm:$0xff]
        %v4642 = vld [vmem:[%s4640 + $0x8] sm:$0xff]
        %v4644 = vsel %vm2467, %v4641, 0
        %v4647 = vsel %vm2467, %v4642, 0
        %4649 = vmatpush.msra.mxu0 0.0
        %4650 = vmatpush.msra.mxu0 0.0
        %4651 = vmatpush.msra.mxu0 0.0
        %4652 = vmatpush.msra.mxu0 0.0
        %4653 = vmatpush.msra.mxu0 0.0
        %4654 = vmatpush.msra.mxu0 0.0
        %4655 = vmatpush.msra.mxu0 0.0
        %4656 = vmatpush.msra.mxu0 0.0
        %4657 = vmatpush.msra.mxu0 0.0
        %4658 = vmatpush.msra.mxu0 0.0
        %4659 = vmatpush.msra.mxu0 0.0
        %4660 = vmatpush.msra.mxu0 0.0
        %4661 = vmatpush.msra.mxu0 0.0
        %4662 = vmatpush.msra.mxu0 0.0
        %4663 = vmatpush.msra.mxu0 %v3692
        %4664 = vmatpush.msra.mxu0 %v3691
        %4665 = vmatmul.f32.gmra.mxu0 %v4644
        %v4666 = vpop.f32.mrf.mxu0
        %v4667 = vadd.f32 0.0, %v4666
        %4668 = vmatmul.f32.gmra.mxu0 %v4647
        %v4669 = vpop.f32.mrf.mxu0
        %v4670 = vadd.f32 0.0, %v4669
        %4671 = vdwg.mxu0
        %s4672 = scalar_lea.vmem %s21, 80
        %v4673 = vld [vmem:[%s4672] sm:$0xff]
        %v4674 = vld [vmem:[%s4672 + $0x8] sm:$0xff]
        %v4676 = vsel %vm2467, %v4667, 0
        %v4679 = vsel %vm2467, %v4670, 0
        %4681 = vmatpush.msra.mxu0 0.0
        %4682 = vmatpush.msra.mxu0 0.0
        %4683 = vmatpush.msra.mxu0 0.0
        %4684 = vmatpush.msra.mxu0 0.0
        %4685 = vmatpush.msra.mxu0 0.0
        %4686 = vmatpush.msra.mxu0 0.0
        %4687 = vmatpush.msra.mxu0 0.0
        %4688 = vmatpush.msra.mxu0 0.0
        %4689 = vmatpush.msra.mxu0 0.0
        %4690 = vmatpush.msra.mxu0 0.0
        %4691 = vmatpush.msra.mxu0 0.0
        %4692 = vmatpush.msra.mxu0 0.0
        %4693 = vmatpush.msra.mxu0 0.0
        %4694 = vmatpush.msra.mxu0 0.0
        %4695 = vmatpush.msra.mxu0 %v4674
        %4696 = vmatpush.msra.mxu0 %v4673
        %4697 = vmatmul.f32.gmra.mxu0 %v4676
        %v4698 = vpop.f32.mrf.mxu0
        %v4699 = vadd.f32 0.0, %v4698
        %4700 = vmatmul.f32.gmra.mxu0 %v4679
        %v4701 = vpop.f32.mrf.mxu0
        %v4702 = vadd.f32 0.0, %v4701
        %4703 = vdwg.mxu0
        %v4704 = vadd.f32 %v4638, %v4699
        %v4705 = vadd.f32 %v4639, %v4702
        %4706 = vmatpush.msra.mxu0 0.0
        %4707 = vmatpush.msra.mxu0 0.0
        %4708 = vmatpush.msra.mxu0 0.0
        %4709 = vmatpush.msra.mxu0 0.0
        %4710 = vmatpush.msra.mxu0 0.0
        %4711 = vmatpush.msra.mxu0 0.0
        %4712 = vmatpush.msra.mxu0 0.0
        %4713 = vmatpush.msra.mxu0 0.0
        %4714 = vmatpush.msra.mxu0 0.0
        %4715 = vmatpush.msra.mxu0 0.0
        %4716 = vmatpush.msra.mxu0 0.0
        %4717 = vmatpush.msra.mxu0 0.0
        %4718 = vmatpush.msra.mxu0 0.0
        %4719 = vmatpush.msra.mxu0 0.0
        %4720 = vmatpush.msra.mxu0 %v4031
        %4721 = vmatpush.msra.mxu0 %v4030
        %4722 = vmatmul.f32.gmra.mxu0 %v4644
        %v4723 = vpop.f32.mrf.mxu0
        %v4724 = vadd.f32 0.0, %v4723
        %4725 = vmatmul.f32.gmra.mxu0 %v4647
        %v4726 = vpop.f32.mrf.mxu0
        %v4727 = vadd.f32 0.0, %v4726
        %4728 = vdwg.mxu0
        %s4729 = scalar_lea.vmem %s22, 80
        %v4730 = vld [vmem:[%s4729] sm:$0xff]
        %v4731 = vld [vmem:[%s4729 + $0x8] sm:$0xff]
        %v4733 = vsel %vm2467, %v4724, 0
        %v4736 = vsel %vm2467, %v4727, 0
        %4738 = vmatpush.msra.mxu0 0.0
        %4739 = vmatpush.msra.mxu0 0.0
        %4740 = vmatpush.msra.mxu0 0.0
        %4741 = vmatpush.msra.mxu0 0.0
        %4742 = vmatpush.msra.mxu0 0.0
        %4743 = vmatpush.msra.mxu0 0.0
        %4744 = vmatpush.msra.mxu0 0.0
        %4745 = vmatpush.msra.mxu0 0.0
        %4746 = vmatpush.msra.mxu0 0.0
        %4747 = vmatpush.msra.mxu0 0.0
        %4748 = vmatpush.msra.mxu0 0.0
        %4749 = vmatpush.msra.mxu0 0.0
        %4750 = vmatpush.msra.mxu0 0.0
        %4751 = vmatpush.msra.mxu0 0.0
        %4752 = vmatpush.msra.mxu0 %v4731
        %4753 = vmatpush.msra.mxu0 %v4730
        %4754 = vmatmul.f32.gmra.mxu0 %v4733
        %v4755 = vpop.f32.mrf.mxu0
        %v4756 = vadd.f32 0.0, %v4755
        %4757 = vmatmul.f32.gmra.mxu0 %v4736
        %v4758 = vpop.f32.mrf.mxu0
        %v4759 = vadd.f32 0.0, %v4758
        %4760 = vdwg.mxu0
        %v4761 = vadd.f32 %v4704, %v4756
        %v4762 = vadd.f32 %v4705, %v4759
        %s4763 = scalar_lea.vmem %s20, 96
        %v4764 = vld [vmem:[%s4763] sm:$0xff]
        %v4765 = vld [vmem:[%s4763 + $0x8] sm:$0xff]
        %v4767 = vsel %vm2467, %v4764, 0
        %v4770 = vsel %vm2467, %v4765, 0
        %4772 = vmatpush.msra.mxu0 0.0
        %4773 = vmatpush.msra.mxu0 0.0
        %4774 = vmatpush.msra.mxu0 0.0
        %4775 = vmatpush.msra.mxu0 0.0
        %4776 = vmatpush.msra.mxu0 0.0
        %4777 = vmatpush.msra.mxu0 0.0
        %4778 = vmatpush.msra.mxu0 0.0
        %4779 = vmatpush.msra.mxu0 0.0
        %4780 = vmatpush.msra.mxu0 0.0
        %4781 = vmatpush.msra.mxu0 0.0
        %4782 = vmatpush.msra.mxu0 0.0
        %4783 = vmatpush.msra.mxu0 0.0
        %4784 = vmatpush.msra.mxu0 0.0
        %4785 = vmatpush.msra.mxu0 0.0
        %4786 = vmatpush.msra.mxu0 %v3692
        %4787 = vmatpush.msra.mxu0 %v3691
        %4788 = vmatmul.f32.gmra.mxu0 %v4767
        %v4789 = vpop.f32.mrf.mxu0
        %v4790 = vadd.f32 0.0, %v4789
        %4791 = vmatmul.f32.gmra.mxu0 %v4770
        %v4792 = vpop.f32.mrf.mxu0
        %v4793 = vadd.f32 0.0, %v4792
        %4794 = vdwg.mxu0
        %s4795 = scalar_lea.vmem %s21, 96
        %v4796 = vld [vmem:[%s4795] sm:$0xff]
        %v4797 = vld [vmem:[%s4795 + $0x8] sm:$0xff]
        %v4799 = vsel %vm2467, %v4790, 0
        %v4802 = vsel %vm2467, %v4793, 0
        %4804 = vmatpush.msra.mxu0 0.0
        %4805 = vmatpush.msra.mxu0 0.0
        %4806 = vmatpush.msra.mxu0 0.0
        %4807 = vmatpush.msra.mxu0 0.0
        %4808 = vmatpush.msra.mxu0 0.0
        %4809 = vmatpush.msra.mxu0 0.0
        %4810 = vmatpush.msra.mxu0 0.0
        %4811 = vmatpush.msra.mxu0 0.0
        %4812 = vmatpush.msra.mxu0 0.0
        %4813 = vmatpush.msra.mxu0 0.0
        %4814 = vmatpush.msra.mxu0 0.0
        %4815 = vmatpush.msra.mxu0 0.0
        %4816 = vmatpush.msra.mxu0 0.0
        %4817 = vmatpush.msra.mxu0 0.0
        %4818 = vmatpush.msra.mxu0 %v4797
        %4819 = vmatpush.msra.mxu0 %v4796
        %4820 = vmatmul.f32.gmra.mxu0 %v4799
        %v4821 = vpop.f32.mrf.mxu0
        %v4822 = vadd.f32 0.0, %v4821
        %4823 = vmatmul.f32.gmra.mxu0 %v4802
        %v4824 = vpop.f32.mrf.mxu0
        %v4825 = vadd.f32 0.0, %v4824
        %4826 = vdwg.mxu0
        %v4827 = vadd.f32 %v4761, %v4822
        %v4828 = vadd.f32 %v4762, %v4825
        %4829 = vmatpush.msra.mxu0 0.0
        %4830 = vmatpush.msra.mxu0 0.0
        %4831 = vmatpush.msra.mxu0 0.0
        %4832 = vmatpush.msra.mxu0 0.0
        %4833 = vmatpush.msra.mxu0 0.0
        %4834 = vmatpush.msra.mxu0 0.0
        %4835 = vmatpush.msra.mxu0 0.0
        %4836 = vmatpush.msra.mxu0 0.0
        %4837 = vmatpush.msra.mxu0 0.0
        %4838 = vmatpush.msra.mxu0 0.0
        %4839 = vmatpush.msra.mxu0 0.0
        %4840 = vmatpush.msra.mxu0 0.0
        %4841 = vmatpush.msra.mxu0 0.0
        %4842 = vmatpush.msra.mxu0 0.0
        %4843 = vmatpush.msra.mxu0 %v4031
        %4844 = vmatpush.msra.mxu0 %v4030
        %4845 = vmatmul.f32.gmra.mxu0 %v4767
        %v4846 = vpop.f32.mrf.mxu0
        %v4847 = vadd.f32 0.0, %v4846
        %4848 = vmatmul.f32.gmra.mxu0 %v4770
        %v4849 = vpop.f32.mrf.mxu0
        %v4850 = vadd.f32 0.0, %v4849
        %4851 = vdwg.mxu0
        %s4852 = scalar_lea.vmem %s22, 96
        %v4853 = vld [vmem:[%s4852] sm:$0xff]
        %v4854 = vld [vmem:[%s4852 + $0x8] sm:$0xff]
        %v4856 = vsel %vm2467, %v4847, 0
        %v4859 = vsel %vm2467, %v4850, 0
        %4861 = vmatpush.msra.mxu0 0.0
        %4862 = vmatpush.msra.mxu0 0.0
        %4863 = vmatpush.msra.mxu0 0.0
        %4864 = vmatpush.msra.mxu0 0.0
        %4865 = vmatpush.msra.mxu0 0.0
        %4866 = vmatpush.msra.mxu0 0.0
        %4867 = vmatpush.msra.mxu0 0.0
        %4868 = vmatpush.msra.mxu0 0.0
        %4869 = vmatpush.msra.mxu0 0.0
        %4870 = vmatpush.msra.mxu0 0.0
        %4871 = vmatpush.msra.mxu0 0.0
        %4872 = vmatpush.msra.mxu0 0.0
        %4873 = vmatpush.msra.mxu0 0.0
        %4874 = vmatpush.msra.mxu0 0.0
        %4875 = vmatpush.msra.mxu0 %v4854
        %4876 = vmatpush.msra.mxu0 %v4853
        %4877 = vmatmul.f32.gmra.mxu0 %v4856
        %v4878 = vpop.f32.mrf.mxu0
        %v4879 = vadd.f32 0.0, %v4878
        %4880 = vmatmul.f32.gmra.mxu0 %v4859
        %v4881 = vpop.f32.mrf.mxu0
        %v4882 = vadd.f32 0.0, %v4881
        %4883 = vdwg.mxu0
        %v4884 = vadd.f32 %v4827, %v4879
        %v4885 = vadd.f32 %v4828, %v4882
        %s4886 = scalar_lea.vmem %s20, 112
        %v4887 = vld [vmem:[%s4886] sm:$0xff]
        %v4888 = vld [vmem:[%s4886 + $0x8] sm:$0xff]
        %v4890 = vsel %vm2467, %v4887, 0
        %v4893 = vsel %vm2467, %v4888, 0
        %4895 = vmatpush.msra.mxu0 0.0
        %4896 = vmatpush.msra.mxu0 0.0
        %4897 = vmatpush.msra.mxu0 0.0
        %4898 = vmatpush.msra.mxu0 0.0
        %4899 = vmatpush.msra.mxu0 0.0
        %4900 = vmatpush.msra.mxu0 0.0
        %4901 = vmatpush.msra.mxu0 0.0
        %4902 = vmatpush.msra.mxu0 0.0
        %4903 = vmatpush.msra.mxu0 0.0
        %4904 = vmatpush.msra.mxu0 0.0
        %4905 = vmatpush.msra.mxu0 0.0
        %4906 = vmatpush.msra.mxu0 0.0
        %4907 = vmatpush.msra.mxu0 0.0
        %4908 = vmatpush.msra.mxu0 0.0
        %4909 = vmatpush.msra.mxu0 %v3692
        %4910 = vmatpush.msra.mxu0 %v3691
        %4911 = vmatmul.f32.gmra.mxu0 %v4890
        %v4912 = vpop.f32.mrf.mxu0
        %v4913 = vadd.f32 0.0, %v4912
        %4914 = vmatmul.f32.gmra.mxu0 %v4893
        %v4915 = vpop.f32.mrf.mxu0
        %v4916 = vadd.f32 0.0, %v4915
        %4917 = vdwg.mxu0
        %s4918 = scalar_lea.vmem %s21, 112
        %v4919 = vld [vmem:[%s4918] sm:$0xff]
        %v4920 = vld [vmem:[%s4918 + $0x8] sm:$0xff]
        %v4922 = vsel %vm2467, %v4913, 0
        %v4925 = vsel %vm2467, %v4916, 0
        %4927 = vmatpush.msra.mxu0 0.0
        %4928 = vmatpush.msra.mxu0 0.0
        %4929 = vmatpush.msra.mxu0 0.0
        %4930 = vmatpush.msra.mxu0 0.0
        %4931 = vmatpush.msra.mxu0 0.0
        %4932 = vmatpush.msra.mxu0 0.0
        %4933 = vmatpush.msra.mxu0 0.0
        %4934 = vmatpush.msra.mxu0 0.0
        %4935 = vmatpush.msra.mxu0 0.0
        %4936 = vmatpush.msra.mxu0 0.0
        %4937 = vmatpush.msra.mxu0 0.0
        %4938 = vmatpush.msra.mxu0 0.0
        %4939 = vmatpush.msra.mxu0 0.0
        %4940 = vmatpush.msra.mxu0 0.0
        %4941 = vmatpush.msra.mxu0 %v4920
        %4942 = vmatpush.msra.mxu0 %v4919
        %4943 = vmatmul.f32.gmra.mxu0 %v4922
        %v4944 = vpop.f32.mrf.mxu0
        %v4945 = vadd.f32 0.0, %v4944
        %4946 = vmatmul.f32.gmra.mxu0 %v4925
        %v4947 = vpop.f32.mrf.mxu0
        %v4948 = vadd.f32 0.0, %v4947
        %4949 = vdwg.mxu0
        %v4950 = vadd.f32 %v4884, %v4945
        %v4951 = vadd.f32 %v4885, %v4948
        %4952 = vmatpush.msra.mxu0 0.0
        %4953 = vmatpush.msra.mxu0 0.0
        %4954 = vmatpush.msra.mxu0 0.0
        %4955 = vmatpush.msra.mxu0 0.0
        %4956 = vmatpush.msra.mxu0 0.0
        %4957 = vmatpush.msra.mxu0 0.0
        %4958 = vmatpush.msra.mxu0 0.0
        %4959 = vmatpush.msra.mxu0 0.0
        %4960 = vmatpush.msra.mxu0 0.0
        %4961 = vmatpush.msra.mxu0 0.0
        %4962 = vmatpush.msra.mxu0 0.0
        %4963 = vmatpush.msra.mxu0 0.0
        %4964 = vmatpush.msra.mxu0 0.0
        %4965 = vmatpush.msra.mxu0 0.0
        %4966 = vmatpush.msra.mxu0 %v4031
        %4967 = vmatpush.msra.mxu0 %v4030
        %4968 = vmatmul.f32.gmra.mxu0 %v4890
        %v4969 = vpop.f32.mrf.mxu0
        %v4970 = vadd.f32 0.0, %v4969
        %4971 = vmatmul.f32.gmra.mxu0 %v4893
        %v4972 = vpop.f32.mrf.mxu0
        %v4973 = vadd.f32 0.0, %v4972
        %4974 = vdwg.mxu0
        %s4975 = scalar_lea.vmem %s22, 112
        %v4976 = vld [vmem:[%s4975] sm:$0xff]
        %v4977 = vld [vmem:[%s4975 + $0x8] sm:$0xff]
        %v4979 = vsel %vm2467, %v4970, 0
        %v4982 = vsel %vm2467, %v4973, 0
        %4984 = vmatpush.msra.mxu0 0.0
        %4985 = vmatpush.msra.mxu0 0.0
        %4986 = vmatpush.msra.mxu0 0.0
        %4987 = vmatpush.msra.mxu0 0.0
        %4988 = vmatpush.msra.mxu0 0.0
        %4989 = vmatpush.msra.mxu0 0.0
        %4990 = vmatpush.msra.mxu0 0.0
        %4991 = vmatpush.msra.mxu0 0.0
        %4992 = vmatpush.msra.mxu0 0.0
        %4993 = vmatpush.msra.mxu0 0.0
        %4994 = vmatpush.msra.mxu0 0.0
        %4995 = vmatpush.msra.mxu0 0.0
        %4996 = vmatpush.msra.mxu0 0.0
        %4997 = vmatpush.msra.mxu0 0.0
        %4998 = vmatpush.msra.mxu0 %v4977
        %4999 = vmatpush.msra.mxu0 %v4976
        %5000 = vmatmul.f32.gmra.mxu0 %v4979
        %v5001 = vpop.f32.mrf.mxu0
        %v5002 = vadd.f32 0.0, %v5001
        %5003 = vmatmul.f32.gmra.mxu0 %v4982
        %v5004 = vpop.f32.mrf.mxu0
        %v5005 = vadd.f32 0.0, %v5004
        %5006 = vdwg.mxu0
        %v5007 = vadd.f32 %v4950, %v5002
        %v5008 = vadd.f32 %v4951, %v5005
        %s5009 = scalar_lea.vmem %s20, 128
        %v5010 = vld [vmem:[%s5009] sm:$0xff]
        %v5011 = vld [vmem:[%s5009 + $0x8] sm:$0xff]
        %v5013 = vsel %vm2467, %v5010, 0
        %v5016 = vsel %vm2467, %v5011, 0
        %5018 = vmatpush.msra.mxu0 0.0
        %5019 = vmatpush.msra.mxu0 0.0
        %5020 = vmatpush.msra.mxu0 0.0
        %5021 = vmatpush.msra.mxu0 0.0
        %5022 = vmatpush.msra.mxu0 0.0
        %5023 = vmatpush.msra.mxu0 0.0
        %5024 = vmatpush.msra.mxu0 0.0
        %5025 = vmatpush.msra.mxu0 0.0
        %5026 = vmatpush.msra.mxu0 0.0
        %5027 = vmatpush.msra.mxu0 0.0
        %5028 = vmatpush.msra.mxu0 0.0
        %5029 = vmatpush.msra.mxu0 0.0
        %5030 = vmatpush.msra.mxu0 0.0
        %5031 = vmatpush.msra.mxu0 0.0
        %5032 = vmatpush.msra.mxu0 %v3692
        %5033 = vmatpush.msra.mxu0 %v3691
        %5034 = vmatmul.f32.gmra.mxu0 %v5013
        %v5035 = vpop.f32.mrf.mxu0
        %v5036 = vadd.f32 0.0, %v5035
        %5037 = vmatmul.f32.gmra.mxu0 %v5016
        %v5038 = vpop.f32.mrf.mxu0
        %v5039 = vadd.f32 0.0, %v5038
        %5040 = vdwg.mxu0
        %s5041 = scalar_lea.vmem %s21, 128
        %v5042 = vld [vmem:[%s5041] sm:$0xff]
        %v5043 = vld [vmem:[%s5041 + $0x8] sm:$0xff]
        %v5045 = vsel %vm2467, %v5036, 0
        %v5048 = vsel %vm2467, %v5039, 0
        %5050 = vmatpush.msra.mxu0 0.0
        %5051 = vmatpush.msra.mxu0 0.0
        %5052 = vmatpush.msra.mxu0 0.0
        %5053 = vmatpush.msra.mxu0 0.0
        %5054 = vmatpush.msra.mxu0 0.0
        %5055 = vmatpush.msra.mxu0 0.0
        %5056 = vmatpush.msra.mxu0 0.0
        %5057 = vmatpush.msra.mxu0 0.0
        %5058 = vmatpush.msra.mxu0 0.0
        %5059 = vmatpush.msra.mxu0 0.0
        %5060 = vmatpush.msra.mxu0 0.0
        %5061 = vmatpush.msra.mxu0 0.0
        %5062 = vmatpush.msra.mxu0 0.0
        %5063 = vmatpush.msra.mxu0 0.0
        %5064 = vmatpush.msra.mxu0 %v5043
        %5065 = vmatpush.msra.mxu0 %v5042
        %5066 = vmatmul.f32.gmra.mxu0 %v5045
        %v5067 = vpop.f32.mrf.mxu0
        %v5068 = vadd.f32 0.0, %v5067
        %5069 = vmatmul.f32.gmra.mxu0 %v5048
        %v5070 = vpop.f32.mrf.mxu0
        %v5071 = vadd.f32 0.0, %v5070
        %5072 = vdwg.mxu0
        %v5073 = vadd.f32 %v5007, %v5068
        %v5074 = vadd.f32 %v5008, %v5071
        %5075 = vmatpush.msra.mxu0 0.0
        %5076 = vmatpush.msra.mxu0 0.0
        %5077 = vmatpush.msra.mxu0 0.0
        %5078 = vmatpush.msra.mxu0 0.0
        %5079 = vmatpush.msra.mxu0 0.0
        %5080 = vmatpush.msra.mxu0 0.0
        %5081 = vmatpush.msra.mxu0 0.0
        %5082 = vmatpush.msra.mxu0 0.0
        %5083 = vmatpush.msra.mxu0 0.0
        %5084 = vmatpush.msra.mxu0 0.0
        %5085 = vmatpush.msra.mxu0 0.0
        %5086 = vmatpush.msra.mxu0 0.0
        %5087 = vmatpush.msra.mxu0 0.0
        %5088 = vmatpush.msra.mxu0 0.0
        %5089 = vmatpush.msra.mxu0 %v4031
        %5090 = vmatpush.msra.mxu0 %v4030
        %5091 = vmatmul.f32.gmra.mxu0 %v5013
        %v5092 = vpop.f32.mrf.mxu0
        %v5093 = vadd.f32 0.0, %v5092
        %5094 = vmatmul.f32.gmra.mxu0 %v5016
        %v5095 = vpop.f32.mrf.mxu0
        %v5096 = vadd.f32 0.0, %v5095
        %5097 = vdwg.mxu0
        %s5098 = scalar_lea.vmem %s22, 128
        %v5099 = vld [vmem:[%s5098] sm:$0xff]
        %v5100 = vld [vmem:[%s5098 + $0x8] sm:$0xff]
        %v5102 = vsel %vm2467, %v5093, 0
        %v5105 = vsel %vm2467, %v5096, 0
        %5107 = vmatpush.msra.mxu0 0.0
        %5108 = vmatpush.msra.mxu0 0.0
        %5109 = vmatpush.msra.mxu0 0.0
        %5110 = vmatpush.msra.mxu0 0.0
        %5111 = vmatpush.msra.mxu0 0.0
        %5112 = vmatpush.msra.mxu0 0.0
        %5113 = vmatpush.msra.mxu0 0.0
        %5114 = vmatpush.msra.mxu0 0.0
        %5115 = vmatpush.msra.mxu0 0.0
        %5116 = vmatpush.msra.mxu0 0.0
        %5117 = vmatpush.msra.mxu0 0.0
        %5118 = vmatpush.msra.mxu0 0.0
        %5119 = vmatpush.msra.mxu0 0.0
        %5120 = vmatpush.msra.mxu0 0.0
        %5121 = vmatpush.msra.mxu0 %v5100
        %5122 = vmatpush.msra.mxu0 %v5099
        %5123 = vmatmul.f32.gmra.mxu0 %v5102
        %v5124 = vpop.f32.mrf.mxu0
        %v5125 = vadd.f32 0.0, %v5124
        %5126 = vmatmul.f32.gmra.mxu0 %v5105
        %v5127 = vpop.f32.mrf.mxu0
        %v5128 = vadd.f32 0.0, %v5127
        %5129 = vdwg.mxu0
        %v5130 = vadd.f32 %v5073, %v5125
        %v5131 = vadd.f32 %v5074, %v5128
        %v5132 = vld [vmem:[%s23] sm:$0x1]
        %v5134 = vperm.slane %v5132, 0
        %v5136 = vmul.f32 %v5130, %v5134
        %v5137 = vmul.f32 %v5131, %v5134
        %v5138 = vld [vmem:[%s24] sm:$0x1]
        %v5140 = vperm.slane %v5138, 0
        %v5142 = vadd.f32 %v5136, %v5140
        %v5143 = vadd.f32 %v5137, %v5140
        %v5144 = vmax.f32 %v5142, 0.0
        %v5145 = vmax.f32 %v5143, 0.0
        %5146 = vst.msk [vmem:[%s828] sm:$0xff] %vm2467, %v5144
        %5147 = vst.msk [vmem:[%s828 + $0x8] sm:$0xff] %vm2467, %v5145
        %s5148 = sand.u32 %s584, 1
        %s5149 = scalar_lea.sflag [#allocation6], %s5148
        %s5150 = sand.u32 %s584, 1
        %s5151 = smul.addr %s5150, 16
        %s5152 = scalar_lea.vmem [#allocation12], %s5151
        // Predicated region
        $region137: #{stem_block_attn.1} parent=119 // pred_check
          %p5153 = pneg %p594
        $region138: #{stem_block_attn.1} parent=119 // pred_check_branch
          %5155 = sbr.rel (%p5153) target = $region140
        $region139: #{stem_block_attn.1} parent=119 // pred_region
          %5157 = vsyncadd %s5149, 0
          %s5158 = smul.addr %s46, 2
          %s5159 = smul.addr %s5158, 8
          %s5160 = scalar_lea.hbm %s25, %s5159
          %s5161 = sshll.u32 %s5152, 4
          %s5162 = int_to_ptr.vmem [resolvable:$true] %s5161
          %s5163 = sshll.u32 %s5160, 4
          %s5164 = int_to_ptr.hbm [resolvable:$true] %s5163
          %5169 = dma.vmem_to_hbm [thread:$0]  %s5162, 256, %s5164, %s5149, 128, 128, 8
        $region140: #{stem_block_attn.1} parent=119 // pred_fallthru
          _
      $region120: #{stem_block_attn.1} parent=5 // pred_fallthru
        _
      %p5170 = scmp.le.s32.totalorder 2, %s41
      // Predicated region
      $region141: #{stem_block_attn.1} parent=5 // pred_check
        %p5171 = pneg %p5170
      $region142: #{stem_block_attn.1} parent=5 // pred_check_branch
        %5173 = sbr.rel (%p5171) target = $region144
      $region143: #{stem_block_attn.1} parent=5 // pred_region
        %s5174 = ssub.s32 %s41, 2
        // Predicated region
        $region145: #{stem_block_attn.1} parent=143 // pred_check
          %p5175 = pneg %p600
        $region146: #{stem_block_attn.1} parent=143 // pred_check_branch
          %5177 = sbr.rel (%p5175) target = $region148
        $region147: #{stem_block_attn.1} parent=143 // pred_region
          %s5178 = sand.u32 %s585, 1
          %s5179 = scalar_lea.sflag [#allocation6], %s5178
          %s5180 = sand.u32 %s585, 1
          %s5181 = smul.addr %s5180, 16
          %s5182 = scalar_lea.vmem [#allocation12], %s5181
          %5184 = dma.done %s5179, 256
        $region148: #{stem_block_attn.1} parent=143 // pred_fallthru
          _
      $region144: #{stem_block_attn.1} parent=5 // pred_fallthru
        _
    $region6: #{stem_block_attn.1} parent=1 // loop_footer
      %s45 = sadd.s32 1, %s41
    $region7: #{stem_block_attn.1} parent=1 // loop_footer_branch
      %40 = sbr.rel target = $region3
    $region8: #{stem_block_attn.1} parent=1 // loop_exit
      _
    %5185 = vsyncpa [#allocation5], 1
    %s5186 = scalar_lea.sflag [#allocation5], 1
    %5187 = vsyncpa %s5186, 1
    %5188 = vsyncpa [#allocation8], 1
    %5189 = vsyncpa [#allocation11], 1
    %5190 = vsyncpa [#allocation6], 1
    %s5191 = scalar_lea.sflag [#allocation6], 1
    %5192 = vsyncpa %s5191, 1

</llo_original>
